<compile_context>
chip_gen: v7x
topology: tpu7x:2x2x1
jax: 0.10.0
libtpu: 0.0.40
codegen_flags: <defaults>
</compile_context>

<pallas_src>
import functools

import jax
import jax.numpy as jnp
from jax.experimental import pallas as pl
from jax.experimental.pallas import tpu as pltpu


_OUT_PAD = 128  # lane-dense padding for the fc4 (256 -> 1) matmul (in VMEM only)


def _round_up(x, m):
    return ((x + m - 1) // m) * m


def _leaky_relu(x, slope=0.2):
    # max-form: 2 VALU ops/element (mul + max) instead of 3 (cmp + mul + select).
    return jnp.maximum(x, slope * x)


def variational_fn_kernel(x_ref,
                          w1_ref, b1_ref,
                          w2_ref, b2_ref,
                          w3_ref, b3_ref,
                          w4_ref, b4_ref,
                          o_ref,
                          *, compute_dtype):
    # Fused 4-layer MLP for one batch tile. Weights are already in compute_dtype
    # (cast once in the wrapper); matmuls accumulate in f32; bias add and
    # leaky_relu run in f32 on the VPU; activations are re-cast to compute_dtype
    # for the next matmul (and for their VMEM materialization).
    cd = compute_dtype
    x = x_ref[...].astype(cd)
    h = jnp.dot(x, w1_ref[...], preferred_element_type=jnp.float32) + b1_ref[...]
    h = _leaky_relu(h).astype(cd)
    h = jnp.dot(h, w2_ref[...], preferred_element_type=jnp.float32) + b2_ref[...]
    h = _leaky_relu(h).astype(cd)
    h = jnp.dot(h, w3_ref[...], preferred_element_type=jnp.float32) + b3_ref[...]
    h = _leaky_relu(h).astype(cd)
    out = jnp.dot(h, w4_ref[...], preferred_element_type=jnp.float32) + b4_ref[...]
    # Only column 0 of the 128-lane-padded fc4 result is real; store just that
    # column to HBM (narrow writeback; avoids 128x write amplification).
    o_ref[...] = out[:, :1].astype(o_ref.dtype)


def _const_spec(shape, single_buffer):
    """Grid-invariant (weight / bias) block: resident across all grid steps.
    Single-buffered when supported so it does not reserve 2x VMEM."""
    index_map = lambda i: (0,) * len(shape)
    if single_buffer:
        try:
            return pl.BlockSpec(shape, index_map, pipeline_mode=pl.Buffered(1))
        except TypeError:  # older jax without pipeline_mode kwarg
            pass
    return pl.BlockSpec(shape, index_map)


def variational_function(x, params, *, tm=512, compute_dtype=jnp.bfloat16):
    """x: (B, input_dim) float32. Returns (B, 1) float32.

    tm: max batch tile (rows per grid step).
    compute_dtype: jnp.bfloat16 (default; single-pass MXU, f32 accumulation) or
    jnp.float32 for a tighter-precision (but ~3x slower on the MXU) path.
    """
    (w1, b1), (w2, b2), (w3, b3), (w4, b4) = params
    B, D = x.shape
    H1, H2, H3 = w1.shape[1], w2.shape[1], w3.shape[1]

    # Pad fc4 out to 128 lanes so the final MXU pass is full lane width.
    # Column 0 holds the real output; the rest are zeros (dropped in-kernel).
    w4p = jnp.zeros((w4.shape[0], _OUT_PAD), w4.dtype).at[:, :1].set(w4)
    b4p = jnp.zeros((1, _OUT_PAD), b4.dtype).at[:, :1].set(b4)

    # Pre-cast weights ONCE in the wrapper (bf16 by default): single-pass MXU
    # matmuls, half the weight DMA and VMEM, and no per-step VPU casts.
    # Biases stay f32 (added to the f32 accumulator).
    w1c = w1.astype(compute_dtype)
    w2c = w2.astype(compute_dtype)
    w3c = w3.astype(compute_dtype)
    w4c = w4p.astype(compute_dtype)

    # Batch tile: large enough to amortize the ~0.35us per-grid-step overhead,
    # but capped at ceil(Bp/2) when the batch allows so the grid has >=2 steps
    # (lets v7x shard batch tiles across its two TensorCores). Small batches
    # shrink the tile instead of padding up to `tm` rows.
    Bp8 = _round_up(B, 8)
    tile = max(8, min(tm, Bp8))
    if Bp8 >= 16:
        tile = min(tile, _round_up(pl.cdiv(Bp8, 2), 8))
    Bp = _round_up(B, tile)
    if Bp != B:
        x = jnp.pad(x, ((0, Bp - B), (0, 0)))
    grid = (Bp // tile,)

    cbytes = jnp.dtype(compute_dtype).itemsize
    flops = 2 * Bp * (D * H1 + H1 * H2 + H2 * H3 + H3 * _OUT_PAD)
    bytes_accessed = (x.dtype.itemsize * Bp * D
                      + cbytes * (D * H1 + H1 * H2 + H2 * H3 + H3 * _OUT_PAD)
                      + 4 * (H1 + H2 + H3 + _OUT_PAD)
                      + 4 * Bp)

    kernel = functools.partial(variational_fn_kernel, compute_dtype=compute_dtype)

    def _run(single_buffer):
        return pl.pallas_call(
            kernel,
            out_shape=jax.ShapeDtypeStruct((Bp, 1), jnp.float32),
            grid_spec=pltpu.PrefetchScalarGridSpec(
                num_scalar_prefetch=0,
                grid=grid,
                in_specs=[
                    pl.BlockSpec((tile, D), lambda i: (i, 0)),   # x batch tile
                    _const_spec(w1c.shape, single_buffer),
                    _const_spec(b1.shape, single_buffer),
                    _const_spec(w2c.shape, single_buffer),
                    _const_spec(b2.shape, single_buffer),
                    _const_spec(w3c.shape, single_buffer),
                    _const_spec(b3.shape, single_buffer),
                    _const_spec(w4c.shape, single_buffer),
                    _const_spec(b4p.shape, single_buffer),
                ],
                out_specs=pl.BlockSpec((tile, 1), lambda i: (i, 0)),
            ),
            compiler_params=pltpu.CompilerParams(
                # Independent batch tiles -> shard across v7x's two TensorCores.
                dimension_semantics=("parallel",),
                # Raise v5e's 16 MiB scoped default; stays within v7x's 64 MiB.
                vmem_limit_bytes=48 * 1024 * 1024,
            ),
            cost_estimate=pl.CostEstimate(
                flops=flops, transcendentals=0, bytes_accessed=bytes_accessed),
        )(x, w1c, b1, w2c, b2, w3c, b3, w4c, b4p)

    try:
        out = _run(single_buffer=True)
    except Exception:  # pragma: no cover - jax versions rejecting Buffered(1)
        out = _run(single_buffer=False)

    return out[:B]


def init_params(key, input_dim):
    """Deterministic init mirroring PyTorch nn.Linear (U(-1/sqrt(fan_in), +)).
    Weights stored as (in_features, out_features)."""
    dims = [input_dim, 1024, 1024 // 2, 1024 // 4, 1]
    params = []
    for i in range(4):
        fan_in, fan_out = dims[i], dims[i + 1]
        key, kw, kb = jax.random.split(key, 3)
        bound = 1.0 / (fan_in ** 0.5)
        w = jax.random.uniform(kw, (fan_in, fan_out), jnp.float32, -bound, bound)
        b = jax.random.uniform(kb, (1, fan_out), jnp.float32, -bound, bound)
        params.append((w, b))
    return params


def reference(x, params):
    (w1, b1), (w2, b2), (w3, b3), (w4, b4) = params
    dot = functools.partial(jnp.dot, precision=jax.lax.Precision.HIGHEST)
    h = _leaky_relu(dot(x, w1) + b1)
    h = _leaky_relu(dot(h, w2) + b2)
    h = _leaky_relu(dot(h, w3) + b3)
    return dot(h, w4) + b4


if __name__ == "__main__":
    key = jax.random.PRNGKey(0)
    key, kx = jax.random.split(key)

    # Non-multiple-of-8 batch exercises the padding path and the >=2-step grid.
    B, input_dim = 10, 32
    x = jax.random.normal(kx, (B, input_dim), jnp.float32)
    params = init_params(key, input_dim)

    ref = reference(x, params)

    # Default bf16 MXU path (f32 accumulation): loose tolerance vs f32 reference.
    out_bf16 = jax.block_until_ready(variational_function(x, params))
    assert out_bf16.shape == (B, 1)
    assert jnp.allclose(out_bf16, ref, atol=5e-2, rtol=5e-2), "bf16 mismatch vs reference"

    # Full-f32 MXU path: tight tolerance.
    out_f32 = jax.block_until_ready(
        variational_function(x, params, compute_dtype=jnp.float32))
    assert out_f32.shape == (B, 1)
    assert jnp.allclose(out_f32, ref, atol=1e-4, rtol=1e-4), "f32 mismatch vs reference"

    print("KERNEL_OK")
</pallas_src>

<mosaic_0001>
module attributes {stable_mosaic.version = 11 : i64} {
  func.func @variational_fn_kernel(%arg0: i32, %arg1: memref<8x32xf32, #tpu.memory_space<vmem>>, %arg2: memref<32x1024xbf16, #tpu.memory_space<vmem>>, %arg3: memref<1x1024xf32, #tpu.memory_space<vmem>>, %arg4: memref<1024x512xbf16, #tpu.memory_space<vmem>>, %arg5: memref<1x512xf32, #tpu.memory_space<vmem>>, %arg6: memref<512x256xbf16, #tpu.memory_space<vmem>>, %arg7: memref<1x256xf32, #tpu.memory_space<vmem>>, %arg8: memref<256x128xbf16, #tpu.memory_space<vmem>>, %arg9: memref<1x128xf32, #tpu.memory_space<vmem>>, %arg10: memref<8x1xf32, #tpu.memory_space<vmem>>) attributes {dimension_semantics = [#tpu.dimension_semantics<parallel>], iteration_bounds = array<i64: 2>, scalar_prefetch = 0 : i64, scratch_operands = 0 : i64, tpu.core_type = #tpu.core_type<tc>, window_params = [{transform_indices = @transform_0, window_bounds = array<i64: 8, 32>}, {pipeline_mode = #tpu.pipeline_mode<synchronous>, transform_indices = @transform_1, window_bounds = array<i64: 32, 1024>}, {pipeline_mode = #tpu.pipeline_mode<synchronous>, transform_indices = @transform_2, window_bounds = array<i64: 1, 1024>}, {pipeline_mode = #tpu.pipeline_mode<synchronous>, transform_indices = @transform_3, window_bounds = array<i64: 1024, 512>}, {pipeline_mode = #tpu.pipeline_mode<synchronous>, transform_indices = @transform_4, window_bounds = array<i64: 1, 512>}, {pipeline_mode = #tpu.pipeline_mode<synchronous>, transform_indices = @transform_5, window_bounds = array<i64: 512, 256>}, {pipeline_mode = #tpu.pipeline_mode<synchronous>, transform_indices = @transform_6, window_bounds = array<i64: 1, 256>}, {pipeline_mode = #tpu.pipeline_mode<synchronous>, transform_indices = @transform_7, window_bounds = array<i64: 256, 128>}, {pipeline_mode = #tpu.pipeline_mode<synchronous>, transform_indices = @transform_8, window_bounds = array<i64: 1, 128>}, {transform_indices = @transform_9, window_bounds = array<i64: 8, 1>}]} {
    %c0 = arith.constant 0 : index
    %c0_0 = arith.constant 0 : index
    %0 = vector.load %arg1[%c0, %c0_0] : memref<8x32xf32, #tpu.memory_space<vmem>>, vector<8x32xf32>
    %1 = arith.truncf %0 : vector<8x32xf32> to vector<8x32xbf16>
    %c0_1 = arith.constant 0 : index
    %c0_2 = arith.constant 0 : index
    %2 = vector.load %arg2[%c0_1, %c0_2] : memref<32x1024xbf16, #tpu.memory_space<vmem>>, vector<32x1024xbf16>
    %cst = arith.constant dense<0.000000e+00> : vector<8x1024xf32>
    %3 = tpu.matmul %1, %2, %cst {dimension_numbers = #tpu.dot_dimension_numbers<[1], [0], [0], [1], [0, 0, 1, 1], [], []>} : vector<8x32xbf16>, vector<32x1024xbf16>, vector<8x1024xf32> -> vector<8x1024xf32>
    %c0_3 = arith.constant 0 : index
    %c0_4 = arith.constant 0 : index
    %4 = vector.load %arg3[%c0_3, %c0_4] : memref<1x1024xf32, #tpu.memory_space<vmem>>, vector<1x1024xf32>
    %5 = vector.broadcast %4 : vector<1x1024xf32> to vector<8x1024xf32>
    %6 = arith.addf %3, %5 : vector<8x1024xf32>
    %cst_5 = arith.constant 2.000000e-01 : f32
    %7 = vector.broadcast %cst_5 : f32 to vector<8x1024xf32>
    %8 = arith.mulf %7, %6 : vector<8x1024xf32>
    %9 = arith.maximumf %6, %8 : vector<8x1024xf32>
    %10 = arith.truncf %9 : vector<8x1024xf32> to vector<8x1024xbf16>
    %c0_6 = arith.constant 0 : index
    %c0_7 = arith.constant 0 : index
    %11 = vector.load %arg4[%c0_6, %c0_7] : memref<1024x512xbf16, #tpu.memory_space<vmem>>, vector<1024x512xbf16>
    %cst_8 = arith.constant dense<0.000000e+00> : vector<8x512xf32>
    %12 = tpu.matmul %10, %11, %cst_8 {dimension_numbers = #tpu.dot_dimension_numbers<[1], [0], [0], [1], [0, 0, 1, 1], [], []>} : vector<8x1024xbf16>, vector<1024x512xbf16>, vector<8x512xf32> -> vector<8x512xf32>
    %c0_9 = arith.constant 0 : index
    %c0_10 = arith.constant 0 : index
    %13 = vector.load %arg5[%c0_9, %c0_10] : memref<1x512xf32, #tpu.memory_space<vmem>>, vector<1x512xf32>
    %14 = vector.broadcast %13 : vector<1x512xf32> to vector<8x512xf32>
    %15 = arith.addf %12, %14 : vector<8x512xf32>
    %cst_11 = arith.constant 2.000000e-01 : f32
    %16 = vector.broadcast %cst_11 : f32 to vector<8x512xf32>
    %17 = arith.mulf %16, %15 : vector<8x512xf32>
    %18 = arith.maximumf %15, %17 : vector<8x512xf32>
    %19 = arith.truncf %18 : vector<8x512xf32> to vector<8x512xbf16>
    %c0_12 = arith.constant 0 : index
    %c0_13 = arith.constant 0 : index
    %20 = vector.load %arg6[%c0_12, %c0_13] : memref<512x256xbf16, #tpu.memory_space<vmem>>, vector<512x256xbf16>
    %cst_14 = arith.constant dense<0.000000e+00> : vector<8x256xf32>
    %21 = tpu.matmul %19, %20, %cst_14 {dimension_numbers = #tpu.dot_dimension_numbers<[1], [0], [0], [1], [0, 0, 1, 1], [], []>} : vector<8x512xbf16>, vector<512x256xbf16>, vector<8x256xf32> -> vector<8x256xf32>
    %c0_15 = arith.constant 0 : index
    %c0_16 = arith.constant 0 : index
    %22 = vector.load %arg7[%c0_15, %c0_16] : memref<1x256xf32, #tpu.memory_space<vmem>>, vector<1x256xf32>
    %23 = vector.broadcast %22 : vector<1x256xf32> to vector<8x256xf32>
    %24 = arith.addf %21, %23 : vector<8x256xf32>
    %cst_17 = arith.constant 2.000000e-01 : f32
    %25 = vector.broadcast %cst_17 : f32 to vector<8x256xf32>
    %26 = arith.mulf %25, %24 : vector<8x256xf32>
    %27 = arith.maximumf %24, %26 : vector<8x256xf32>
    %28 = arith.truncf %27 : vector<8x256xf32> to vector<8x256xbf16>
    %c0_18 = arith.constant 0 : index
    %c0_19 = arith.constant 0 : index
    %29 = vector.load %arg8[%c0_18, %c0_19] : memref<256x128xbf16, #tpu.memory_space<vmem>>, vector<256x128xbf16>
    %cst_20 = arith.constant dense<0.000000e+00> : vector<8x128xf32>
    %30 = tpu.matmul %28, %29, %cst_20 {dimension_numbers = #tpu.dot_dimension_numbers<[1], [0], [0], [1], [0, 0, 1, 1], [], []>} : vector<8x256xbf16>, vector<256x128xbf16>, vector<8x128xf32> -> vector<8x128xf32>
    %c0_21 = arith.constant 0 : index
    %c0_22 = arith.constant 0 : index
    %31 = vector.load %arg9[%c0_21, %c0_22] : memref<1x128xf32, #tpu.memory_space<vmem>>, vector<1x128xf32>
    %32 = vector.broadcast %31 : vector<1x128xf32> to vector<8x128xf32>
    %33 = arith.addf %30, %32 : vector<8x128xf32>
    %34 = vector.extract_strided_slice %33 {offsets = [0, 0], sizes = [8, 1], strides = [1, 1]} : vector<8x128xf32> to vector<8x1xf32>
    %c0_23 = arith.constant 0 : index
    %c0_24 = arith.constant 0 : index
    %35 = vector.load %arg10[%c0_23, %c0_24] : memref<8x1xf32, #tpu.memory_space<vmem>>, vector<8x1xf32>
    tpu.vector_store %arg10[%c0_23, %c0_24], %34 {strides = array<i32>} : memref<8x1xf32, #tpu.memory_space<vmem>>, vector<8x1xf32>,
    return
  }
  func.func @transform_0(%arg0: i32) -> (i32, i32) {
    %c0_i32 = arith.constant 0 : i32
    %c0_i32_0 = arith.constant 0 : i32
    return %arg0, %c0_i32 : i32, i32
  }
  func.func @transform_1(%arg0: i32) -> (i32, i32) {
    %c0_i32 = arith.constant 0 : i32
    %c0_i32_0 = arith.constant 0 : i32
    %c0_i32_1 = arith.constant 0 : i32
    return %c0_i32, %c0_i32_0 : i32, i32
  }
  func.func @transform_2(%arg0: i32) -> (i32, i32) {
    %c0_i32 = arith.constant 0 : i32
    %c0_i32_0 = arith.constant 0 : i32
    %c0_i32_1 = arith.constant 0 : i32
    return %c0_i32, %c0_i32_0 : i32, i32
  }
  func.func @transform_3(%arg0: i32) -> (i32, i32) {
    %c0_i32 = arith.constant 0 : i32
    %c0_i32_0 = arith.constant 0 : i32
    %c0_i32_1 = arith.constant 0 : i32
    return %c0_i32, %c0_i32_0 : i32, i32
  }
  func.func @transform_4(%arg0: i32) -> (i32, i32) {
    %c0_i32 = arith.constant 0 : i32
    %c0_i32_0 = arith.constant 0 : i32
    %c0_i32_1 = arith.constant 0 : i32
    return %c0_i32, %c0_i32_0 : i32, i32
  }
  func.func @transform_5(%arg0: i32) -> (i32, i32) {
    %c0_i32 = arith.constant 0 : i32
    %c0_i32_0 = arith.constant 0 : i32
    %c0_i32_1 = arith.constant 0 : i32
    return %c0_i32, %c0_i32_0 : i32, i32
  }
  func.func @transform_6(%arg0: i32) -> (i32, i32) {
    %c0_i32 = arith.constant 0 : i32
    %c0_i32_0 = arith.constant 0 : i32
    %c0_i32_1 = arith.constant 0 : i32
    return %c0_i32, %c0_i32_0 : i32, i32
  }
  func.func @transform_7(%arg0: i32) -> (i32, i32) {
    %c0_i32 = arith.constant 0 : i32
    %c0_i32_0 = arith.constant 0 : i32
    %c0_i32_1 = arith.constant 0 : i32
    return %c0_i32, %c0_i32_0 : i32, i32
  }
  func.func @transform_8(%arg0: i32) -> (i32, i32) {
    %c0_i32 = arith.constant 0 : i32
    %c0_i32_0 = arith.constant 0 : i32
    %c0_i32_1 = arith.constant 0 : i32
    return %c0_i32, %c0_i32_0 : i32, i32
  }
  func.func @transform_9(%arg0: i32) -> (i32, i32) {
    %c0_i32 = arith.constant 0 : i32
    %c0_i32_0 = arith.constant 0 : i32
    return %arg0, %c0_i32 : i32, i32
  }
}

module attributes {stable_mosaic.version = 11 : i64} {
  func.func @variational_fn_kernel(%arg0: i32, %arg1: memref<8x32xf32, #tpu.memory_space<vmem>>, %arg2: memref<32x1024xbf16, #tpu.memory_space<vmem>>, %arg3: memref<1x1024xf32, #tpu.memory_space<vmem>>, %arg4: memref<1024x512xbf16, #tpu.memory_space<vmem>>, %arg5: memref<1x512xf32, #tpu.memory_space<vmem>>, %arg6: memref<512x256xbf16, #tpu.memory_space<vmem>>, %arg7: memref<1x256xf32, #tpu.memory_space<vmem>>, %arg8: memref<256x128xbf16, #tpu.memory_space<vmem>>, %arg9: memref<1x128xf32, #tpu.memory_space<vmem>>, %arg10: memref<8x1xf32, #tpu.memory_space<vmem>>) attributes {dimension_semantics = [#tpu.dimension_semantics<parallel>], iteration_bounds = array<i64: 2>, scalar_prefetch = 0 : i64, scratch_operands = 0 : i64, tpu.core_type = #tpu.core_type<tc>, window_params = [{transform_indices = @transform_0, window_bounds = array<i64: 8, 32>}, {pipeline_mode = #tpu.pipeline_mode<synchronous>, transform_indices = @transform_1, window_bounds = array<i64: 32, 1024>}, {pipeline_mode = #tpu.pipeline_mode<synchronous>, transform_indices = @transform_2, window_bounds = array<i64: 1, 1024>}, {pipeline_mode = #tpu.pipeline_mode<synchronous>, transform_indices = @transform_3, window_bounds = array<i64: 1024, 512>}, {pipeline_mode = #tpu.pipeline_mode<synchronous>, transform_indices = @transform_4, window_bounds = array<i64: 1, 512>}, {pipeline_mode = #tpu.pipeline_mode<synchronous>, transform_indices = @transform_5, window_bounds = array<i64: 512, 256>}, {pipeline_mode = #tpu.pipeline_mode<synchronous>, transform_indices = @transform_6, window_bounds = array<i64: 1, 256>}, {pipeline_mode = #tpu.pipeline_mode<synchronous>, transform_indices = @transform_7, window_bounds = array<i64: 256, 128>}, {pipeline_mode = #tpu.pipeline_mode<synchronous>, transform_indices = @transform_8, window_bounds = array<i64: 1, 128>}, {transform_indices = @transform_9, window_bounds = array<i64: 8, 1>}]} {
    %c0 = arith.constant 0 : index
    %c0_0 = arith.constant 0 : index
    %0 = vector.load %arg1[%c0, %c0_0] : memref<8x32xf32, #tpu.memory_space<vmem>>, vector<8x32xf32>
    %1 = arith.truncf %0 : vector<8x32xf32> to vector<8x32xbf16>
    %c0_1 = arith.constant 0 : index
    %c0_2 = arith.constant 0 : index
    %2 = vector.load %arg2[%c0_1, %c0_2] : memref<32x1024xbf16, #tpu.memory_space<vmem>>, vector<32x1024xbf16>
    %cst = arith.constant dense<0.000000e+00> : vector<8x1024xf32>
    %3 = tpu.matmul %1, %2, %cst {dimension_numbers = #tpu.dot_dimension_numbers<[1], [0], [0], [1], [0, 0, 1, 1], [], []>} : vector<8x32xbf16>, vector<32x1024xbf16>, vector<8x1024xf32> -> vector<8x1024xf32>
    %c0_3 = arith.constant 0 : index
    %c0_4 = arith.constant 0 : index
    %4 = vector.load %arg3[%c0_3, %c0_4] : memref<1x1024xf32, #tpu.memory_space<vmem>>, vector<1x1024xf32>
    %5 = vector.broadcast %4 : vector<1x1024xf32> to vector<8x1024xf32>
    %6 = arith.addf %3, %5 : vector<8x1024xf32>
    %cst_5 = arith.constant 2.000000e-01 : f32
    %7 = vector.broadcast %cst_5 : f32 to vector<8x1024xf32>
    %8 = arith.mulf %7, %6 : vector<8x1024xf32>
    %9 = arith.maximumf %6, %8 : vector<8x1024xf32>
    %10 = arith.truncf %9 : vector<8x1024xf32> to vector<8x1024xbf16>
    %c0_6 = arith.constant 0 : index
    %c0_7 = arith.constant 0 : index
    %11 = vector.load %arg4[%c0_6, %c0_7] : memref<1024x512xbf16, #tpu.memory_space<vmem>>, vector<1024x512xbf16>
    %cst_8 = arith.constant dense<0.000000e+00> : vector<8x512xf32>
    %12 = tpu.matmul %10, %11, %cst_8 {dimension_numbers = #tpu.dot_dimension_numbers<[1], [0], [0], [1], [0, 0, 1, 1], [], []>} : vector<8x1024xbf16>, vector<1024x512xbf16>, vector<8x512xf32> -> vector<8x512xf32>
    %c0_9 = arith.constant 0 : index
    %c0_10 = arith.constant 0 : index
    %13 = vector.load %arg5[%c0_9, %c0_10] : memref<1x512xf32, #tpu.memory_space<vmem>>, vector<1x512xf32>
    %14 = vector.broadcast %13 : vector<1x512xf32> to vector<8x512xf32>
    %15 = arith.addf %12, %14 : vector<8x512xf32>
    %cst_11 = arith.constant 2.000000e-01 : f32
    %16 = vector.broadcast %cst_11 : f32 to vector<8x512xf32>
    %17 = arith.mulf %16, %15 : vector<8x512xf32>
    %18 = arith.maximumf %15, %17 : vector<8x512xf32>
    %19 = arith.truncf %18 : vector<8x512xf32> to vector<8x512xbf16>
    %c0_12 = arith.constant 0 : index
    %c0_13 = arith.constant 0 : index
    %20 = vector.load %arg6[%c0_12, %c0_13] : memref<512x256xbf16, #tpu.memory_space<vmem>>, vector<512x256xbf16>
    %cst_14 = arith.constant dense<0.000000e+00> : vector<8x256xf32>
    %21 = tpu.matmul %19, %20, %cst_14 {dimension_numbers = #tpu.dot_dimension_numbers<[1], [0], [0], [1], [0, 0, 1, 1], [], []>} : vector<8x512xbf16>, vector<512x256xbf16>, vector<8x256xf32> -> vector<8x256xf32>
    %c0_15 = arith.constant 0 : index
    %c0_16 = arith.constant 0 : index
    %22 = vector.load %arg7[%c0_15, %c0_16] : memref<1x256xf32, #tpu.memory_space<vmem>>, vector<1x256xf32>
    %23 = vector.broadcast %22 : vector<1x256xf32> to vector<8x256xf32>
    %24 = arith.addf %21, %23 : vector<8x256xf32>
    %cst_17 = arith.constant 2.000000e-01 : f32
    %25 = vector.broadcast %cst_17 : f32 to vector<8x256xf32>
    %26 = arith.mulf %25, %24 : vector<8x256xf32>
    %27 = arith.maximumf %24, %26 : vector<8x256xf32>
    %28 = arith.truncf %27 : vector<8x256xf32> to vector<8x256xbf16>
    %c0_18 = arith.constant 0 : index
    %c0_19 = arith.constant 0 : index
    %29 = vector.load %arg8[%c0_18, %c0_19] : memref<256x128xbf16, #tpu.memory_space<vmem>>, vector<256x128xbf16>
    %cst_20 = arith.constant dense<0.000000e+00> : vector<8x128xf32>
    %30 = tpu.matmul %28, %29, %cst_20 {dimension_numbers = #tpu.dot_dimension_numbers<[1], [0], [0], [1], [0, 0, 1, 1], [], []>} : vector<8x256xbf16>, vector<256x128xbf16>, vector<8x128xf32> -> vector<8x128xf32>
    %c0_21 = arith.constant 0 : index
    %c0_22 = arith.constant 0 : index
    %31 = vector.load %arg9[%c0_21, %c0_22] : memref<1x128xf32, #tpu.memory_space<vmem>>, vector<1x128xf32>
    %32 = vector.broadcast %31 : vector<1x128xf32> to vector<8x128xf32>
    %33 = arith.addf %30, %32 : vector<8x128xf32>
    %34 = vector.extract_strided_slice %33 {offsets = [0, 0], sizes = [8, 1], strides = [1, 1]} : vector<8x128xf32> to vector<8x1xf32>
    %c0_23 = arith.constant 0 : index
    %c0_24 = arith.constant 0 : index
    %35 = vector.load %arg10[%c0_23, %c0_24] : memref<8x1xf32, #tpu.memory_space<vmem>>, vector<8x1xf32>
    tpu.vector_store %arg10[%c0_23, %c0_24], %34 {strides = array<i32>} : memref<8x1xf32, #tpu.memory_space<vmem>>, vector<8x1xf32>,
    return
  }
  func.func @transform_0(%arg0: i32) -> (i32, i32) {
    %c0_i32 = arith.constant 0 : i32
    %c0_i32_0 = arith.constant 0 : i32
    return %arg0, %c0_i32 : i32, i32
  }
  func.func @transform_1(%arg0: i32) -> (i32, i32) {
    %c0_i32 = arith.constant 0 : i32
    %c0_i32_0 = arith.constant 0 : i32
    %c0_i32_1 = arith.constant 0 : i32
    return %c0_i32, %c0_i32_0 : i32, i32
  }
  func.func @transform_2(%arg0: i32) -> (i32, i32) {
    %c0_i32 = arith.constant 0 : i32
    %c0_i32_0 = arith.constant 0 : i32
    %c0_i32_1 = arith.constant 0 : i32
    return %c0_i32, %c0_i32_0 : i32, i32
  }
  func.func @transform_3(%arg0: i32) -> (i32, i32) {
    %c0_i32 = arith.constant 0 : i32
    %c0_i32_0 = arith.constant 0 : i32
    %c0_i32_1 = arith.constant 0 : i32
    return %c0_i32, %c0_i32_0 : i32, i32
  }
  func.func @transform_4(%arg0: i32) -> (i32, i32) {
    %c0_i32 = arith.constant 0 : i32
    %c0_i32_0 = arith.constant 0 : i32
    %c0_i32_1 = arith.constant 0 : i32
    return %c0_i32, %c0_i32_0 : i32, i32
  }
  func.func @transform_5(%arg0: i32) -> (i32, i32) {
    %c0_i32 = arith.constant 0 : i32
    %c0_i32_0 = arith.constant 0 : i32
    %c0_i32_1 = arith.constant 0 : i32
    return %c0_i32, %c0_i32_0 : i32, i32
  }
  func.func @transform_6(%arg0: i32) -> (i32, i32) {
    %c0_i32 = arith.constant 0 : i32
    %c0_i32_0 = arith.constant 0 : i32
    %c0_i32_1 = arith.constant 0 : i32
    return %c0_i32, %c0_i32_0 : i32, i32
  }
  func.func @transform_7(%arg0: i32) -> (i32, i32) {
    %c0_i32 = arith.constant 0 : i32
    %c0_i32_0 = arith.constant 0 : i32
    %c0_i32_1 = arith.constant 0 : i32
    return %c0_i32, %c0_i32_0 : i32, i32
  }
  func.func @transform_8(%arg0: i32) -> (i32, i32) {
    %c0_i32 = arith.constant 0 : i32
    %c0_i32_0 = arith.constant 0 : i32
    %c0_i32_1 = arith.constant 0 : i32
    return %c0_i32, %c0_i32_0 : i32, i32
  }
  func.func @transform_9(%arg0: i32) -> (i32, i32) {
    %c0_i32 = arith.constant 0 : i32
    %c0_i32_0 = arith.constant 0 : i32
    return %arg0, %c0_i32 : i32, i32
  }
}

</mosaic_0001>

<llo_original>
// kernel: tpu_custom_call.1
$region0: #{tpu_custom_call.1}
  #allocation0 [shape = 'u32[]', space=smem, size = 0x4, offset = 0x4, fixed_abs, tag = 'smem constant byte address 0x4 - core index']
  #allocation1 [shape = 'u32[144,128]{1,0:T(1,128)}', space=vmem, size = 0x12000, scoped, tag = 'internal scratch']
  %s0 = inlined_call_operand.hbm [shape: f32[16,32], index: 0, kind: input, shape index: {}]
  %s1 = inlined_call_operand.hbm [shape: bf16[32,1024], index: 1, kind: input, shape index: {}]
  %s2 = inlined_call_operand.hbm [shape: f32[1,1024], index: 2, kind: input, shape index: {}]
  %s3 = inlined_call_operand.hbm [shape: bf16[1024,512], index: 3, kind: input, shape index: {}]
  %s4 = inlined_call_operand.vmem [shape: f32[1,512], index: 4, kind: input, shape index: {}]
  %s5 = inlined_call_operand.hbm [shape: bf16[512,256], index: 5, kind: input, shape index: {}]
  %s6 = inlined_call_operand.vmem [shape: f32[1,256], index: 6, kind: input, shape index: {}]
  %s7 = inlined_call_operand.hbm [shape: bf16[256,128], index: 7, kind: input, shape index: {}]
  %s8 = inlined_call_operand.vmem [shape: f32[1,128], index: 8, kind: input, shape index: {}]
  %s9 = inlined_call_operand.vmem [shape: f32[16,1], index: 9, kind: output, shape index: {}]
  %s10 = sld [smem:[#allocation0]]
  $region93: #{tpu_custom_call.1} parent=0
    _
  %s12 = ssub.s32 1, %s10
  %s13 = scalar_select 0, %s12, %s10
  $region1: #{tpu_custom_call.1} parent=0
    #allocation2 [shape = 'u8[8192]{0}', space=vmem, size = 0x2000, scoped, tag = 'input window, operand 0']
    #allocation3 [shape = 's32[2]{0}', space=sflag, size = 0x8, scoped, tag = 'scoped memory for tpu_custom_call.1']
    #allocation4 [shape = 'u8[65536]{0}', space=vmem, size = 0x10000, scoped, tag = 'input window, operand 1, single buffered']
    #allocation5 [shape = 's32[1]{0}', space=sflag, size = 0x4, scoped, tag = 'scoped memory for tpu_custom_call.1']
    #allocation6 [shape = 'u8[4096]{0}', space=vmem, size = 0x1000, scoped, tag = 'input window, operand 2, single buffered']
    #allocation7 [shape = 'u8[1048576]{0}', space=vmem, size = 0x100000, scoped, tag = 'input window, operand 3, single buffered']
    #allocation8 [shape = 's32[1]{0}', space=sflag, size = 0x4, scoped, tag = 'scoped memory for tpu_custom_call.1']
    #allocation9 [shape = 'u8[262144]{0}', space=vmem, size = 0x40000, scoped, tag = 'input window, operand 5, single buffered']
    #allocation10 [shape = 'u8[65536]{0}', space=vmem, size = 0x10000, scoped, tag = 'input window, operand 7, single buffered']
    #allocation11 [shape = 's32[1]{0}', space=sflag, size = 0x4, scoped, tag = 'scoped memory for tpu_custom_call.1']
    %14 = vsyncpa [#allocation3], 0
    %s15 = scalar_lea.sflag [#allocation3], 1
    %16 = vsyncpa %s15, 0
    %17 = vsyncpa [#allocation5], 0
    %18 = vsyncpa [#allocation8], 0
    %19 = vsyncpa [#allocation11], 0
    loop: start=0, step=1, limit=4
    $region2: #{tpu_custom_call.1} parent=1 // loop_pre_header
      _
    $region3: #{tpu_custom_call.1} parent=1 // loop_header
      %s21 = sphi 0, %s25
      %p22 = scmp.ge.s32.totalorder %s21, 4
      %s31 = sphi 0, %s33
      %s34 = sphi 0, %s31
      %s35 = sphi 0, %s34
      %s51 = sphi 0, %s35
      %s55 = sphi 0, %s55
      %s57 = sphi 0, %s55
      %s58 = sphi 0, %s57
      %s72 = sphi 0, %s58
      %s76 = sphi 0, %s76
      %s78 = sphi 0, %s76
      %s79 = sphi 0, %s78
      %s93 = sphi 0, %s79
      %s97 = sphi 0, %s97
      %s99 = sphi 0, %s97
      %s100 = sphi 0, %s99
      %s114 = sphi 0, %s100
      %s118 = sphi 0, %s118
      %s120 = sphi 0, %s118
      %s121 = sphi 0, %s120
      %s135 = sphi 0, %s121
      %s139 = sphi 0, %s139
      %s141 = sphi 0, %s139
      %s142 = sphi 0, %s141
      %s156 = sphi 0, %s142
      %s160 = sphi 0, %s160
      %s162 = sphi 0, %s160
      %s163 = sphi 0, %s162
      %s177 = sphi 0, %s163
      %s181 = sphi 0, %s181
      %s183 = sphi 0, %s181
      %s184 = sphi 0, %s183
      %s198 = sphi 0, %s184
      %s202 = sphi 0, %s202
      %s204 = sphi 0, %s202
      %s205 = sphi 0, %s204
      %s219 = sphi 0, %s205
      %s225 = sphi 0, %s227
      %s228 = sphi 0, %s225
      %s229 = sphi 0, %s228
      %s245 = sphi 0, %s229
    $region4: #{tpu_custom_call.1} parent=1 // loop_header_branch
      %24 = sbr.rel (%p22) target = $region8
    $region5: #{tpu_custom_call.1} parent=1 // loop_body
      %s26 = ssub.s32 %s21, 1
      %s27 = ssub.s32 %s21, 2
      %s28 = sadd.s32 %s21, 1
      %s29 = ssub.s32 %s21, %s28
      %p30 = scmp.eq.s32.totalorder %s29, 0
      %s32 = sadd.s32 %s31, 1
      %s33 = scalar_select %p30, %s31, %s32
      %p36 = pneg %p30
      %p37 = scmp.eq.s32.totalorder %s21, 1
      %p38 = por %p36, %p37
      %p39 = scmp.ne.s32.totalorder %s31, %s34
      %p40 = scmp.eq.s32.totalorder %s21, 0
      %p41 = por %p39, %p40
      %p42 = scmp.ne.s32.totalorder %s31, %s34
      %p43 = scmp.eq.s32.totalorder %s26, 1
      %p44 = por %p42, %p43
      %p45 = scmp.ne.s32.totalorder %s34, %s35
      %p46 = scmp.eq.s32.totalorder %s26, 0
      %p47 = por %p45, %p46
      %p48 = scmp.ne.s32.totalorder %s34, %s35
      %p49 = scmp.eq.s32.totalorder %s27, 1
      %p50 = por %p48, %p49
      %p52 = scmp.ne.s32.totalorder %s35, %s51
      %p53 = scmp.eq.s32.totalorder %s27, 0
      %p54 = por %p52, %p53
      %s56 = sadd.s32 %s55, 1
      %p59 = scmp.eq.s32.totalorder %s21, 1
      %p60 = scmp.ne.s32.totalorder %s55, %s57
      %p61 = scmp.eq.s32.totalorder %s21, 0
      %p62 = por %p60, %p61
      %p63 = scmp.ne.s32.totalorder %s55, %s57
      %p64 = scmp.eq.s32.totalorder %s26, 1
      %p65 = por %p63, %p64
      %p66 = scmp.ne.s32.totalorder %s57, %s58
      %p67 = scmp.eq.s32.totalorder %s26, 0
      %p68 = por %p66, %p67
      %p69 = scmp.ne.s32.totalorder %s57, %s58
      %p70 = scmp.eq.s32.totalorder %s27, 1
      %p71 = por %p69, %p70
      %p73 = scmp.ne.s32.totalorder %s58, %s72
      %p74 = scmp.eq.s32.totalorder %s27, 0
      %p75 = por %p73, %p74
      %s77 = sadd.s32 %s76, 1
      %p80 = scmp.eq.s32.totalorder %s21, 1
      %p81 = scmp.ne.s32.totalorder %s76, %s78
      %p82 = scmp.eq.s32.totalorder %s21, 0
      %p83 = por %p81, %p82
      %p84 = scmp.ne.s32.totalorder %s76, %s78
      %p85 = scmp.eq.s32.totalorder %s26, 1
      %p86 = por %p84, %p85
      %p87 = scmp.ne.s32.totalorder %s78, %s79
      %p88 = scmp.eq.s32.totalorder %s26, 0
      %p89 = por %p87, %p88
      %p90 = scmp.ne.s32.totalorder %s78, %s79
      %p91 = scmp.eq.s32.totalorder %s27, 1
      %p92 = por %p90, %p91
      %p94 = scmp.ne.s32.totalorder %s79, %s93
      %p95 = scmp.eq.s32.totalorder %s27, 0
      %p96 = por %p94, %p95
      %s98 = sadd.s32 %s97, 1
      %p101 = scmp.eq.s32.totalorder %s21, 1
      %p102 = scmp.ne.s32.totalorder %s97, %s99
      %p103 = scmp.eq.s32.totalorder %s21, 0
      %p104 = por %p102, %p103
      %p105 = scmp.ne.s32.totalorder %s97, %s99
      %p106 = scmp.eq.s32.totalorder %s26, 1
      %p107 = por %p105, %p106
      %p108 = scmp.ne.s32.totalorder %s99, %s100
      %p109 = scmp.eq.s32.totalorder %s26, 0
      %p110 = por %p108, %p109
      %p111 = scmp.ne.s32.totalorder %s99, %s100
      %p112 = scmp.eq.s32.totalorder %s27, 1
      %p113 = por %p111, %p112
      %p115 = scmp.ne.s32.totalorder %s100, %s114
      %p116 = scmp.eq.s32.totalorder %s27, 0
      %p117 = por %p115, %p116
      %s119 = sadd.s32 %s118, 1
      %p122 = scmp.eq.s32.totalorder %s21, 1
      %p123 = scmp.ne.s32.totalorder %s118, %s120
      %p124 = scmp.eq.s32.totalorder %s21, 0
      %p125 = por %p123, %p124
      %p126 = scmp.ne.s32.totalorder %s118, %s120
      %p127 = scmp.eq.s32.totalorder %s26, 1
      %p128 = por %p126, %p127
      %p129 = scmp.ne.s32.totalorder %s120, %s121
      %p130 = scmp.eq.s32.totalorder %s26, 0
      %p131 = por %p129, %p130
      %p132 = scmp.ne.s32.totalorder %s120, %s121
      %p133 = scmp.eq.s32.totalorder %s27, 1
      %p134 = por %p132, %p133
      %p136 = scmp.ne.s32.totalorder %s121, %s135
      %p137 = scmp.eq.s32.totalorder %s27, 0
      %p138 = por %p136, %p137
      %s140 = sadd.s32 %s139, 1
      %p143 = scmp.eq.s32.totalorder %s21, 1
      %p144 = scmp.ne.s32.totalorder %s139, %s141
      %p145 = scmp.eq.s32.totalorder %s21, 0
      %p146 = por %p144, %p145
      %p147 = scmp.ne.s32.totalorder %s139, %s141
      %p148 = scmp.eq.s32.totalorder %s26, 1
      %p149 = por %p147, %p148
      %p150 = scmp.ne.s32.totalorder %s141, %s142
      %p151 = scmp.eq.s32.totalorder %s26, 0
      %p152 = por %p150, %p151
      %p153 = scmp.ne.s32.totalorder %s141, %s142
      %p154 = scmp.eq.s32.totalorder %s27, 1
      %p155 = por %p153, %p154
      %p157 = scmp.ne.s32.totalorder %s142, %s156
      %p158 = scmp.eq.s32.totalorder %s27, 0
      %p159 = por %p157, %p158
      %s161 = sadd.s32 %s160, 1
      %p164 = scmp.eq.s32.totalorder %s21, 1
      %p165 = scmp.ne.s32.totalorder %s160, %s162
      %p166 = scmp.eq.s32.totalorder %s21, 0
      %p167 = por %p165, %p166
      %p168 = scmp.ne.s32.totalorder %s160, %s162
      %p169 = scmp.eq.s32.totalorder %s26, 1
      %p170 = por %p168, %p169
      %p171 = scmp.ne.s32.totalorder %s162, %s163
      %p172 = scmp.eq.s32.totalorder %s26, 0
      %p173 = por %p171, %p172
      %p174 = scmp.ne.s32.totalorder %s162, %s163
      %p175 = scmp.eq.s32.totalorder %s27, 1
      %p176 = por %p174, %p175
      %p178 = scmp.ne.s32.totalorder %s163, %s177
      %p179 = scmp.eq.s32.totalorder %s27, 0
      %p180 = por %p178, %p179
      %s182 = sadd.s32 %s181, 1
      %p185 = scmp.eq.s32.totalorder %s21, 1
      %p186 = scmp.ne.s32.totalorder %s181, %s183
      %p187 = scmp.eq.s32.totalorder %s21, 0
      %p188 = por %p186, %p187
      %p189 = scmp.ne.s32.totalorder %s181, %s183
      %p190 = scmp.eq.s32.totalorder %s26, 1
      %p191 = por %p189, %p190
      %p192 = scmp.ne.s32.totalorder %s183, %s184
      %p193 = scmp.eq.s32.totalorder %s26, 0
      %p194 = por %p192, %p193
      %p195 = scmp.ne.s32.totalorder %s183, %s184
      %p196 = scmp.eq.s32.totalorder %s27, 1
      %p197 = por %p195, %p196
      %p199 = scmp.ne.s32.totalorder %s184, %s198
      %p200 = scmp.eq.s32.totalorder %s27, 0
      %p201 = por %p199, %p200
      %s203 = sadd.s32 %s202, 1
      %p206 = scmp.eq.s32.totalorder %s21, 1
      %p207 = scmp.ne.s32.totalorder %s202, %s204
      %p208 = scmp.eq.s32.totalorder %s21, 0
      %p209 = por %p207, %p208
      %p210 = scmp.ne.s32.totalorder %s202, %s204
      %p211 = scmp.eq.s32.totalorder %s26, 1
      %p212 = por %p210, %p211
      %p213 = scmp.ne.s32.totalorder %s204, %s205
      %p214 = scmp.eq.s32.totalorder %s26, 0
      %p215 = por %p213, %p214
      %p216 = scmp.ne.s32.totalorder %s204, %s205
      %p217 = scmp.eq.s32.totalorder %s27, 1
      %p218 = por %p216, %p217
      %p220 = scmp.ne.s32.totalorder %s205, %s219
      %p221 = scmp.eq.s32.totalorder %s27, 0
      %p222 = por %p220, %p221
      %s223 = ssub.s32 %s21, %s28
      %p224 = scmp.eq.s32.totalorder %s223, 0
      %s226 = sadd.s32 %s225, 1
      %s227 = scalar_select %p224, %s225, %s226
      %p230 = pneg %p224
      %p231 = scmp.eq.s32.totalorder %s21, 1
      %p232 = por %p230, %p231
      %p233 = scmp.ne.s32.totalorder %s225, %s228
      %p234 = scmp.eq.s32.totalorder %s21, 0
      %p235 = por %p233, %p234
      %p236 = scmp.ne.s32.totalorder %s225, %s228
      %p237 = scmp.eq.s32.totalorder %s26, 1
      %p238 = por %p236, %p237
      %p239 = scmp.ne.s32.totalorder %s228, %s229
      %p240 = scmp.eq.s32.totalorder %s26, 0
      %p241 = por %p239, %p240
      %p242 = scmp.ne.s32.totalorder %s228, %s229
      %p243 = scmp.eq.s32.totalorder %s27, 1
      %p244 = por %p242, %p243
      %p246 = scmp.ne.s32.totalorder %s229, %s245
      %p247 = scmp.eq.s32.totalorder %s27, 0
      %p248 = por %p246, %p247
      %p249 = scmp.le.s32.totalorder 1, %s21
      %p250 = scmp.lt.s32.totalorder %s21, 3
      %p251 = pnand %p249, %p250
      %p252 = pneg %p251
      // Predicated region
      $region9: #{tpu_custom_call.1} parent=5 // pred_check
        _
      $region10: #{tpu_custom_call.1} parent=5 // pred_check_branch
        %254 = sbr.rel (%p251) target = $region12
      $region11: #{tpu_custom_call.1} parent=5 // pred_region
        %s255 = ssub.s32 %s21, 1
        // Predicated region
        $region13: #{tpu_custom_call.1} parent=11 // pred_check
          %p256 = pneg %p68
        $region14: #{tpu_custom_call.1} parent=11 // pred_check_branch
          %258 = sbr.rel (%p256) target = $region16
        $region15: #{tpu_custom_call.1} parent=11 // pred_region
          %s260 = ssub.s32 2048, 2048
          %261 = vsyncadd [#allocation5], %s260
          %s262 = sshll.u32 [#allocation4], 4
          %s263 = int_to_ptr.vmem [resolvable:$true] %s262
          %268 = dma.hbm_to_vmem [thread:$0]  %s1, 2048, %s263, [#allocation5], 512, 512, 32
        $region16: #{tpu_custom_call.1} parent=11 // pred_fallthru
          _
        // Predicated region
        $region17: #{tpu_custom_call.1} parent=11 // pred_check
          %p269 = pneg %p89
        $region18: #{tpu_custom_call.1} parent=11 // pred_check_branch
          %271 = sbr.rel (%p269) target = $region20
        $region19: #{tpu_custom_call.1} parent=11 // pred_region
          %s273 = ssub.s32 128, 128
          %274 = vsyncadd [#allocation5], %s273
          %s276 = sshll.u32 [#allocation6], 4
          %s277 = int_to_ptr.vmem [resolvable:$true] %s276
          %279 = dma.hbm_to_vmem [thread:$0]  %s2, 128, %s277, [#allocation5]
        $region20: #{tpu_custom_call.1} parent=11 // pred_fallthru
          _
        // Predicated region
        $region21: #{tpu_custom_call.1} parent=11 // pred_check
          %p280 = pneg %p110
        $region22: #{tpu_custom_call.1} parent=11 // pred_check_branch
          %282 = sbr.rel (%p280) target = $region24
        $region23: #{tpu_custom_call.1} parent=11 // pred_region
          %s284 = ssub.s32 32768, 32768
          %285 = vsyncadd [#allocation8], %s284
          %s286 = sshll.u32 [#allocation7], 4
          %s287 = int_to_ptr.vmem [resolvable:$true] %s286
          %292 = dma.hbm_to_vmem [thread:$0]  %s3, 32768, %s287, [#allocation8], 256, 256, 16
        $region24: #{tpu_custom_call.1} parent=11 // pred_fallthru
          _
        // Predicated region
        $region25: #{tpu_custom_call.1} parent=11 // pred_check
          %p293 = pneg %p131
        $region26: #{tpu_custom_call.1} parent=11 // pred_check_branch
          %295 = sbr.rel (%p293) target = $region28
        $region27: #{tpu_custom_call.1} parent=11 // pred_region
          _
        $region28: #{tpu_custom_call.1} parent=11 // pred_fallthru
          _
        // Predicated region
        $region29: #{tpu_custom_call.1} parent=11 // pred_check
          %p296 = pneg %p152
        $region30: #{tpu_custom_call.1} parent=11 // pred_check_branch
          %298 = sbr.rel (%p296) target = $region32
        $region31: #{tpu_custom_call.1} parent=11 // pred_region
          %s300 = ssub.s32 8192, 8192
          %301 = vsyncadd [#allocation8], %s300
          %s302 = sshll.u32 [#allocation9], 4
          %s303 = int_to_ptr.vmem [resolvable:$true] %s302
          %308 = dma.hbm_to_vmem [thread:$0]  %s5, 8192, %s303, [#allocation8], 128, 128, 8
        $region32: #{tpu_custom_call.1} parent=11 // pred_fallthru
          _
        // Predicated region
        $region33: #{tpu_custom_call.1} parent=11 // pred_check
          %p309 = pneg %p173
        $region34: #{tpu_custom_call.1} parent=11 // pred_check_branch
          %311 = sbr.rel (%p309) target = $region36
        $region35: #{tpu_custom_call.1} parent=11 // pred_region
          _
        $region36: #{tpu_custom_call.1} parent=11 // pred_fallthru
          _
        // Predicated region
        $region37: #{tpu_custom_call.1} parent=11 // pred_check
          %p312 = pneg %p194
        $region38: #{tpu_custom_call.1} parent=11 // pred_check_branch
          %314 = sbr.rel (%p312) target = $region40
        $region39: #{tpu_custom_call.1} parent=11 // pred_region
          %s316 = ssub.s32 2048, 2048
          %317 = vsyncadd [#allocation11], %s316
          %s318 = sshll.u32 [#allocation10], 4
          %s319 = int_to_ptr.vmem [resolvable:$true] %s318
          %324 = dma.hbm_to_vmem [thread:$0]  %s7, 2048, %s319, [#allocation11], 64, 64, 4
        $region40: #{tpu_custom_call.1} parent=11 // pred_fallthru
          _
        // Predicated region
        $region41: #{tpu_custom_call.1} parent=11 // pred_check
          %p325 = pneg %p215
        $region42: #{tpu_custom_call.1} parent=11 // pred_check_branch
          %327 = sbr.rel (%p325) target = $region44
        $region43: #{tpu_custom_call.1} parent=11 // pred_region
          _
        $region44: #{tpu_custom_call.1} parent=11 // pred_fallthru
          _
      $region12: #{tpu_custom_call.1} parent=5 // pred_fallthru
        _
      %p328 = scmp.lt.s32.totalorder %s21, 2
      // Predicated region
      $region45: #{tpu_custom_call.1} parent=5 // pred_check
        %p329 = pneg %p328
      $region46: #{tpu_custom_call.1} parent=5 // pred_check_branch
        %331 = sbr.rel (%p329) target = $region48
      $region47: #{tpu_custom_call.1} parent=5 // pred_region
        // Predicated region
        $region49: #{tpu_custom_call.1} parent=47 // pred_check
          %p332 = pneg %p41
        $region50: #{tpu_custom_call.1} parent=47 // pred_check_branch
          %334 = sbr.rel (%p332) target = $region52
        $region51: #{tpu_custom_call.1} parent=47 // pred_region
          %s335 = sand.u32 %s31, 1
          %s336 = scalar_lea.sflag [#allocation3], %s335
          %s337 = sand.u32 %s31, 1
          %s338 = smul.addr %s337, 8
          %s339 = scalar_lea.vmem [#allocation2], %s338
          %s341 = ssub.s32 128, 128
          %342 = vsyncadd %s336, %s341
          %s343 = smul.addr %s21, 128
          %s344 = scalar_lea.hbm %s0, %s343
          %s346 = sshll.u32 %s339, 4
          %s347 = int_to_ptr.vmem [resolvable:$true] %s346
          %349 = dma.hbm_to_vmem [thread:$0]  %s344, 128, %s347, %s336
        $region52: #{tpu_custom_call.1} parent=47 // pred_fallthru
          _
      $region48: #{tpu_custom_call.1} parent=5 // pred_fallthru
        _
      %p350 = scmp.le.s32.totalorder 1, %s21
      %p351 = scmp.lt.s32.totalorder %s21, 3
      %p352 = pnand %p350, %p351
      %p353 = pneg %p352
      // Predicated region
      $region53: #{tpu_custom_call.1} parent=5 // pred_check
        _
      $region54: #{tpu_custom_call.1} parent=5 // pred_check_branch
        %355 = sbr.rel (%p352) target = $region56
      $region55: #{tpu_custom_call.1} parent=5 // pred_region
        %s356 = ssub.s32 %s21, 1
        %s357 = sand.u32 %s34, 1
        %s358 = scalar_lea.sflag [#allocation3], %s357
        %s359 = sand.u32 %s34, 1
        %s360 = smul.addr %s359, 8
        %s361 = scalar_lea.vmem [#allocation2], %s360
        // Predicated region
        $region57: #{tpu_custom_call.1} parent=55 // pred_check
          %p362 = pneg %p47
        $region58: #{tpu_custom_call.1} parent=55 // pred_check_branch
          %364 = sbr.rel (%p362) target = $region60
        $region59: #{tpu_custom_call.1} parent=55 // pred_region
          %365 = dma.done %s358, 128
        $region60: #{tpu_custom_call.1} parent=55 // pred_fallthru
          _
        // Predicated region
        $region61: #{tpu_custom_call.1} parent=55 // pred_check
          %p366 = pneg %p68
        $region62: #{tpu_custom_call.1} parent=55 // pred_check_branch
          %368 = sbr.rel (%p366) target = $region64
        $region63: #{tpu_custom_call.1} parent=55 // pred_region
          %369 = dma.done [#allocation5], 2048
        $region64: #{tpu_custom_call.1} parent=55 // pred_fallthru
          _
        // Predicated region
        $region65: #{tpu_custom_call.1} parent=55 // pred_check
          %p370 = pneg %p89
        $region66: #{tpu_custom_call.1} parent=55 // pred_check_branch
          %372 = sbr.rel (%p370) target = $region68
        $region67: #{tpu_custom_call.1} parent=55 // pred_region
          %373 = dma.done [#allocation5], 128
        $region68: #{tpu_custom_call.1} parent=55 // pred_fallthru
          _
        // Predicated region
        $region69: #{tpu_custom_call.1} parent=55 // pred_check
          %p374 = pneg %p110
        $region70: #{tpu_custom_call.1} parent=55 // pred_check_branch
          %376 = sbr.rel (%p374) target = $region72
        $region71: #{tpu_custom_call.1} parent=55 // pred_region
          %377 = dma.done [#allocation8], 32768
        $region72: #{tpu_custom_call.1} parent=55 // pred_fallthru
          _
        // Predicated region
        $region73: #{tpu_custom_call.1} parent=55 // pred_check
          %p378 = pneg %p152
        $region74: #{tpu_custom_call.1} parent=55 // pred_check_branch
          %380 = sbr.rel (%p378) target = $region76
        $region75: #{tpu_custom_call.1} parent=55 // pred_region
          %381 = dma.done [#allocation8], 8192
        $region76: #{tpu_custom_call.1} parent=55 // pred_fallthru
          _
        // Predicated region
        $region77: #{tpu_custom_call.1} parent=55 // pred_check
          %p382 = pneg %p194
        $region78: #{tpu_custom_call.1} parent=55 // pred_check_branch
          %384 = sbr.rel (%p382) target = $region80
        $region79: #{tpu_custom_call.1} parent=55 // pred_region
          %385 = dma.done [#allocation11], 2048
        $region80: #{tpu_custom_call.1} parent=55 // pred_fallthru
          _
        %s386 = sand.u32 %s34, 1
        %s387 = scalar_lea.sflag [#allocation3], %s386
        %s388 = sand.u32 %s34, 1
        %s389 = smul.addr %s388, 8
        %s390 = scalar_lea.vmem [#allocation2], %s389
        %p391 = pneg %p47
        %p392 = pneg %p44
        %p393 = pneg %p68
        %p394 = pneg %p65
        %p395 = pneg %p89
        %p396 = pneg %p86
        %p397 = pneg %p110
        %p398 = pneg %p107
        %p399 = pneg %p131
        %p400 = pneg %p128
        %p401 = pneg %p152
        %p402 = pneg %p149
        %p403 = pneg %p173
        %p404 = pneg %p170
        %p405 = pneg %p194
        %p406 = pneg %p191
        %p407 = pneg %p215
        %p408 = pneg %p212
        %p409 = pneg %p241
        %p410 = pneg %p238
        %p411 = scmp.lt.s32.totalorder %s26, 1
        %s412 = scalar_select %p411, %s26, 1
        %s413 = smul.addr %s412, 8
        %s414 = scalar_lea.vmem %s9, %s413
        %p415 = scmp.lt.s32.totalorder %s26, 1
        %s416 = scalar_select %p415, %s26, 1
        %s417 = smul.addr %s416, 8
        %s418 = scalar_lea.vmem %s9, %s417
        %v420 = vld [vmem:[%s361] sm:$0xff]
        %v421 = vpack.c.bf16 %v420, %v420
        %v422 = vld [vmem:[#allocation4] sm:$0xff]
        %v423 = vld [vmem:[#allocation4 + $0x8] sm:$0xff]
        %v424 = vld [vmem:[#allocation4 + $0x10] sm:$0xff]
        %v425 = vld [vmem:[#allocation4 + $0x18] sm:$0xff]
        %v426 = vld [vmem:[#allocation4 + $0x20] sm:$0xff]
        %v427 = vld [vmem:[#allocation4 + $0x28] sm:$0xff]
        %v428 = vld [vmem:[#allocation4 + $0x30] sm:$0xff]
        %v429 = vld [vmem:[#allocation4 + $0x38] sm:$0xff]
        %v430 = vld [vmem:[#allocation4 + $0x40] sm:$0xff]
        %v431 = vld [vmem:[#allocation4 + $0x48] sm:$0xff]
        %v432 = vld [vmem:[#allocation4 + $0x50] sm:$0xff]
        %v433 = vld [vmem:[#allocation4 + $0x58] sm:$0xff]
        %v434 = vld [vmem:[#allocation4 + $0x60] sm:$0xff]
        %v435 = vld [vmem:[#allocation4 + $0x68] sm:$0xff]
        %v436 = vld [vmem:[#allocation4 + $0x70] sm:$0xff]
        %v437 = vld [vmem:[#allocation4 + $0x78] sm:$0xff]
        %v438 = vld [vmem:[#allocation6] sm:$0xff]
        %v440 = vlaneseq
        %v441 = vshrl.u32 %v440, 7
        %v442 = vsub.s32 0, %v441
        %v443 = vrot.slane %v438, %v442
        %v444 = vlaneseq
        %v445 = vshrl.u32 %v444, 7
        %v446 = vsub.s32 1, %v445
        %v447 = vrot.slane %v438, %v446
        %v448 = vlaneseq
        %v449 = vshrl.u32 %v448, 7
        %v450 = vsub.s32 2, %v449
        %v451 = vrot.slane %v438, %v450
        %v452 = vlaneseq
        %v453 = vshrl.u32 %v452, 7
        %v454 = vsub.s32 3, %v453
        %v455 = vrot.slane %v438, %v454
        %v456 = vlaneseq
        %v457 = vshrl.u32 %v456, 7
        %v458 = vsub.s32 4, %v457
        %v459 = vrot.slane %v438, %v458
        %v460 = vlaneseq
        %v461 = vshrl.u32 %v460, 7
        %v462 = vsub.s32 5, %v461
        %v463 = vrot.slane %v438, %v462
        %v464 = vlaneseq
        %v465 = vshrl.u32 %v464, 7
        %v466 = vsub.s32 6, %v465
        %v467 = vrot.slane %v438, %v466
        %v468 = vlaneseq
        %v469 = vshrl.u32 %v468, 7
        %v470 = vsub.s32 7, %v469
        %v471 = vrot.slane %v438, %v470
        %v496 = vunpack.c.l.b16 %v422
        %v497 = vunpack.c.h.b16 %v422
        %v498 = vunpack.c.l.b16 %v423
        %v499 = vunpack.c.h.b16 %v423
        %v500 = vunpack.c.l.b16 %v424
        %v501 = vunpack.c.h.b16 %v424
        %v502 = vunpack.c.l.b16 %v425
        %v503 = vunpack.c.h.b16 %v425
        %v504 = vunpack.c.l.b16 %v426
        %v505 = vunpack.c.h.b16 %v426
        %v506 = vunpack.c.l.b16 %v427
        %v507 = vunpack.c.h.b16 %v427
        %v508 = vunpack.c.l.b16 %v428
        %v509 = vunpack.c.h.b16 %v428
        %v510 = vunpack.c.l.b16 %v429
        %v511 = vunpack.c.h.b16 %v429
        %v512 = vunpack.c.l.b16 %v430
        %v513 = vunpack.c.h.b16 %v430
        %v514 = vunpack.c.l.b16 %v431
        %v515 = vunpack.c.h.b16 %v431
        %v516 = vunpack.c.l.b16 %v432
        %v517 = vunpack.c.h.b16 %v432
        %v518 = vunpack.c.l.b16 %v433
        %v519 = vunpack.c.h.b16 %v433
        %v520 = vunpack.c.l.b16 %v434
        %v521 = vunpack.c.h.b16 %v434
        %v522 = vunpack.c.l.b16 %v435
        %v523 = vunpack.c.h.b16 %v435
        %v524 = vunpack.c.l.b16 %v436
        %v525 = vunpack.c.h.b16 %v436
        %v526 = vunpack.c.l.b16 %v437
        %v527 = vunpack.c.h.b16 %v437
        %v528 = vpack.c.b16 %v504, %v496
        %v529 = vpack.c.b16 %v505, %v497
        %v530 = vpack.c.b16 %v506, %v498
        %v531 = vpack.c.b16 %v507, %v499
        %v532 = vpack.c.b16 %v508, %v500
        %v533 = vpack.c.b16 %v509, %v501
        %v534 = vpack.c.b16 %v510, %v502
        %v535 = vpack.c.b16 %v511, %v503
        %v536 = vpack.c.b16 %v520, %v512
        %v537 = vpack.c.b16 %v521, %v513
        %v538 = vpack.c.b16 %v522, %v514
        %v539 = vpack.c.b16 %v523, %v515
        %v540 = vpack.c.b16 %v524, %v516
        %v541 = vpack.c.b16 %v525, %v517
        %v542 = vpack.c.b16 %v526, %v518
        %v543 = vpack.c.b16 %v527, %v519
        %vm560 = vcmask 261120
        %v562 = vsel %vm560, %v421, 0
        %564 = vmatprep.subr.bf16.mxu0 %v529
        %565 = vmatpush1.bf16.msra.mxu0 %v528
        %566 = vmatprep.subr.bf16.mxu0 %v537
        %567 = vmatpush1.bf16.msra.mxu0 %v536
        %568 = vmatprep.subr.bf16.mxu0 0
        %569 = vmatpush1.bf16.msra.mxu0 0
        %570 = vmatprep.subr.bf16.mxu0 0
        %571 = vmatpush1.bf16.msra.mxu0 0
        %572 = vmatprep.subr.bf16.mxu0 0
        %573 = vmatpush1.bf16.msra.mxu0 0
        %574 = vmatprep.subr.bf16.mxu0 0
        %575 = vmatpush1.bf16.msra.mxu0 0
        %576 = vmatprep.subr.bf16.mxu0 0
        %577 = vmatpush1.bf16.msra.mxu0 0
        %578 = vmatprep.subr.bf16.mxu0 0
        %579 = vmatpush1.bf16.msra.mxu0 0
        %580 = vmatprep.subr.bf16.mxu0 0
        %581 = vmatpush1.bf16.msra.mxu0 0
        %582 = vmatprep.subr.bf16.mxu0 0
        %583 = vmatpush1.bf16.msra.mxu0 0
        %584 = vmatprep.subr.bf16.mxu0 0
        %585 = vmatpush1.bf16.msra.mxu0 0
        %586 = vmatprep.subr.bf16.mxu0 0
        %587 = vmatpush1.bf16.msra.mxu0 0
        %588 = vmatprep.subr.bf16.mxu0 0
        %589 = vmatpush1.bf16.msra.mxu0 0
        %590 = vmatprep.subr.bf16.mxu0 0
        %591 = vmatpush1.bf16.msra.mxu0 0
        %592 = vmatprep.subr.bf16.mxu0 0
        %593 = vmatpush1.bf16.msra.mxu0 0
        %594 = vmatprep.subr.bf16.mxu0 0
        %595 = vmatpush1.bf16.msra.mxu0 0
        %596 = vmatprep.mubr.bf16.mxu0 0
        %597 = vmatmul.mubr.bf16.gmra.mrb[0].mxu0 %v562
        %v598 = vpop.f32.mrb[0].mxu0
        %v599 = vadd.f32 %v443, %v598
        %v600 = vpop.f32.mrb[0].mxu0
        %v601 = vadd.f32 %v447, %v600
        %v602 = vpop.f32.mrb[0].mxu0
        %v603 = vpop.f32.mrb[0].mxu0
        %604 = vdwg.mxu0
        %605 = vmatprep.subr.bf16.mxu0 %v531
        %606 = vmatpush1.bf16.msra.mxu0 %v530
        %607 = vmatprep.subr.bf16.mxu0 %v539
        %608 = vmatpush1.bf16.msra.mxu0 %v538
        %609 = vmatprep.subr.bf16.mxu0 0
        %610 = vmatpush1.bf16.msra.mxu0 0
        %611 = vmatprep.subr.bf16.mxu0 0
        %612 = vmatpush1.bf16.msra.mxu0 0
        %613 = vmatprep.subr.bf16.mxu0 0
        %614 = vmatpush1.bf16.msra.mxu0 0
        %615 = vmatprep.subr.bf16.mxu0 0
        %616 = vmatpush1.bf16.msra.mxu0 0
        %617 = vmatprep.subr.bf16.mxu0 0
        %618 = vmatpush1.bf16.msra.mxu0 0
        %619 = vmatprep.subr.bf16.mxu0 0
        %620 = vmatpush1.bf16.msra.mxu0 0
        %621 = vmatprep.subr.bf16.mxu0 0
        %622 = vmatpush1.bf16.msra.mxu0 0
        %623 = vmatprep.subr.bf16.mxu0 0
        %624 = vmatpush1.bf16.msra.mxu0 0
        %625 = vmatprep.subr.bf16.mxu0 0
        %626 = vmatpush1.bf16.msra.mxu0 0
        %627 = vmatprep.subr.bf16.mxu0 0
        %628 = vmatpush1.bf16.msra.mxu0 0
        %629 = vmatprep.subr.bf16.mxu0 0
        %630 = vmatpush1.bf16.msra.mxu0 0
        %631 = vmatprep.subr.bf16.mxu0 0
        %632 = vmatpush1.bf16.msra.mxu0 0
        %633 = vmatprep.subr.bf16.mxu0 0
        %634 = vmatpush1.bf16.msra.mxu0 0
        %635 = vmatprep.subr.bf16.mxu0 0
        %636 = vmatpush1.bf16.msra.mxu0 0
        %637 = vmatprep.mubr.bf16.mxu0 0
        %638 = vmatmul.mubr.bf16.gmra.mrb[0].mxu0 %v562
        %v639 = vpop.f32.mrb[0].mxu0
        %v640 = vadd.f32 %v451, %v639
        %v641 = vpop.f32.mrb[0].mxu0
        %v642 = vadd.f32 %v455, %v641
        %v643 = vpop.f32.mrb[0].mxu0
        %v644 = vpop.f32.mrb[0].mxu0
        %645 = vdwg.mxu0
        %646 = vmatprep.subr.bf16.mxu0 %v533
        %647 = vmatpush1.bf16.msra.mxu0 %v532
        %648 = vmatprep.subr.bf16.mxu0 %v541
        %649 = vmatpush1.bf16.msra.mxu0 %v540
        %650 = vmatprep.subr.bf16.mxu0 0
        %651 = vmatpush1.bf16.msra.mxu0 0
        %652 = vmatprep.subr.bf16.mxu0 0
        %653 = vmatpush1.bf16.msra.mxu0 0
        %654 = vmatprep.subr.bf16.mxu0 0
        %655 = vmatpush1.bf16.msra.mxu0 0
        %656 = vmatprep.subr.bf16.mxu0 0
        %657 = vmatpush1.bf16.msra.mxu0 0
        %658 = vmatprep.subr.bf16.mxu0 0
        %659 = vmatpush1.bf16.msra.mxu0 0
        %660 = vmatprep.subr.bf16.mxu0 0
        %661 = vmatpush1.bf16.msra.mxu0 0
        %662 = vmatprep.subr.bf16.mxu0 0
        %663 = vmatpush1.bf16.msra.mxu0 0
        %664 = vmatprep.subr.bf16.mxu0 0
        %665 = vmatpush1.bf16.msra.mxu0 0
        %666 = vmatprep.subr.bf16.mxu0 0
        %667 = vmatpush1.bf16.msra.mxu0 0
        %668 = vmatprep.subr.bf16.mxu0 0
        %669 = vmatpush1.bf16.msra.mxu0 0
        %670 = vmatprep.subr.bf16.mxu0 0
        %671 = vmatpush1.bf16.msra.mxu0 0
        %672 = vmatprep.subr.bf16.mxu0 0
        %673 = vmatpush1.bf16.msra.mxu0 0
        %674 = vmatprep.subr.bf16.mxu0 0
        %675 = vmatpush1.bf16.msra.mxu0 0
        %676 = vmatprep.subr.bf16.mxu0 0
        %677 = vmatpush1.bf16.msra.mxu0 0
        %678 = vmatprep.mubr.bf16.mxu0 0
        %679 = vmatmul.mubr.bf16.gmra.mrb[0].mxu0 %v562
        %v680 = vpop.f32.mrb[0].mxu0
        %v681 = vadd.f32 %v459, %v680
        %v682 = vpop.f32.mrb[0].mxu0
        %v683 = vadd.f32 %v463, %v682
        %v684 = vpop.f32.mrb[0].mxu0
        %v685 = vpop.f32.mrb[0].mxu0
        %686 = vdwg.mxu0
        %687 = vmatprep.subr.bf16.mxu0 %v535
        %688 = vmatpush1.bf16.msra.mxu0 %v534
        %689 = vmatprep.subr.bf16.mxu0 %v543
        %690 = vmatpush1.bf16.msra.mxu0 %v542
        %691 = vmatprep.subr.bf16.mxu0 0
        %692 = vmatpush1.bf16.msra.mxu0 0
        %693 = vmatprep.subr.bf16.mxu0 0
        %694 = vmatpush1.bf16.msra.mxu0 0
        %695 = vmatprep.subr.bf16.mxu0 0
        %696 = vmatpush1.bf16.msra.mxu0 0
        %697 = vmatprep.subr.bf16.mxu0 0
        %698 = vmatpush1.bf16.msra.mxu0 0
        %699 = vmatprep.subr.bf16.mxu0 0
        %700 = vmatpush1.bf16.msra.mxu0 0
        %701 = vmatprep.subr.bf16.mxu0 0
        %702 = vmatpush1.bf16.msra.mxu0 0
        %703 = vmatprep.subr.bf16.mxu0 0
        %704 = vmatpush1.bf16.msra.mxu0 0
        %705 = vmatprep.subr.bf16.mxu0 0
        %706 = vmatpush1.bf16.msra.mxu0 0
        %707 = vmatprep.subr.bf16.mxu0 0
        %708 = vmatpush1.bf16.msra.mxu0 0
        %709 = vmatprep.subr.bf16.mxu0 0
        %710 = vmatpush1.bf16.msra.mxu0 0
        %711 = vmatprep.subr.bf16.mxu0 0
        %712 = vmatpush1.bf16.msra.mxu0 0
        %713 = vmatprep.subr.bf16.mxu0 0
        %714 = vmatpush1.bf16.msra.mxu0 0
        %715 = vmatprep.subr.bf16.mxu0 0
        %716 = vmatpush1.bf16.msra.mxu0 0
        %717 = vmatprep.subr.bf16.mxu0 0
        %718 = vmatpush1.bf16.msra.mxu0 0
        %719 = vmatprep.mubr.bf16.mxu0 0
        %720 = vmatmul.mubr.bf16.gmra.mrb[0].mxu0 %v562
        %v721 = vpop.f32.mrb[0].mxu0
        %v722 = vadd.f32 %v467, %v721
        %v723 = vpop.f32.mrb[0].mxu0
        %v724 = vadd.f32 %v471, %v723
        %v725 = vpop.f32.mrb[0].mxu0
        %v726 = vpop.f32.mrb[0].mxu0
        %727 = vdwg.mxu0
        %v728 = vmul.f32 %v599, 0.2
        %v729 = vmul.f32 %v601, 0.2
        %v730 = vmul.f32 %v640, 0.2
        %v731 = vmul.f32 %v642, 0.2
        %v732 = vmul.f32 %v681, 0.2
        %v733 = vmul.f32 %v683, 0.2
        %v734 = vmul.f32 %v722, 0.2
        %v735 = vmul.f32 %v724, 0.2
        %v736 = vmax.f32 %v599, %v728
        %v737 = vmax.f32 %v601, %v729
        %v738 = vmax.f32 %v640, %v730
        %v739 = vmax.f32 %v642, %v731
        %v740 = vmax.f32 %v681, %v732
        %v741 = vmax.f32 %v683, %v733
        %v742 = vmax.f32 %v722, %v734
        %v743 = vmax.f32 %v724, %v735
        %v744 = vpack.c.bf16 %v736, %v736
        %v745 = vpack.c.bf16 %v737, %v737
        %v746 = vpack.c.bf16 %v738, %v738
        %v747 = vpack.c.bf16 %v739, %v739
        %v748 = vpack.c.bf16 %v740, %v740
        %v749 = vpack.c.bf16 %v741, %v741
        %v750 = vpack.c.bf16 %v742, %v742
        %v751 = vpack.c.bf16 %v743, %v743
        %v752 = vld [vmem:[#allocation7] sm:$0xff]
        %v753 = vld [vmem:[#allocation7 + $0x8] sm:$0xff]
        %v754 = vld [vmem:[#allocation7 + $0x10] sm:$0xff]
        %v755 = vld [vmem:[#allocation7 + $0x18] sm:$0xff]
        %v756 = vld [vmem:[#allocation7 + $0x20] sm:$0xff]
        %v757 = vld [vmem:[#allocation7 + $0x28] sm:$0xff]
        %v758 = vld [vmem:[#allocation7 + $0x30] sm:$0xff]
        %v759 = vld [vmem:[#allocation7 + $0x38] sm:$0xff]
        %v760 = vld [vmem:[#allocation7 + $0x40] sm:$0xff]
        %v761 = vld [vmem:[#allocation7 + $0x48] sm:$0xff]
        %v762 = vld [vmem:[#allocation7 + $0x50] sm:$0xff]
        %v763 = vld [vmem:[#allocation7 + $0x58] sm:$0xff]
        %v764 = vld [vmem:[#allocation7 + $0x60] sm:$0xff]
        %v765 = vld [vmem:[#allocation7 + $0x68] sm:$0xff]
        %v766 = vld [vmem:[#allocation7 + $0x70] sm:$0xff]
        %v767 = vld [vmem:[#allocation7 + $0x78] sm:$0xff]
        %v768 = vld [vmem:[#allocation7 + $0x80] sm:$0xff]
        %v769 = vld [vmem:[#allocation7 + $0x88] sm:$0xff]
        %v770 = vld [vmem:[#allocation7 + $0x90] sm:$0xff]
        %v771 = vld [vmem:[#allocation7 + $0x98] sm:$0xff]
        %v772 = vld [vmem:[#allocation7 + $0xa0] sm:$0xff]
        %v773 = vld [vmem:[#allocation7 + $0xa8] sm:$0xff]
        %v774 = vld [vmem:[#allocation7 + $0xb0] sm:$0xff]
        %v775 = vld [vmem:[#allocation7 + $0xb8] sm:$0xff]
        %v776 = vld [vmem:[#allocation7 + $0xc0] sm:$0xff]
        %v777 = vld [vmem:[#allocation7 + $0xc8] sm:$0xff]
        %v778 = vld [vmem:[#allocation7 + $0xd0] sm:$0xff]
        %v779 = vld [vmem:[#allocation7 + $0xd8] sm:$0xff]
        %v780 = vld [vmem:[#allocation7 + $0xe0] sm:$0xff]
        %v781 = vld [vmem:[#allocation7 + $0xe8] sm:$0xff]
        %v782 = vld [vmem:[#allocation7 + $0xf0] sm:$0xff]
        %v783 = vld [vmem:[#allocation7 + $0xf8] sm:$0xff]
        %v784 = vld [vmem:[#allocation7 + $0x100] sm:$0xff]
        %v785 = vld [vmem:[#allocation7 + $0x108] sm:$0xff]
        %v786 = vld [vmem:[#allocation7 + $0x110] sm:$0xff]
        %v787 = vld [vmem:[#allocation7 + $0x118] sm:$0xff]
        %v788 = vld [vmem:[#allocation7 + $0x120] sm:$0xff]
        %v789 = vld [vmem:[#allocation7 + $0x128] sm:$0xff]
        %v790 = vld [vmem:[#allocation7 + $0x130] sm:$0xff]
        %v791 = vld [vmem:[#allocation7 + $0x138] sm:$0xff]
        %v792 = vld [vmem:[#allocation7 + $0x140] sm:$0xff]
        %v793 = vld [vmem:[#allocation7 + $0x148] sm:$0xff]
        %v794 = vld [vmem:[#allocation7 + $0x150] sm:$0xff]
        %v795 = vld [vmem:[#allocation7 + $0x158] sm:$0xff]
        %v796 = vld [vmem:[#allocation7 + $0x160] sm:$0xff]
        %v797 = vld [vmem:[#allocation7 + $0x168] sm:$0xff]
        %v798 = vld [vmem:[#allocation7 + $0x170] sm:$0xff]
        %v799 = vld [vmem:[#allocation7 + $0x178] sm:$0xff]
        %v800 = vld [vmem:[#allocation7 + $0x180] sm:$0xff]
        %v801 = vld [vmem:[#allocation7 + $0x188] sm:$0xff]
        %v802 = vld [vmem:[#allocation7 + $0x190] sm:$0xff]
        %v803 = vld [vmem:[#allocation7 + $0x198] sm:$0xff]
        %v804 = vld [vmem:[#allocation7 + $0x1a0] sm:$0xff]
        %v805 = vld [vmem:[#allocation7 + $0x1a8] sm:$0xff]
        %v806 = vld [vmem:[#allocation7 + $0x1b0] sm:$0xff]
        %v807 = vld [vmem:[#allocation7 + $0x1b8] sm:$0xff]
        %v808 = vld [vmem:[#allocation7 + $0x1c0] sm:$0xff]
        %v809 = vld [vmem:[#allocation7 + $0x1c8] sm:$0xff]
        %v810 = vld [vmem:[#allocation7 + $0x1d0] sm:$0xff]
        %v811 = vld [vmem:[#allocation7 + $0x1d8] sm:$0xff]
        %v812 = vld [vmem:[#allocation7 + $0x1e0] sm:$0xff]
        %v813 = vld [vmem:[#allocation7 + $0x1e8] sm:$0xff]
        %v814 = vld [vmem:[#allocation7 + $0x1f0] sm:$0xff]
        %v815 = vld [vmem:[#allocation7 + $0x1f8] sm:$0xff]
        %v816 = vld [vmem:[#allocation7 + $0x200] sm:$0xff]
        %v817 = vld [vmem:[#allocation7 + $0x208] sm:$0xff]
        %v818 = vld [vmem:[#allocation7 + $0x210] sm:$0xff]
        %v819 = vld [vmem:[#allocation7 + $0x218] sm:$0xff]
        %v820 = vld [vmem:[#allocation7 + $0x220] sm:$0xff]
        %v821 = vld [vmem:[#allocation7 + $0x228] sm:$0xff]
        %v822 = vld [vmem:[#allocation7 + $0x230] sm:$0xff]
        %v823 = vld [vmem:[#allocation7 + $0x238] sm:$0xff]
        %v824 = vld [vmem:[#allocation7 + $0x240] sm:$0xff]
        %v825 = vld [vmem:[#allocation7 + $0x248] sm:$0xff]
        %v826 = vld [vmem:[#allocation7 + $0x250] sm:$0xff]
        %v827 = vld [vmem:[#allocation7 + $0x258] sm:$0xff]
        %v828 = vld [vmem:[#allocation7 + $0x260] sm:$0xff]
        %v829 = vld [vmem:[#allocation7 + $0x268] sm:$0xff]
        %v830 = vld [vmem:[#allocation7 + $0x270] sm:$0xff]
        %v831 = vld [vmem:[#allocation7 + $0x278] sm:$0xff]
        %v832 = vld [vmem:[#allocation7 + $0x280] sm:$0xff]
        %v833 = vld [vmem:[#allocation7 + $0x288] sm:$0xff]
        %v834 = vld [vmem:[#allocation7 + $0x290] sm:$0xff]
        %v835 = vld [vmem:[#allocation7 + $0x298] sm:$0xff]
        %v836 = vld [vmem:[#allocation7 + $0x2a0] sm:$0xff]
        %v837 = vld [vmem:[#allocation7 + $0x2a8] sm:$0xff]
        %v838 = vld [vmem:[#allocation7 + $0x2b0] sm:$0xff]
        %v839 = vld [vmem:[#allocation7 + $0x2b8] sm:$0xff]
        %v840 = vld [vmem:[#allocation7 + $0x2c0] sm:$0xff]
        %v841 = vld [vmem:[#allocation7 + $0x2c8] sm:$0xff]
        %v842 = vld [vmem:[#allocation7 + $0x2d0] sm:$0xff]
        %v843 = vld [vmem:[#allocation7 + $0x2d8] sm:$0xff]
        %v844 = vld [vmem:[#allocation7 + $0x2e0] sm:$0xff]
        %v845 = vld [vmem:[#allocation7 + $0x2e8] sm:$0xff]
        %v846 = vld [vmem:[#allocation7 + $0x2f0] sm:$0xff]
        %v847 = vld [vmem:[#allocation7 + $0x2f8] sm:$0xff]
        %v848 = vld [vmem:[#allocation7 + $0x300] sm:$0xff]
        %v849 = vld [vmem:[#allocation7 + $0x308] sm:$0xff]
        %v850 = vld [vmem:[#allocation7 + $0x310] sm:$0xff]
        %v851 = vld [vmem:[#allocation7 + $0x318] sm:$0xff]
        %v852 = vld [vmem:[#allocation7 + $0x320] sm:$0xff]
        %v853 = vld [vmem:[#allocation7 + $0x328] sm:$0xff]
        %v854 = vld [vmem:[#allocation7 + $0x330] sm:$0xff]
        %v855 = vld [vmem:[#allocation7 + $0x338] sm:$0xff]
        %v856 = vld [vmem:[#allocation7 + $0x340] sm:$0xff]
        %v857 = vld [vmem:[#allocation7 + $0x348] sm:$0xff]
        %v858 = vld [vmem:[#allocation7 + $0x350] sm:$0xff]
        %v859 = vld [vmem:[#allocation7 + $0x358] sm:$0xff]
        %v860 = vld [vmem:[#allocation7 + $0x360] sm:$0xff]
        %v861 = vld [vmem:[#allocation7 + $0x368] sm:$0xff]
        %v862 = vld [vmem:[#allocation7 + $0x370] sm:$0xff]
        %v863 = vld [vmem:[#allocation7 + $0x378] sm:$0xff]
        %v864 = vld [vmem:[#allocation7 + $0x380] sm:$0xff]
        %v865 = vld [vmem:[#allocation7 + $0x388] sm:$0xff]
        %v866 = vld [vmem:[#allocation7 + $0x390] sm:$0xff]
        %v867 = vld [vmem:[#allocation7 + $0x398] sm:$0xff]
        %v868 = vld [vmem:[#allocation7 + $0x3a0] sm:$0xff]
        %v869 = vld [vmem:[#allocation7 + $0x3a8] sm:$0xff]
        %v870 = vld [vmem:[#allocation7 + $0x3b0] sm:$0xff]
        %v871 = vld [vmem:[#allocation7 + $0x3b8] sm:$0xff]
        %v872 = vld [vmem:[#allocation7 + $0x3c0] sm:$0xff]
        %v873 = vld [vmem:[#allocation7 + $0x3c8] sm:$0xff]
        %v874 = vld [vmem:[#allocation7 + $0x3d0] sm:$0xff]
        %v875 = vld [vmem:[#allocation7 + $0x3d8] sm:$0xff]
        %v876 = vld [vmem:[#allocation7 + $0x3e0] sm:$0xff]
        %v877 = vld [vmem:[#allocation7 + $0x3e8] sm:$0xff]
        %v878 = vld [vmem:[#allocation7 + $0x3f0] sm:$0xff]
        %v879 = vld [vmem:[#allocation7 + $0x3f8] sm:$0xff]
        %v880 = vld [vmem:[#allocation7 + $0x400] sm:$0xff]
        %v881 = vld [vmem:[#allocation7 + $0x408] sm:$0xff]
        %v882 = vld [vmem:[#allocation7 + $0x410] sm:$0xff]
        %v883 = vld [vmem:[#allocation7 + $0x418] sm:$0xff]
        %v884 = vld [vmem:[#allocation7 + $0x420] sm:$0xff]
        %v885 = vld [vmem:[#allocation7 + $0x428] sm:$0xff]
        %v886 = vld [vmem:[#allocation7 + $0x430] sm:$0xff]
        %v887 = vld [vmem:[#allocation7 + $0x438] sm:$0xff]
        %v888 = vld [vmem:[#allocation7 + $0x440] sm:$0xff]
        %v889 = vld [vmem:[#allocation7 + $0x448] sm:$0xff]
        %v890 = vld [vmem:[#allocation7 + $0x450] sm:$0xff]
        %v891 = vld [vmem:[#allocation7 + $0x458] sm:$0xff]
        %v892 = vld [vmem:[#allocation7 + $0x460] sm:$0xff]
        %v893 = vld [vmem:[#allocation7 + $0x468] sm:$0xff]
        %v894 = vld [vmem:[#allocation7 + $0x470] sm:$0xff]
        %v895 = vld [vmem:[#allocation7 + $0x478] sm:$0xff]
        %v896 = vld [vmem:[#allocation7 + $0x480] sm:$0xff]
        %v897 = vld [vmem:[#allocation7 + $0x488] sm:$0xff]
        %v898 = vld [vmem:[#allocation7 + $0x490] sm:$0xff]
        %v899 = vld [vmem:[#allocation7 + $0x498] sm:$0xff]
        %v900 = vld [vmem:[#allocation7 + $0x4a0] sm:$0xff]
        %v901 = vld [vmem:[#allocation7 + $0x4a8] sm:$0xff]
        %v902 = vld [vmem:[#allocation7 + $0x4b0] sm:$0xff]
        %v903 = vld [vmem:[#allocation7 + $0x4b8] sm:$0xff]
        %v904 = vld [vmem:[#allocation7 + $0x4c0] sm:$0xff]
        %v905 = vld [vmem:[#allocation7 + $0x4c8] sm:$0xff]
        %v906 = vld [vmem:[#allocation7 + $0x4d0] sm:$0xff]
        %v907 = vld [vmem:[#allocation7 + $0x4d8] sm:$0xff]
        %v908 = vld [vmem:[#allocation7 + $0x4e0] sm:$0xff]
        %v909 = vld [vmem:[#allocation7 + $0x4e8] sm:$0xff]
        %v910 = vld [vmem:[#allocation7 + $0x4f0] sm:$0xff]
        %v911 = vld [vmem:[#allocation7 + $0x4f8] sm:$0xff]
        %v912 = vld [vmem:[#allocation7 + $0x500] sm:$0xff]
        %v913 = vld [vmem:[#allocation7 + $0x508] sm:$0xff]
        %v914 = vld [vmem:[#allocation7 + $0x510] sm:$0xff]
        %v915 = vld [vmem:[#allocation7 + $0x518] sm:$0xff]
        %v916 = vld [vmem:[#allocation7 + $0x520] sm:$0xff]
        %v917 = vld [vmem:[#allocation7 + $0x528] sm:$0xff]
        %v918 = vld [vmem:[#allocation7 + $0x530] sm:$0xff]
        %v919 = vld [vmem:[#allocation7 + $0x538] sm:$0xff]
        %v920 = vld [vmem:[#allocation7 + $0x540] sm:$0xff]
        %v921 = vld [vmem:[#allocation7 + $0x548] sm:$0xff]
        %v922 = vld [vmem:[#allocation7 + $0x550] sm:$0xff]
        %v923 = vld [vmem:[#allocation7 + $0x558] sm:$0xff]
        %v924 = vld [vmem:[#allocation7 + $0x560] sm:$0xff]
        %v925 = vld [vmem:[#allocation7 + $0x568] sm:$0xff]
        %v926 = vld [vmem:[#allocation7 + $0x570] sm:$0xff]
        %v927 = vld [vmem:[#allocation7 + $0x578] sm:$0xff]
        %v928 = vld [vmem:[#allocation7 + $0x580] sm:$0xff]
        %v929 = vld [vmem:[#allocation7 + $0x588] sm:$0xff]
        %v930 = vld [vmem:[#allocation7 + $0x590] sm:$0xff]
        %v931 = vld [vmem:[#allocation7 + $0x598] sm:$0xff]
        %v932 = vld [vmem:[#allocation7 + $0x5a0] sm:$0xff]
        %v933 = vld [vmem:[#allocation7 + $0x5a8] sm:$0xff]
        %v934 = vld [vmem:[#allocation7 + $0x5b0] sm:$0xff]
        %v935 = vld [vmem:[#allocation7 + $0x5b8] sm:$0xff]
        %v936 = vld [vmem:[#allocation7 + $0x5c0] sm:$0xff]
        %v937 = vld [vmem:[#allocation7 + $0x5c8] sm:$0xff]
        %v938 = vld [vmem:[#allocation7 + $0x5d0] sm:$0xff]
        %v939 = vld [vmem:[#allocation7 + $0x5d8] sm:$0xff]
        %v940 = vld [vmem:[#allocation7 + $0x5e0] sm:$0xff]
        %v941 = vld [vmem:[#allocation7 + $0x5e8] sm:$0xff]
        %v942 = vld [vmem:[#allocation7 + $0x5f0] sm:$0xff]
        %v943 = vld [vmem:[#allocation7 + $0x5f8] sm:$0xff]
        %v944 = vld [vmem:[#allocation7 + $0x600] sm:$0xff]
        %v945 = vld [vmem:[#allocation7 + $0x608] sm:$0xff]
        %v946 = vld [vmem:[#allocation7 + $0x610] sm:$0xff]
        %v947 = vld [vmem:[#allocation7 + $0x618] sm:$0xff]
        %v948 = vld [vmem:[#allocation7 + $0x620] sm:$0xff]
        %v949 = vld [vmem:[#allocation7 + $0x628] sm:$0xff]
        %v950 = vld [vmem:[#allocation7 + $0x630] sm:$0xff]
        %v951 = vld [vmem:[#allocation7 + $0x638] sm:$0xff]
        %v952 = vld [vmem:[#allocation7 + $0x640] sm:$0xff]
        %v953 = vld [vmem:[#allocation7 + $0x648] sm:$0xff]
        %v954 = vld [vmem:[#allocation7 + $0x650] sm:$0xff]
        %v955 = vld [vmem:[#allocation7 + $0x658] sm:$0xff]
        %v956 = vld [vmem:[#allocation7 + $0x660] sm:$0xff]
        %v957 = vld [vmem:[#allocation7 + $0x668] sm:$0xff]
        %v958 = vld [vmem:[#allocation7 + $0x670] sm:$0xff]
        %v959 = vld [vmem:[#allocation7 + $0x678] sm:$0xff]
        %v960 = vld [vmem:[#allocation7 + $0x680] sm:$0xff]
        %v961 = vld [vmem:[#allocation7 + $0x688] sm:$0xff]
        %v962 = vld [vmem:[#allocation7 + $0x690] sm:$0xff]
        %v963 = vld [vmem:[#allocation7 + $0x698] sm:$0xff]
        %v964 = vld [vmem:[#allocation7 + $0x6a0] sm:$0xff]
        %v965 = vld [vmem:[#allocation7 + $0x6a8] sm:$0xff]
        %v966 = vld [vmem:[#allocation7 + $0x6b0] sm:$0xff]
        %v967 = vld [vmem:[#allocation7 + $0x6b8] sm:$0xff]
        %v968 = vld [vmem:[#allocation7 + $0x6c0] sm:$0xff]
        %v969 = vld [vmem:[#allocation7 + $0x6c8] sm:$0xff]
        %v970 = vld [vmem:[#allocation7 + $0x6d0] sm:$0xff]
        %v971 = vld [vmem:[#allocation7 + $0x6d8] sm:$0xff]
        %v972 = vld [vmem:[#allocation7 + $0x6e0] sm:$0xff]
        %v973 = vld [vmem:[#allocation7 + $0x6e8] sm:$0xff]
        %v974 = vld [vmem:[#allocation7 + $0x6f0] sm:$0xff]
        %v975 = vld [vmem:[#allocation7 + $0x6f8] sm:$0xff]
        %v976 = vld [vmem:[#allocation7 + $0x700] sm:$0xff]
        %v977 = vld [vmem:[#allocation7 + $0x708] sm:$0xff]
        %v978 = vld [vmem:[#allocation7 + $0x710] sm:$0xff]
        %v979 = vld [vmem:[#allocation7 + $0x718] sm:$0xff]
        %v980 = vld [vmem:[#allocation7 + $0x720] sm:$0xff]
        %v981 = vld [vmem:[#allocation7 + $0x728] sm:$0xff]
        %v982 = vld [vmem:[#allocation7 + $0x730] sm:$0xff]
        %v983 = vld [vmem:[#allocation7 + $0x738] sm:$0xff]
        %v984 = vld [vmem:[#allocation7 + $0x740] sm:$0xff]
        %v985 = vld [vmem:[#allocation7 + $0x748] sm:$0xff]
        %v986 = vld [vmem:[#allocation7 + $0x750] sm:$0xff]
        %v987 = vld [vmem:[#allocation7 + $0x758] sm:$0xff]
        %v988 = vld [vmem:[#allocation7 + $0x760] sm:$0xff]
        %v989 = vld [vmem:[#allocation7 + $0x768] sm:$0xff]
        %v990 = vld [vmem:[#allocation7 + $0x770] sm:$0xff]
        %v991 = vld [vmem:[#allocation7 + $0x778] sm:$0xff]
        %v992 = vld [vmem:[#allocation7 + $0x780] sm:$0xff]
        %v993 = vld [vmem:[#allocation7 + $0x788] sm:$0xff]
        %v994 = vld [vmem:[#allocation7 + $0x790] sm:$0xff]
        %v995 = vld [vmem:[#allocation7 + $0x798] sm:$0xff]
        %v996 = vld [vmem:[#allocation7 + $0x7a0] sm:$0xff]
        %v997 = vld [vmem:[#allocation7 + $0x7a8] sm:$0xff]
        %v998 = vld [vmem:[#allocation7 + $0x7b0] sm:$0xff]
        %v999 = vld [vmem:[#allocation7 + $0x7b8] sm:$0xff]
        %v1000 = vld [vmem:[#allocation7 + $0x7c0] sm:$0xff]
        %v1001 = vld [vmem:[#allocation7 + $0x7c8] sm:$0xff]
        %v1002 = vld [vmem:[#allocation7 + $0x7d0] sm:$0xff]
        %v1003 = vld [vmem:[#allocation7 + $0x7d8] sm:$0xff]
        %v1004 = vld [vmem:[#allocation7 + $0x7e0] sm:$0xff]
        %v1005 = vld [vmem:[#allocation7 + $0x7e8] sm:$0xff]
        %v1006 = vld [vmem:[#allocation7 + $0x7f0] sm:$0xff]
        %v1007 = vld [vmem:[#allocation7 + $0x7f8] sm:$0xff]
        %v1008 = vld [vmem:[%s4] sm:$0xf]
        %v1010 = vlaneseq
        %v1011 = vshrl.u32 %v1010, 7
        %v1012 = vsub.s32 0, %v1011
        %v1013 = vrot.slane %v1008, %v1012
        %v1014 = vlaneseq
        %v1015 = vshrl.u32 %v1014, 7
        %v1016 = vsub.s32 1, %v1015
        %v1017 = vrot.slane %v1008, %v1016
        %v1018 = vlaneseq
        %v1019 = vshrl.u32 %v1018, 7
        %v1020 = vsub.s32 2, %v1019
        %v1021 = vrot.slane %v1008, %v1020
        %v1022 = vlaneseq
        %v1023 = vshrl.u32 %v1022, 7
        %v1024 = vsub.s32 3, %v1023
        %v1025 = vrot.slane %v1008, %v1024
        %v1286 = vunpack.c.l.b16 %v752
        %v1287 = vunpack.c.h.b16 %v752
        %v1288 = vunpack.c.l.b16 %v753
        %v1289 = vunpack.c.h.b16 %v753
        %v1290 = vunpack.c.l.b16 %v754
        %v1291 = vunpack.c.h.b16 %v754
        %v1292 = vunpack.c.l.b16 %v755
        %v1293 = vunpack.c.h.b16 %v755
        %v1294 = vunpack.c.l.b16 %v756
        %v1295 = vunpack.c.h.b16 %v756
        %v1296 = vunpack.c.l.b16 %v757
        %v1297 = vunpack.c.h.b16 %v757
        %v1298 = vunpack.c.l.b16 %v758
        %v1299 = vunpack.c.h.b16 %v758
        %v1300 = vunpack.c.l.b16 %v759
        %v1301 = vunpack.c.h.b16 %v759
        %v1302 = vunpack.c.l.b16 %v760
        %v1303 = vunpack.c.h.b16 %v760
        %v1304 = vunpack.c.l.b16 %v761
        %v1305 = vunpack.c.h.b16 %v761
        %v1306 = vunpack.c.l.b16 %v762
        %v1307 = vunpack.c.h.b16 %v762
        %v1308 = vunpack.c.l.b16 %v763
        %v1309 = vunpack.c.h.b16 %v763
        %v1310 = vunpack.c.l.b16 %v764
        %v1311 = vunpack.c.h.b16 %v764
        %v1312 = vunpack.c.l.b16 %v765
        %v1313 = vunpack.c.h.b16 %v765
        %v1314 = vunpack.c.l.b16 %v766
        %v1315 = vunpack.c.h.b16 %v766
        %v1316 = vunpack.c.l.b16 %v767
        %v1317 = vunpack.c.h.b16 %v767
        %v1318 = vunpack.c.l.b16 %v768
        %v1319 = vunpack.c.h.b16 %v768
        %v1320 = vunpack.c.l.b16 %v769
        %v1321 = vunpack.c.h.b16 %v769
        %v1322 = vunpack.c.l.b16 %v770
        %v1323 = vunpack.c.h.b16 %v770
        %v1324 = vunpack.c.l.b16 %v771
        %v1325 = vunpack.c.h.b16 %v771
        %v1326 = vunpack.c.l.b16 %v772
        %v1327 = vunpack.c.h.b16 %v772
        %v1328 = vunpack.c.l.b16 %v773
        %v1329 = vunpack.c.h.b16 %v773
        %v1330 = vunpack.c.l.b16 %v774
        %v1331 = vunpack.c.h.b16 %v774
        %v1332 = vunpack.c.l.b16 %v775
        %v1333 = vunpack.c.h.b16 %v775
        %v1334 = vunpack.c.l.b16 %v776
        %v1335 = vunpack.c.h.b16 %v776
        %v1336 = vunpack.c.l.b16 %v777
        %v1337 = vunpack.c.h.b16 %v777
        %v1338 = vunpack.c.l.b16 %v778
        %v1339 = vunpack.c.h.b16 %v778
        %v1340 = vunpack.c.l.b16 %v779
        %v1341 = vunpack.c.h.b16 %v779
        %v1342 = vunpack.c.l.b16 %v780
        %v1343 = vunpack.c.h.b16 %v780
        %v1344 = vunpack.c.l.b16 %v781
        %v1345 = vunpack.c.h.b16 %v781
        %v1346 = vunpack.c.l.b16 %v782
        %v1347 = vunpack.c.h.b16 %v782
        %v1348 = vunpack.c.l.b16 %v783
        %v1349 = vunpack.c.h.b16 %v783
        %v1350 = vunpack.c.l.b16 %v784
        %v1351 = vunpack.c.h.b16 %v784
        %v1352 = vunpack.c.l.b16 %v785
        %v1353 = vunpack.c.h.b16 %v785
        %v1354 = vunpack.c.l.b16 %v786
        %v1355 = vunpack.c.h.b16 %v786
        %v1356 = vunpack.c.l.b16 %v787
        %v1357 = vunpack.c.h.b16 %v787
        %v1358 = vunpack.c.l.b16 %v788
        %v1359 = vunpack.c.h.b16 %v788
        %v1360 = vunpack.c.l.b16 %v789
        %v1361 = vunpack.c.h.b16 %v789
        %v1362 = vunpack.c.l.b16 %v790
        %v1363 = vunpack.c.h.b16 %v790
        %v1364 = vunpack.c.l.b16 %v791
        %v1365 = vunpack.c.h.b16 %v791
        %v1366 = vunpack.c.l.b16 %v792
        %v1367 = vunpack.c.h.b16 %v792
        %v1368 = vunpack.c.l.b16 %v793
        %v1369 = vunpack.c.h.b16 %v793
        %v1370 = vunpack.c.l.b16 %v794
        %v1371 = vunpack.c.h.b16 %v794
        %v1372 = vunpack.c.l.b16 %v795
        %v1373 = vunpack.c.h.b16 %v795
        %v1374 = vunpack.c.l.b16 %v796
        %v1375 = vunpack.c.h.b16 %v796
        %v1376 = vunpack.c.l.b16 %v797
        %v1377 = vunpack.c.h.b16 %v797
        %v1378 = vunpack.c.l.b16 %v798
        %v1379 = vunpack.c.h.b16 %v798
        %v1380 = vunpack.c.l.b16 %v799
        %v1381 = vunpack.c.h.b16 %v799
        %v1382 = vunpack.c.l.b16 %v800
        %v1383 = vunpack.c.h.b16 %v800
        %v1384 = vunpack.c.l.b16 %v801
        %v1385 = vunpack.c.h.b16 %v801
        %v1386 = vunpack.c.l.b16 %v802
        %v1387 = vunpack.c.h.b16 %v802
        %v1388 = vunpack.c.l.b16 %v803
        %v1389 = vunpack.c.h.b16 %v803
        %v1390 = vunpack.c.l.b16 %v804
        %v1391 = vunpack.c.h.b16 %v804
        %v1392 = vunpack.c.l.b16 %v805
        %v1393 = vunpack.c.h.b16 %v805
        %v1394 = vunpack.c.l.b16 %v806
        %v1395 = vunpack.c.h.b16 %v806
        %v1396 = vunpack.c.l.b16 %v807
        %v1397 = vunpack.c.h.b16 %v807
        %v1398 = vunpack.c.l.b16 %v808
        %v1399 = vunpack.c.h.b16 %v808
        %v1400 = vunpack.c.l.b16 %v809
        %v1401 = vunpack.c.h.b16 %v809
        %v1402 = vunpack.c.l.b16 %v810
        %v1403 = vunpack.c.h.b16 %v810
        %v1404 = vunpack.c.l.b16 %v811
        %v1405 = vunpack.c.h.b16 %v811
        %v1406 = vunpack.c.l.b16 %v812
        %v1407 = vunpack.c.h.b16 %v812
        %v1408 = vunpack.c.l.b16 %v813
        %v1409 = vunpack.c.h.b16 %v813
        %v1410 = vunpack.c.l.b16 %v814
        %v1411 = vunpack.c.h.b16 %v814
        %v1412 = vunpack.c.l.b16 %v815
        %v1413 = vunpack.c.h.b16 %v815
        %v1414 = vunpack.c.l.b16 %v816
        %v1415 = vunpack.c.h.b16 %v816
        %v1416 = vunpack.c.l.b16 %v817
        %v1417 = vunpack.c.h.b16 %v817
        %v1418 = vunpack.c.l.b16 %v818
        %v1419 = vunpack.c.h.b16 %v818
        %v1420 = vunpack.c.l.b16 %v819
        %v1421 = vunpack.c.h.b16 %v819
        %v1422 = vunpack.c.l.b16 %v820
        %v1423 = vunpack.c.h.b16 %v820
        %v1424 = vunpack.c.l.b16 %v821
        %v1425 = vunpack.c.h.b16 %v821
        %v1426 = vunpack.c.l.b16 %v822
        %v1427 = vunpack.c.h.b16 %v822
        %v1428 = vunpack.c.l.b16 %v823
        %v1429 = vunpack.c.h.b16 %v823
        %v1430 = vunpack.c.l.b16 %v824
        %v1431 = vunpack.c.h.b16 %v824
        %v1432 = vunpack.c.l.b16 %v825
        %v1433 = vunpack.c.h.b16 %v825
        %v1434 = vunpack.c.l.b16 %v826
        %v1435 = vunpack.c.h.b16 %v826
        %v1436 = vunpack.c.l.b16 %v827
        %v1437 = vunpack.c.h.b16 %v827
        %v1438 = vunpack.c.l.b16 %v828
        %v1439 = vunpack.c.h.b16 %v828
        %v1440 = vunpack.c.l.b16 %v829
        %v1441 = vunpack.c.h.b16 %v829
        %v1442 = vunpack.c.l.b16 %v830
        %v1443 = vunpack.c.h.b16 %v830
        %v1444 = vunpack.c.l.b16 %v831
        %v1445 = vunpack.c.h.b16 %v831
        %v1446 = vunpack.c.l.b16 %v832
        %v1447 = vunpack.c.h.b16 %v832
        %v1448 = vunpack.c.l.b16 %v833
        %v1449 = vunpack.c.h.b16 %v833
        %v1450 = vunpack.c.l.b16 %v834
        %v1451 = vunpack.c.h.b16 %v834
        %v1452 = vunpack.c.l.b16 %v835
        %v1453 = vunpack.c.h.b16 %v835
        %v1454 = vunpack.c.l.b16 %v836
        %v1455 = vunpack.c.h.b16 %v836
        %v1456 = vunpack.c.l.b16 %v837
        %v1457 = vunpack.c.h.b16 %v837
        %v1458 = vunpack.c.l.b16 %v838
        %v1459 = vunpack.c.h.b16 %v838
        %v1460 = vunpack.c.l.b16 %v839
        %v1461 = vunpack.c.h.b16 %v839
        %v1462 = vunpack.c.l.b16 %v840
        %v1463 = vunpack.c.h.b16 %v840
        %v1464 = vunpack.c.l.b16 %v841
        %v1465 = vunpack.c.h.b16 %v841
        %v1466 = vunpack.c.l.b16 %v842
        %v1467 = vunpack.c.h.b16 %v842
        %v1468 = vunpack.c.l.b16 %v843
        %v1469 = vunpack.c.h.b16 %v843
        %v1470 = vunpack.c.l.b16 %v844
        %v1471 = vunpack.c.h.b16 %v844
        %v1472 = vunpack.c.l.b16 %v845
        %v1473 = vunpack.c.h.b16 %v845
        %v1474 = vunpack.c.l.b16 %v846
        %v1475 = vunpack.c.h.b16 %v846
        %v1476 = vunpack.c.l.b16 %v847
        %v1477 = vunpack.c.h.b16 %v847
        %v1478 = vunpack.c.l.b16 %v848
        %v1479 = vunpack.c.h.b16 %v848
        %v1480 = vunpack.c.l.b16 %v849
        %v1481 = vunpack.c.h.b16 %v849
        %v1482 = vunpack.c.l.b16 %v850
        %v1483 = vunpack.c.h.b16 %v850
        %v1484 = vunpack.c.l.b16 %v851
        %v1485 = vunpack.c.h.b16 %v851
        %v1486 = vunpack.c.l.b16 %v852
        %v1487 = vunpack.c.h.b16 %v852
        %v1488 = vunpack.c.l.b16 %v853
        %v1489 = vunpack.c.h.b16 %v853
        %v1490 = vunpack.c.l.b16 %v854
        %v1491 = vunpack.c.h.b16 %v854
        %v1492 = vunpack.c.l.b16 %v855
        %v1493 = vunpack.c.h.b16 %v855
        %v1494 = vunpack.c.l.b16 %v856
        %v1495 = vunpack.c.h.b16 %v856
        %v1496 = vunpack.c.l.b16 %v857
        %v1497 = vunpack.c.h.b16 %v857
        %v1498 = vunpack.c.l.b16 %v858
        %v1499 = vunpack.c.h.b16 %v858
        %v1500 = vunpack.c.l.b16 %v859
        %v1501 = vunpack.c.h.b16 %v859
        %v1502 = vunpack.c.l.b16 %v860
        %v1503 = vunpack.c.h.b16 %v860
        %v1504 = vunpack.c.l.b16 %v861
        %v1505 = vunpack.c.h.b16 %v861
        %v1506 = vunpack.c.l.b16 %v862
        %v1507 = vunpack.c.h.b16 %v862
        %v1508 = vunpack.c.l.b16 %v863
        %v1509 = vunpack.c.h.b16 %v863
        %v1510 = vunpack.c.l.b16 %v864
        %v1511 = vunpack.c.h.b16 %v864
        %v1512 = vunpack.c.l.b16 %v865
        %v1513 = vunpack.c.h.b16 %v865
        %v1514 = vunpack.c.l.b16 %v866
        %v1515 = vunpack.c.h.b16 %v866
        %v1516 = vunpack.c.l.b16 %v867
        %v1517 = vunpack.c.h.b16 %v867
        %v1518 = vunpack.c.l.b16 %v868
        %v1519 = vunpack.c.h.b16 %v868
        %v1520 = vunpack.c.l.b16 %v869
        %v1521 = vunpack.c.h.b16 %v869
        %v1522 = vunpack.c.l.b16 %v870
        %v1523 = vunpack.c.h.b16 %v870
        %v1524 = vunpack.c.l.b16 %v871
        %v1525 = vunpack.c.h.b16 %v871
        %v1526 = vunpack.c.l.b16 %v872
        %v1527 = vunpack.c.h.b16 %v872
        %v1528 = vunpack.c.l.b16 %v873
        %v1529 = vunpack.c.h.b16 %v873
        %v1530 = vunpack.c.l.b16 %v874
        %v1531 = vunpack.c.h.b16 %v874
        %v1532 = vunpack.c.l.b16 %v875
        %v1533 = vunpack.c.h.b16 %v875
        %v1534 = vunpack.c.l.b16 %v876
        %v1535 = vunpack.c.h.b16 %v876
        %v1536 = vunpack.c.l.b16 %v877
        %v1537 = vunpack.c.h.b16 %v877
        %v1538 = vunpack.c.l.b16 %v878
        %v1539 = vunpack.c.h.b16 %v878
        %v1540 = vunpack.c.l.b16 %v879
        %v1541 = vunpack.c.h.b16 %v879
        %v1542 = vunpack.c.l.b16 %v880
        %v1543 = vunpack.c.h.b16 %v880
        %v1544 = vunpack.c.l.b16 %v881
        %v1545 = vunpack.c.h.b16 %v881
        %v1546 = vunpack.c.l.b16 %v882
        %v1547 = vunpack.c.h.b16 %v882
        %v1548 = vunpack.c.l.b16 %v883
        %v1549 = vunpack.c.h.b16 %v883
        %v1550 = vunpack.c.l.b16 %v884
        %v1551 = vunpack.c.h.b16 %v884
        %v1552 = vunpack.c.l.b16 %v885
        %v1553 = vunpack.c.h.b16 %v885
        %v1554 = vunpack.c.l.b16 %v886
        %v1555 = vunpack.c.h.b16 %v886
        %v1556 = vunpack.c.l.b16 %v887
        %v1557 = vunpack.c.h.b16 %v887
        %v1558 = vunpack.c.l.b16 %v888
        %v1559 = vunpack.c.h.b16 %v888
        %v1560 = vunpack.c.l.b16 %v889
        %v1561 = vunpack.c.h.b16 %v889
        %v1562 = vunpack.c.l.b16 %v890
        %v1563 = vunpack.c.h.b16 %v890
        %v1564 = vunpack.c.l.b16 %v891
        %v1565 = vunpack.c.h.b16 %v891
        %v1566 = vunpack.c.l.b16 %v892
        %v1567 = vunpack.c.h.b16 %v892
        %v1568 = vunpack.c.l.b16 %v893
        %v1569 = vunpack.c.h.b16 %v893
        %v1570 = vunpack.c.l.b16 %v894
        %v1571 = vunpack.c.h.b16 %v894
        %v1572 = vunpack.c.l.b16 %v895
        %v1573 = vunpack.c.h.b16 %v895
        %v1574 = vunpack.c.l.b16 %v896
        %v1575 = vunpack.c.h.b16 %v896
        %v1576 = vunpack.c.l.b16 %v897
        %v1577 = vunpack.c.h.b16 %v897
        %v1578 = vunpack.c.l.b16 %v898
        %v1579 = vunpack.c.h.b16 %v898
        %v1580 = vunpack.c.l.b16 %v899
        %v1581 = vunpack.c.h.b16 %v899
        %v1582 = vunpack.c.l.b16 %v900
        %v1583 = vunpack.c.h.b16 %v900
        %v1584 = vunpack.c.l.b16 %v901
        %v1585 = vunpack.c.h.b16 %v901
        %v1586 = vunpack.c.l.b16 %v902
        %v1587 = vunpack.c.h.b16 %v902
        %v1588 = vunpack.c.l.b16 %v903
        %v1589 = vunpack.c.h.b16 %v903
        %v1590 = vunpack.c.l.b16 %v904
        %v1591 = vunpack.c.h.b16 %v904
        %v1592 = vunpack.c.l.b16 %v905
        %v1593 = vunpack.c.h.b16 %v905
        %v1594 = vunpack.c.l.b16 %v906
        %v1595 = vunpack.c.h.b16 %v906
        %v1596 = vunpack.c.l.b16 %v907
        %v1597 = vunpack.c.h.b16 %v907
        %v1598 = vunpack.c.l.b16 %v908
        %v1599 = vunpack.c.h.b16 %v908
        %v1600 = vunpack.c.l.b16 %v909
        %v1601 = vunpack.c.h.b16 %v909
        %v1602 = vunpack.c.l.b16 %v910
        %v1603 = vunpack.c.h.b16 %v910
        %v1604 = vunpack.c.l.b16 %v911
        %v1605 = vunpack.c.h.b16 %v911
        %v1606 = vunpack.c.l.b16 %v912
        %v1607 = vunpack.c.h.b16 %v912
        %v1608 = vunpack.c.l.b16 %v913
        %v1609 = vunpack.c.h.b16 %v913
        %v1610 = vunpack.c.l.b16 %v914
        %v1611 = vunpack.c.h.b16 %v914
        %v1612 = vunpack.c.l.b16 %v915
        %v1613 = vunpack.c.h.b16 %v915
        %v1614 = vunpack.c.l.b16 %v916
        %v1615 = vunpack.c.h.b16 %v916
        %v1616 = vunpack.c.l.b16 %v917
        %v1617 = vunpack.c.h.b16 %v917
        %v1618 = vunpack.c.l.b16 %v918
        %v1619 = vunpack.c.h.b16 %v918
        %v1620 = vunpack.c.l.b16 %v919
        %v1621 = vunpack.c.h.b16 %v919
        %v1622 = vunpack.c.l.b16 %v920
        %v1623 = vunpack.c.h.b16 %v920
        %v1624 = vunpack.c.l.b16 %v921
        %v1625 = vunpack.c.h.b16 %v921
        %v1626 = vunpack.c.l.b16 %v922
        %v1627 = vunpack.c.h.b16 %v922
        %v1628 = vunpack.c.l.b16 %v923
        %v1629 = vunpack.c.h.b16 %v923
        %v1630 = vunpack.c.l.b16 %v924
        %v1631 = vunpack.c.h.b16 %v924
        %v1632 = vunpack.c.l.b16 %v925
        %v1633 = vunpack.c.h.b16 %v925
        %v1634 = vunpack.c.l.b16 %v926
        %v1635 = vunpack.c.h.b16 %v926
        %v1636 = vunpack.c.l.b16 %v927
        %v1637 = vunpack.c.h.b16 %v927
        %v1638 = vunpack.c.l.b16 %v928
        %v1639 = vunpack.c.h.b16 %v928
        %v1640 = vunpack.c.l.b16 %v929
        %v1641 = vunpack.c.h.b16 %v929
        %v1642 = vunpack.c.l.b16 %v930
        %v1643 = vunpack.c.h.b16 %v930
        %v1644 = vunpack.c.l.b16 %v931
        %v1645 = vunpack.c.h.b16 %v931
        %v1646 = vunpack.c.l.b16 %v932
        %v1647 = vunpack.c.h.b16 %v932
        %v1648 = vunpack.c.l.b16 %v933
        %v1649 = vunpack.c.h.b16 %v933
        %v1650 = vunpack.c.l.b16 %v934
        %v1651 = vunpack.c.h.b16 %v934
        %v1652 = vunpack.c.l.b16 %v935
        %v1653 = vunpack.c.h.b16 %v935
        %v1654 = vunpack.c.l.b16 %v936
        %v1655 = vunpack.c.h.b16 %v936
        %v1656 = vunpack.c.l.b16 %v937
        %v1657 = vunpack.c.h.b16 %v937
        %v1658 = vunpack.c.l.b16 %v938
        %v1659 = vunpack.c.h.b16 %v938
        %v1660 = vunpack.c.l.b16 %v939
        %v1661 = vunpack.c.h.b16 %v939
        %v1662 = vunpack.c.l.b16 %v940
        %v1663 = vunpack.c.h.b16 %v940
        %v1664 = vunpack.c.l.b16 %v941
        %v1665 = vunpack.c.h.b16 %v941
        %v1666 = vunpack.c.l.b16 %v942
        %v1667 = vunpack.c.h.b16 %v942
        %v1668 = vunpack.c.l.b16 %v943
        %v1669 = vunpack.c.h.b16 %v943
        %v1670 = vunpack.c.l.b16 %v944
        %v1671 = vunpack.c.h.b16 %v944
        %v1672 = vunpack.c.l.b16 %v945
        %v1673 = vunpack.c.h.b16 %v945
        %v1674 = vunpack.c.l.b16 %v946
        %v1675 = vunpack.c.h.b16 %v946
        %v1676 = vunpack.c.l.b16 %v947
        %v1677 = vunpack.c.h.b16 %v947
        %v1678 = vunpack.c.l.b16 %v948
        %v1679 = vunpack.c.h.b16 %v948
        %v1680 = vunpack.c.l.b16 %v949
        %v1681 = vunpack.c.h.b16 %v949
        %v1682 = vunpack.c.l.b16 %v950
        %v1683 = vunpack.c.h.b16 %v950
        %v1684 = vunpack.c.l.b16 %v951
        %v1685 = vunpack.c.h.b16 %v951
        %v1686 = vunpack.c.l.b16 %v952
        %v1687 = vunpack.c.h.b16 %v952
        %v1688 = vunpack.c.l.b16 %v953
        %v1689 = vunpack.c.h.b16 %v953
        %v1690 = vunpack.c.l.b16 %v954
        %v1691 = vunpack.c.h.b16 %v954
        %v1692 = vunpack.c.l.b16 %v955
        %v1693 = vunpack.c.h.b16 %v955
        %v1694 = vunpack.c.l.b16 %v956
        %v1695 = vunpack.c.h.b16 %v956
        %v1696 = vunpack.c.l.b16 %v957
        %v1697 = vunpack.c.h.b16 %v957
        %v1698 = vunpack.c.l.b16 %v958
        %v1699 = vunpack.c.h.b16 %v958
        %v1700 = vunpack.c.l.b16 %v959
        %v1701 = vunpack.c.h.b16 %v959
        %v1702 = vunpack.c.l.b16 %v960
        %v1703 = vunpack.c.h.b16 %v960
        %v1704 = vunpack.c.l.b16 %v961
        %v1705 = vunpack.c.h.b16 %v961
        %v1706 = vunpack.c.l.b16 %v962
        %v1707 = vunpack.c.h.b16 %v962
        %v1708 = vunpack.c.l.b16 %v963
        %v1709 = vunpack.c.h.b16 %v963
        %v1710 = vunpack.c.l.b16 %v964
        %v1711 = vunpack.c.h.b16 %v964
        %v1712 = vunpack.c.l.b16 %v965
        %v1713 = vunpack.c.h.b16 %v965
        %v1714 = vunpack.c.l.b16 %v966
        %v1715 = vunpack.c.h.b16 %v966
        %v1716 = vunpack.c.l.b16 %v967
        %v1717 = vunpack.c.h.b16 %v967
        %v1718 = vunpack.c.l.b16 %v968
        %v1719 = vunpack.c.h.b16 %v968
        %v1720 = vunpack.c.l.b16 %v969
        %v1721 = vunpack.c.h.b16 %v969
        %v1722 = vunpack.c.l.b16 %v970
        %v1723 = vunpack.c.h.b16 %v970
        %v1724 = vunpack.c.l.b16 %v971
        %v1725 = vunpack.c.h.b16 %v971
        %v1726 = vunpack.c.l.b16 %v972
        %v1727 = vunpack.c.h.b16 %v972
        %v1728 = vunpack.c.l.b16 %v973
        %v1729 = vunpack.c.h.b16 %v973
        %v1730 = vunpack.c.l.b16 %v974
        %v1731 = vunpack.c.h.b16 %v974
        %v1732 = vunpack.c.l.b16 %v975
        %v1733 = vunpack.c.h.b16 %v975
        %v1734 = vunpack.c.l.b16 %v976
        %v1735 = vunpack.c.h.b16 %v976
        %v1736 = vunpack.c.l.b16 %v977
        %v1737 = vunpack.c.h.b16 %v977
        %v1738 = vunpack.c.l.b16 %v978
        %v1739 = vunpack.c.h.b16 %v978
        %v1740 = vunpack.c.l.b16 %v979
        %v1741 = vunpack.c.h.b16 %v979
        %v1742 = vunpack.c.l.b16 %v980
        %v1743 = vunpack.c.h.b16 %v980
        %v1744 = vunpack.c.l.b16 %v981
        %v1745 = vunpack.c.h.b16 %v981
        %v1746 = vunpack.c.l.b16 %v982
        %v1747 = vunpack.c.h.b16 %v982
        %v1748 = vunpack.c.l.b16 %v983
        %v1749 = vunpack.c.h.b16 %v983
        %v1750 = vunpack.c.l.b16 %v984
        %v1751 = vunpack.c.h.b16 %v984
        %v1752 = vunpack.c.l.b16 %v985
        %v1753 = vunpack.c.h.b16 %v985
        %v1754 = vunpack.c.l.b16 %v986
        %v1755 = vunpack.c.h.b16 %v986
        %v1756 = vunpack.c.l.b16 %v987
        %v1757 = vunpack.c.h.b16 %v987
        %v1758 = vunpack.c.l.b16 %v988
        %v1759 = vunpack.c.h.b16 %v988
        %v1760 = vunpack.c.l.b16 %v989
        %v1761 = vunpack.c.h.b16 %v989
        %v1762 = vunpack.c.l.b16 %v990
        %v1763 = vunpack.c.h.b16 %v990
        %v1764 = vunpack.c.l.b16 %v991
        %v1765 = vunpack.c.h.b16 %v991
        %v1766 = vunpack.c.l.b16 %v992
        %v1767 = vunpack.c.h.b16 %v992
        %v1768 = vunpack.c.l.b16 %v993
        %v1769 = vunpack.c.h.b16 %v993
        %v1770 = vunpack.c.l.b16 %v994
        %v1771 = vunpack.c.h.b16 %v994
        %v1772 = vunpack.c.l.b16 %v995
        %v1773 = vunpack.c.h.b16 %v995
        %v1774 = vunpack.c.l.b16 %v996
        %v1775 = vunpack.c.h.b16 %v996
        %v1776 = vunpack.c.l.b16 %v997
        %v1777 = vunpack.c.h.b16 %v997
        %v1778 = vunpack.c.l.b16 %v998
        %v1779 = vunpack.c.h.b16 %v998
        %v1780 = vunpack.c.l.b16 %v999
        %v1781 = vunpack.c.h.b16 %v999
        %v1782 = vunpack.c.l.b16 %v1000
        %v1783 = vunpack.c.h.b16 %v1000
        %v1784 = vunpack.c.l.b16 %v1001
        %v1785 = vunpack.c.h.b16 %v1001
        %v1786 = vunpack.c.l.b16 %v1002
        %v1787 = vunpack.c.h.b16 %v1002
        %v1788 = vunpack.c.l.b16 %v1003
        %v1789 = vunpack.c.h.b16 %v1003
        %v1790 = vunpack.c.l.b16 %v1004
        %v1791 = vunpack.c.h.b16 %v1004
        %v1792 = vunpack.c.l.b16 %v1005
        %v1793 = vunpack.c.h.b16 %v1005
        %v1794 = vunpack.c.l.b16 %v1006
        %v1795 = vunpack.c.h.b16 %v1006
        %v1796 = vunpack.c.l.b16 %v1007
        %v1797 = vunpack.c.h.b16 %v1007
        %v1798 = vpack.c.b16 %v1290, %v1286
        %v1799 = vpack.c.b16 %v1291, %v1287
        %v1800 = vpack.c.b16 %v1292, %v1288
        %v1801 = vpack.c.b16 %v1293, %v1289
        %v1802 = vpack.c.b16 %v1298, %v1294
        %v1803 = vpack.c.b16 %v1299, %v1295
        %v1804 = vpack.c.b16 %v1300, %v1296
        %v1805 = vpack.c.b16 %v1301, %v1297
        %v1806 = vpack.c.b16 %v1306, %v1302
        %v1807 = vpack.c.b16 %v1307, %v1303
        %v1808 = vpack.c.b16 %v1308, %v1304
        %v1809 = vpack.c.b16 %v1309, %v1305
        %v1810 = vpack.c.b16 %v1314, %v1310
        %v1811 = vpack.c.b16 %v1315, %v1311
        %v1812 = vpack.c.b16 %v1316, %v1312
        %v1813 = vpack.c.b16 %v1317, %v1313
        %v1814 = vpack.c.b16 %v1322, %v1318
        %v1815 = vpack.c.b16 %v1323, %v1319
        %v1816 = vpack.c.b16 %v1324, %v1320
        %v1817 = vpack.c.b16 %v1325, %v1321
        %v1818 = vpack.c.b16 %v1330, %v1326
        %v1819 = vpack.c.b16 %v1331, %v1327
        %v1820 = vpack.c.b16 %v1332, %v1328
        %v1821 = vpack.c.b16 %v1333, %v1329
        %v1822 = vpack.c.b16 %v1338, %v1334
        %v1823 = vpack.c.b16 %v1339, %v1335
        %v1824 = vpack.c.b16 %v1340, %v1336
        %v1825 = vpack.c.b16 %v1341, %v1337
        %v1826 = vpack.c.b16 %v1346, %v1342
        %v1827 = vpack.c.b16 %v1347, %v1343
        %v1828 = vpack.c.b16 %v1348, %v1344
        %v1829 = vpack.c.b16 %v1349, %v1345
        %v1830 = vpack.c.b16 %v1354, %v1350
        %v1831 = vpack.c.b16 %v1355, %v1351
        %v1832 = vpack.c.b16 %v1356, %v1352
        %v1833 = vpack.c.b16 %v1357, %v1353
        %v1834 = vpack.c.b16 %v1362, %v1358
        %v1835 = vpack.c.b16 %v1363, %v1359
        %v1836 = vpack.c.b16 %v1364, %v1360
        %v1837 = vpack.c.b16 %v1365, %v1361
        %v1838 = vpack.c.b16 %v1370, %v1366
        %v1839 = vpack.c.b16 %v1371, %v1367
        %v1840 = vpack.c.b16 %v1372, %v1368
        %v1841 = vpack.c.b16 %v1373, %v1369
        %v1842 = vpack.c.b16 %v1378, %v1374
        %v1843 = vpack.c.b16 %v1379, %v1375
        %v1844 = vpack.c.b16 %v1380, %v1376
        %v1845 = vpack.c.b16 %v1381, %v1377
        %v1846 = vpack.c.b16 %v1386, %v1382
        %v1847 = vpack.c.b16 %v1387, %v1383
        %v1848 = vpack.c.b16 %v1388, %v1384
        %v1849 = vpack.c.b16 %v1389, %v1385
        %v1850 = vpack.c.b16 %v1394, %v1390
        %v1851 = vpack.c.b16 %v1395, %v1391
        %v1852 = vpack.c.b16 %v1396, %v1392
        %v1853 = vpack.c.b16 %v1397, %v1393
        %v1854 = vpack.c.b16 %v1402, %v1398
        %v1855 = vpack.c.b16 %v1403, %v1399
        %v1856 = vpack.c.b16 %v1404, %v1400
        %v1857 = vpack.c.b16 %v1405, %v1401
        %v1858 = vpack.c.b16 %v1410, %v1406
        %v1859 = vpack.c.b16 %v1411, %v1407
        %v1860 = vpack.c.b16 %v1412, %v1408
        %v1861 = vpack.c.b16 %v1413, %v1409
        %v1862 = vpack.c.b16 %v1418, %v1414
        %v1863 = vpack.c.b16 %v1419, %v1415
        %v1864 = vpack.c.b16 %v1420, %v1416
        %v1865 = vpack.c.b16 %v1421, %v1417
        %v1866 = vpack.c.b16 %v1426, %v1422
        %v1867 = vpack.c.b16 %v1427, %v1423
        %v1868 = vpack.c.b16 %v1428, %v1424
        %v1869 = vpack.c.b16 %v1429, %v1425
        %v1870 = vpack.c.b16 %v1434, %v1430
        %v1871 = vpack.c.b16 %v1435, %v1431
        %v1872 = vpack.c.b16 %v1436, %v1432
        %v1873 = vpack.c.b16 %v1437, %v1433
        %v1874 = vpack.c.b16 %v1442, %v1438
        %v1875 = vpack.c.b16 %v1443, %v1439
        %v1876 = vpack.c.b16 %v1444, %v1440
        %v1877 = vpack.c.b16 %v1445, %v1441
        %v1878 = vpack.c.b16 %v1450, %v1446
        %v1879 = vpack.c.b16 %v1451, %v1447
        %v1880 = vpack.c.b16 %v1452, %v1448
        %v1881 = vpack.c.b16 %v1453, %v1449
        %v1882 = vpack.c.b16 %v1458, %v1454
        %v1883 = vpack.c.b16 %v1459, %v1455
        %v1884 = vpack.c.b16 %v1460, %v1456
        %v1885 = vpack.c.b16 %v1461, %v1457
        %v1886 = vpack.c.b16 %v1466, %v1462
        %v1887 = vpack.c.b16 %v1467, %v1463
        %v1888 = vpack.c.b16 %v1468, %v1464
        %v1889 = vpack.c.b16 %v1469, %v1465
        %v1890 = vpack.c.b16 %v1474, %v1470
        %v1891 = vpack.c.b16 %v1475, %v1471
        %v1892 = vpack.c.b16 %v1476, %v1472
        %v1893 = vpack.c.b16 %v1477, %v1473
        %v1894 = vpack.c.b16 %v1482, %v1478
        %v1895 = vpack.c.b16 %v1483, %v1479
        %v1896 = vpack.c.b16 %v1484, %v1480
        %v1897 = vpack.c.b16 %v1485, %v1481
        %v1898 = vpack.c.b16 %v1490, %v1486
        %v1899 = vpack.c.b16 %v1491, %v1487
        %v1900 = vpack.c.b16 %v1492, %v1488
        %v1901 = vpack.c.b16 %v1493, %v1489
        %v1902 = vpack.c.b16 %v1498, %v1494
        %v1903 = vpack.c.b16 %v1499, %v1495
        %v1904 = vpack.c.b16 %v1500, %v1496
        %v1905 = vpack.c.b16 %v1501, %v1497
        %v1906 = vpack.c.b16 %v1506, %v1502
        %v1907 = vpack.c.b16 %v1507, %v1503
        %v1908 = vpack.c.b16 %v1508, %v1504
        %v1909 = vpack.c.b16 %v1509, %v1505
        %v1910 = vpack.c.b16 %v1514, %v1510
        %v1911 = vpack.c.b16 %v1515, %v1511
        %v1912 = vpack.c.b16 %v1516, %v1512
        %v1913 = vpack.c.b16 %v1517, %v1513
        %v1914 = vpack.c.b16 %v1522, %v1518
        %v1915 = vpack.c.b16 %v1523, %v1519
        %v1916 = vpack.c.b16 %v1524, %v1520
        %v1917 = vpack.c.b16 %v1525, %v1521
        %v1918 = vpack.c.b16 %v1530, %v1526
        %v1919 = vpack.c.b16 %v1531, %v1527
        %v1920 = vpack.c.b16 %v1532, %v1528
        %v1921 = vpack.c.b16 %v1533, %v1529
        %v1922 = vpack.c.b16 %v1538, %v1534
        %v1923 = vpack.c.b16 %v1539, %v1535
        %v1924 = vpack.c.b16 %v1540, %v1536
        %v1925 = vpack.c.b16 %v1541, %v1537
        %v1926 = vpack.c.b16 %v1546, %v1542
        %v1927 = vpack.c.b16 %v1547, %v1543
        %v1928 = vpack.c.b16 %v1548, %v1544
        %v1929 = vpack.c.b16 %v1549, %v1545
        %v1930 = vpack.c.b16 %v1554, %v1550
        %v1931 = vpack.c.b16 %v1555, %v1551
        %v1932 = vpack.c.b16 %v1556, %v1552
        %v1933 = vpack.c.b16 %v1557, %v1553
        %v1934 = vpack.c.b16 %v1562, %v1558
        %v1935 = vpack.c.b16 %v1563, %v1559
        %v1936 = vpack.c.b16 %v1564, %v1560
        %v1937 = vpack.c.b16 %v1565, %v1561
        %v1938 = vpack.c.b16 %v1570, %v1566
        %v1939 = vpack.c.b16 %v1571, %v1567
        %v1940 = vpack.c.b16 %v1572, %v1568
        %v1941 = vpack.c.b16 %v1573, %v1569
        %v1942 = vpack.c.b16 %v1578, %v1574
        %v1943 = vpack.c.b16 %v1579, %v1575
        %v1944 = vpack.c.b16 %v1580, %v1576
        %v1945 = vpack.c.b16 %v1581, %v1577
        %v1946 = vpack.c.b16 %v1586, %v1582
        %v1947 = vpack.c.b16 %v1587, %v1583
        %v1948 = vpack.c.b16 %v1588, %v1584
        %v1949 = vpack.c.b16 %v1589, %v1585
        %v1950 = vpack.c.b16 %v1594, %v1590
        %v1951 = vpack.c.b16 %v1595, %v1591
        %v1952 = vpack.c.b16 %v1596, %v1592
        %v1953 = vpack.c.b16 %v1597, %v1593
        %v1954 = vpack.c.b16 %v1602, %v1598
        %v1955 = vpack.c.b16 %v1603, %v1599
        %v1956 = vpack.c.b16 %v1604, %v1600
        %v1957 = vpack.c.b16 %v1605, %v1601
        %v1958 = vpack.c.b16 %v1610, %v1606
        %v1959 = vpack.c.b16 %v1611, %v1607
        %v1960 = vpack.c.b16 %v1612, %v1608
        %v1961 = vpack.c.b16 %v1613, %v1609
        %v1962 = vpack.c.b16 %v1618, %v1614
        %v1963 = vpack.c.b16 %v1619, %v1615
        %v1964 = vpack.c.b16 %v1620, %v1616
        %v1965 = vpack.c.b16 %v1621, %v1617
        %v1966 = vpack.c.b16 %v1626, %v1622
        %v1967 = vpack.c.b16 %v1627, %v1623
        %v1968 = vpack.c.b16 %v1628, %v1624
        %v1969 = vpack.c.b16 %v1629, %v1625
        %v1970 = vpack.c.b16 %v1634, %v1630
        %v1971 = vpack.c.b16 %v1635, %v1631
        %v1972 = vpack.c.b16 %v1636, %v1632
        %v1973 = vpack.c.b16 %v1637, %v1633
        %v1974 = vpack.c.b16 %v1642, %v1638
        %v1975 = vpack.c.b16 %v1643, %v1639
        %v1976 = vpack.c.b16 %v1644, %v1640
        %v1977 = vpack.c.b16 %v1645, %v1641
        %v1978 = vpack.c.b16 %v1650, %v1646
        %v1979 = vpack.c.b16 %v1651, %v1647
        %v1980 = vpack.c.b16 %v1652, %v1648
        %v1981 = vpack.c.b16 %v1653, %v1649
        %v1982 = vpack.c.b16 %v1658, %v1654
        %v1983 = vpack.c.b16 %v1659, %v1655
        %v1984 = vpack.c.b16 %v1660, %v1656
        %v1985 = vpack.c.b16 %v1661, %v1657
        %v1986 = vpack.c.b16 %v1666, %v1662
        %v1987 = vpack.c.b16 %v1667, %v1663
        %v1988 = vpack.c.b16 %v1668, %v1664
        %v1989 = vpack.c.b16 %v1669, %v1665
        %v1990 = vpack.c.b16 %v1674, %v1670
        %v1991 = vpack.c.b16 %v1675, %v1671
        %v1992 = vpack.c.b16 %v1676, %v1672
        %v1993 = vpack.c.b16 %v1677, %v1673
        %v1994 = vpack.c.b16 %v1682, %v1678
        %v1995 = vpack.c.b16 %v1683, %v1679
        %v1996 = vpack.c.b16 %v1684, %v1680
        %v1997 = vpack.c.b16 %v1685, %v1681
        %v1998 = vpack.c.b16 %v1690, %v1686
        %v1999 = vpack.c.b16 %v1691, %v1687
        %v2000 = vpack.c.b16 %v1692, %v1688
        %v2001 = vpack.c.b16 %v1693, %v1689
        %v2002 = vpack.c.b16 %v1698, %v1694
        %v2003 = vpack.c.b16 %v1699, %v1695
        %v2004 = vpack.c.b16 %v1700, %v1696
        %v2005 = vpack.c.b16 %v1701, %v1697
        %v2006 = vpack.c.b16 %v1706, %v1702
        %v2007 = vpack.c.b16 %v1707, %v1703
        %v2008 = vpack.c.b16 %v1708, %v1704
        %v2009 = vpack.c.b16 %v1709, %v1705
        %v2010 = vpack.c.b16 %v1714, %v1710
        %v2011 = vpack.c.b16 %v1715, %v1711
        %v2012 = vpack.c.b16 %v1716, %v1712
        %v2013 = vpack.c.b16 %v1717, %v1713
        %v2014 = vpack.c.b16 %v1722, %v1718
        %v2015 = vpack.c.b16 %v1723, %v1719
        %v2016 = vpack.c.b16 %v1724, %v1720
        %v2017 = vpack.c.b16 %v1725, %v1721
        %v2018 = vpack.c.b16 %v1730, %v1726
        %v2019 = vpack.c.b16 %v1731, %v1727
        %v2020 = vpack.c.b16 %v1732, %v1728
        %v2021 = vpack.c.b16 %v1733, %v1729
        %v2022 = vpack.c.b16 %v1738, %v1734
        %v2023 = vpack.c.b16 %v1739, %v1735
        %v2024 = vpack.c.b16 %v1740, %v1736
        %v2025 = vpack.c.b16 %v1741, %v1737
        %v2026 = vpack.c.b16 %v1746, %v1742
        %v2027 = vpack.c.b16 %v1747, %v1743
        %v2028 = vpack.c.b16 %v1748, %v1744
        %v2029 = vpack.c.b16 %v1749, %v1745
        %v2030 = vpack.c.b16 %v1754, %v1750
        %v2031 = vpack.c.b16 %v1755, %v1751
        %v2032 = vpack.c.b16 %v1756, %v1752
        %v2033 = vpack.c.b16 %v1757, %v1753
        %v2034 = vpack.c.b16 %v1762, %v1758
        %v2035 = vpack.c.b16 %v1763, %v1759
        %v2036 = vpack.c.b16 %v1764, %v1760
        %v2037 = vpack.c.b16 %v1765, %v1761
        %v2038 = vpack.c.b16 %v1770, %v1766
        %v2039 = vpack.c.b16 %v1771, %v1767
        %v2040 = vpack.c.b16 %v1772, %v1768
        %v2041 = vpack.c.b16 %v1773, %v1769
        %v2042 = vpack.c.b16 %v1778, %v1774
        %v2043 = vpack.c.b16 %v1779, %v1775
        %v2044 = vpack.c.b16 %v1780, %v1776
        %v2045 = vpack.c.b16 %v1781, %v1777
        %v2046 = vpack.c.b16 %v1786, %v1782
        %v2047 = vpack.c.b16 %v1787, %v1783
        %v2048 = vpack.c.b16 %v1788, %v1784
        %v2049 = vpack.c.b16 %v1789, %v1785
        %v2050 = vpack.c.b16 %v1794, %v1790
        %v2051 = vpack.c.b16 %v1795, %v1791
        %v2052 = vpack.c.b16 %v1796, %v1792
        %v2053 = vpack.c.b16 %v1797, %v1793
        %2310 = vmatprep.subr.bf16.mxu0 %v1799
        %2311 = vmatpush1.bf16.msra.mxu0 %v1798
        %2312 = vmatprep.subr.bf16.mxu0 %v1803
        %2313 = vmatpush1.bf16.msra.mxu0 %v1802
        %2314 = vmatprep.subr.bf16.mxu0 %v1807
        %2315 = vmatpush1.bf16.msra.mxu0 %v1806
        %2316 = vmatprep.subr.bf16.mxu0 %v1811
        %2317 = vmatpush1.bf16.msra.mxu0 %v1810
        %2318 = vmatprep.subr.bf16.mxu0 %v1815
        %2319 = vmatpush1.bf16.msra.mxu0 %v1814
        %2320 = vmatprep.subr.bf16.mxu0 %v1819
        %2321 = vmatpush1.bf16.msra.mxu0 %v1818
        %2322 = vmatprep.subr.bf16.mxu0 %v1823
        %2323 = vmatpush1.bf16.msra.mxu0 %v1822
        %2324 = vmatprep.subr.bf16.mxu0 %v1827
        %2325 = vmatpush1.bf16.msra.mxu0 %v1826
        %2326 = vmatprep.subr.bf16.mxu0 %v1831
        %2327 = vmatpush1.bf16.msra.mxu0 %v1830
        %2328 = vmatprep.subr.bf16.mxu0 %v1835
        %2329 = vmatpush1.bf16.msra.mxu0 %v1834
        %2330 = vmatprep.subr.bf16.mxu0 %v1839
        %2331 = vmatpush1.bf16.msra.mxu0 %v1838
        %2332 = vmatprep.subr.bf16.mxu0 %v1843
        %2333 = vmatpush1.bf16.msra.mxu0 %v1842
        %2334 = vmatprep.subr.bf16.mxu0 %v1847
        %2335 = vmatpush1.bf16.msra.mxu0 %v1846
        %2336 = vmatprep.subr.bf16.mxu0 %v1851
        %2337 = vmatpush1.bf16.msra.mxu0 %v1850
        %2338 = vmatprep.subr.bf16.mxu0 %v1855
        %2339 = vmatpush1.bf16.msra.mxu0 %v1854
        %2340 = vmatprep.subr.bf16.mxu0 %v1859
        %2341 = vmatpush1.bf16.msra.mxu0 %v1858
        %2342 = vmatprep.mubr.bf16.mxu0 %v745
        %2343 = vmatmul.mubr.bf16.gmra.mrb[0].mxu0 %v744
        %v2344 = vpop.f32.mrb[0].mxu0
        %v2345 = vadd.f32 %v1013, %v2344
        %v2346 = vpop.f32.mrb[0].mxu0
        %v2347 = vadd.f32 %v1017, %v2346
        %v2348 = vpop.f32.mrb[0].mxu0
        %v2349 = vpop.f32.mrb[0].mxu0
        %2350 = vdwg.mxu0
        %2351 = vmatprep.subr.bf16.mxu0 %v1863
        %2352 = vmatpush1.bf16.msra.mxu0 %v1862
        %2353 = vmatprep.subr.bf16.mxu0 %v1867
        %2354 = vmatpush1.bf16.msra.mxu0 %v1866
        %2355 = vmatprep.subr.bf16.mxu0 %v1871
        %2356 = vmatpush1.bf16.msra.mxu0 %v1870
        %2357 = vmatprep.subr.bf16.mxu0 %v1875
        %2358 = vmatpush1.bf16.msra.mxu0 %v1874
        %2359 = vmatprep.subr.bf16.mxu0 %v1879
        %2360 = vmatpush1.bf16.msra.mxu0 %v1878
        %2361 = vmatprep.subr.bf16.mxu0 %v1883
        %2362 = vmatpush1.bf16.msra.mxu0 %v1882
        %2363 = vmatprep.subr.bf16.mxu0 %v1887
        %2364 = vmatpush1.bf16.msra.mxu0 %v1886
        %2365 = vmatprep.subr.bf16.mxu0 %v1891
        %2366 = vmatpush1.bf16.msra.mxu0 %v1890
        %2367 = vmatprep.subr.bf16.mxu0 %v1895
        %2368 = vmatpush1.bf16.msra.mxu0 %v1894
        %2369 = vmatprep.subr.bf16.mxu0 %v1899
        %2370 = vmatpush1.bf16.msra.mxu0 %v1898
        %2371 = vmatprep.subr.bf16.mxu0 %v1903
        %2372 = vmatpush1.bf16.msra.mxu0 %v1902
        %2373 = vmatprep.subr.bf16.mxu0 %v1907
        %2374 = vmatpush1.bf16.msra.mxu0 %v1906
        %2375 = vmatprep.subr.bf16.mxu0 %v1911
        %2376 = vmatpush1.bf16.msra.mxu0 %v1910
        %2377 = vmatprep.subr.bf16.mxu0 %v1915
        %2378 = vmatpush1.bf16.msra.mxu0 %v1914
        %2379 = vmatprep.subr.bf16.mxu0 %v1919
        %2380 = vmatpush1.bf16.msra.mxu0 %v1918
        %2381 = vmatprep.subr.bf16.mxu0 %v1923
        %2382 = vmatpush1.bf16.msra.mxu0 %v1922
        %2383 = vmatprep.mubr.bf16.mxu0 %v747
        %2384 = vmatmul.mubr.bf16.gmra.mrb[0].mxu0 %v746
        %v2385 = vpop.f32.mrb[0].mxu0
        %v2386 = vadd.f32 %v2345, %v2385
        %v2387 = vpop.f32.mrb[0].mxu0
        %v2388 = vadd.f32 %v2347, %v2387
        %v2389 = vpop.f32.mrb[0].mxu0
        %v2390 = vpop.f32.mrb[0].mxu0
        %2391 = vdwg.mxu0
        %2392 = vmatprep.subr.bf16.mxu0 %v1927
        %2393 = vmatpush1.bf16.msra.mxu0 %v1926
        %2394 = vmatprep.subr.bf16.mxu0 %v1931
        %2395 = vmatpush1.bf16.msra.mxu0 %v1930
        %2396 = vmatprep.subr.bf16.mxu0 %v1935
        %2397 = vmatpush1.bf16.msra.mxu0 %v1934
        %2398 = vmatprep.subr.bf16.mxu0 %v1939
        %2399 = vmatpush1.bf16.msra.mxu0 %v1938
        %2400 = vmatprep.subr.bf16.mxu0 %v1943
        %2401 = vmatpush1.bf16.msra.mxu0 %v1942
        %2402 = vmatprep.subr.bf16.mxu0 %v1947
        %2403 = vmatpush1.bf16.msra.mxu0 %v1946
        %2404 = vmatprep.subr.bf16.mxu0 %v1951
        %2405 = vmatpush1.bf16.msra.mxu0 %v1950
        %2406 = vmatprep.subr.bf16.mxu0 %v1955
        %2407 = vmatpush1.bf16.msra.mxu0 %v1954
        %2408 = vmatprep.subr.bf16.mxu0 %v1959
        %2409 = vmatpush1.bf16.msra.mxu0 %v1958
        %2410 = vmatprep.subr.bf16.mxu0 %v1963
        %2411 = vmatpush1.bf16.msra.mxu0 %v1962
        %2412 = vmatprep.subr.bf16.mxu0 %v1967
        %2413 = vmatpush1.bf16.msra.mxu0 %v1966
        %2414 = vmatprep.subr.bf16.mxu0 %v1971
        %2415 = vmatpush1.bf16.msra.mxu0 %v1970
        %2416 = vmatprep.subr.bf16.mxu0 %v1975
        %2417 = vmatpush1.bf16.msra.mxu0 %v1974
        %2418 = vmatprep.subr.bf16.mxu0 %v1979
        %2419 = vmatpush1.bf16.msra.mxu0 %v1978
        %2420 = vmatprep.subr.bf16.mxu0 %v1983
        %2421 = vmatpush1.bf16.msra.mxu0 %v1982
        %2422 = vmatprep.subr.bf16.mxu0 %v1987
        %2423 = vmatpush1.bf16.msra.mxu0 %v1986
        %2424 = vmatprep.mubr.bf16.mxu0 %v749
        %2425 = vmatmul.mubr.bf16.gmra.mrb[0].mxu0 %v748
        %v2426 = vpop.f32.mrb[0].mxu0
        %v2427 = vadd.f32 %v2386, %v2426
        %v2428 = vpop.f32.mrb[0].mxu0
        %v2429 = vadd.f32 %v2388, %v2428
        %v2430 = vpop.f32.mrb[0].mxu0
        %v2431 = vpop.f32.mrb[0].mxu0
        %2432 = vdwg.mxu0
        %2433 = vmatprep.subr.bf16.mxu0 %v1991
        %2434 = vmatpush1.bf16.msra.mxu0 %v1990
        %2435 = vmatprep.subr.bf16.mxu0 %v1995
        %2436 = vmatpush1.bf16.msra.mxu0 %v1994
        %2437 = vmatprep.subr.bf16.mxu0 %v1999
        %2438 = vmatpush1.bf16.msra.mxu0 %v1998
        %2439 = vmatprep.subr.bf16.mxu0 %v2003
        %2440 = vmatpush1.bf16.msra.mxu0 %v2002
        %2441 = vmatprep.subr.bf16.mxu0 %v2007
        %2442 = vmatpush1.bf16.msra.mxu0 %v2006
        %2443 = vmatprep.subr.bf16.mxu0 %v2011
        %2444 = vmatpush1.bf16.msra.mxu0 %v2010
        %2445 = vmatprep.subr.bf16.mxu0 %v2015
        %2446 = vmatpush1.bf16.msra.mxu0 %v2014
        %2447 = vmatprep.subr.bf16.mxu0 %v2019
        %2448 = vmatpush1.bf16.msra.mxu0 %v2018
        %2449 = vmatprep.subr.bf16.mxu0 %v2023
        %2450 = vmatpush1.bf16.msra.mxu0 %v2022
        %2451 = vmatprep.subr.bf16.mxu0 %v2027
        %2452 = vmatpush1.bf16.msra.mxu0 %v2026
        %2453 = vmatprep.subr.bf16.mxu0 %v2031
        %2454 = vmatpush1.bf16.msra.mxu0 %v2030
        %2455 = vmatprep.subr.bf16.mxu0 %v2035
        %2456 = vmatpush1.bf16.msra.mxu0 %v2034
        %2457 = vmatprep.subr.bf16.mxu0 %v2039
        %2458 = vmatpush1.bf16.msra.mxu0 %v2038
        %2459 = vmatprep.subr.bf16.mxu0 %v2043
        %2460 = vmatpush1.bf16.msra.mxu0 %v2042
        %2461 = vmatprep.subr.bf16.mxu0 %v2047
        %2462 = vmatpush1.bf16.msra.mxu0 %v2046
        %2463 = vmatprep.subr.bf16.mxu0 %v2051
        %2464 = vmatpush1.bf16.msra.mxu0 %v2050
        %2465 = vmatprep.mubr.bf16.mxu0 %v751
        %2466 = vmatmul.mubr.bf16.gmra.mrb[0].mxu0 %v750
        %v2467 = vpop.f32.mrb[0].mxu0
        %v2468 = vadd.f32 %v2427, %v2467
        %v2469 = vpop.f32.mrb[0].mxu0
        %v2470 = vadd.f32 %v2429, %v2469
        %v2471 = vpop.f32.mrb[0].mxu0
        %v2472 = vpop.f32.mrb[0].mxu0
        %2473 = vdwg.mxu0
        %2474 = vmatprep.subr.bf16.mxu0 %v1801
        %2475 = vmatpush1.bf16.msra.mxu0 %v1800
        %2476 = vmatprep.subr.bf16.mxu0 %v1805
        %2477 = vmatpush1.bf16.msra.mxu0 %v1804
        %2478 = vmatprep.subr.bf16.mxu0 %v1809
        %2479 = vmatpush1.bf16.msra.mxu0 %v1808
        %2480 = vmatprep.subr.bf16.mxu0 %v1813
        %2481 = vmatpush1.bf16.msra.mxu0 %v1812
        %2482 = vmatprep.subr.bf16.mxu0 %v1817
        %2483 = vmatpush1.bf16.msra.mxu0 %v1816
        %2484 = vmatprep.subr.bf16.mxu0 %v1821
        %2485 = vmatpush1.bf16.msra.mxu0 %v1820
        %2486 = vmatprep.subr.bf16.mxu0 %v1825
        %2487 = vmatpush1.bf16.msra.mxu0 %v1824
        %2488 = vmatprep.subr.bf16.mxu0 %v1829
        %2489 = vmatpush1.bf16.msra.mxu0 %v1828
        %2490 = vmatprep.subr.bf16.mxu0 %v1833
        %2491 = vmatpush1.bf16.msra.mxu0 %v1832
        %2492 = vmatprep.subr.bf16.mxu0 %v1837
        %2493 = vmatpush1.bf16.msra.mxu0 %v1836
        %2494 = vmatprep.subr.bf16.mxu0 %v1841
        %2495 = vmatpush1.bf16.msra.mxu0 %v1840
        %2496 = vmatprep.subr.bf16.mxu0 %v1845
        %2497 = vmatpush1.bf16.msra.mxu0 %v1844
        %2498 = vmatprep.subr.bf16.mxu0 %v1849
        %2499 = vmatpush1.bf16.msra.mxu0 %v1848
        %2500 = vmatprep.subr.bf16.mxu0 %v1853
        %2501 = vmatpush1.bf16.msra.mxu0 %v1852
        %2502 = vmatprep.subr.bf16.mxu0 %v1857
        %2503 = vmatpush1.bf16.msra.mxu0 %v1856
        %2504 = vmatprep.subr.bf16.mxu0 %v1861
        %2505 = vmatpush1.bf16.msra.mxu0 %v1860
        %2506 = vmatprep.mubr.bf16.mxu0 %v745
        %2507 = vmatmul.mubr.bf16.gmra.mrb[0].mxu0 %v744
        %v2508 = vpop.f32.mrb[0].mxu0
        %v2509 = vadd.f32 %v1021, %v2508
        %v2510 = vpop.f32.mrb[0].mxu0
        %v2511 = vadd.f32 %v1025, %v2510
        %v2512 = vpop.f32.mrb[0].mxu0
        %v2513 = vpop.f32.mrb[0].mxu0
        %2514 = vdwg.mxu0
        %2515 = vmatprep.subr.bf16.mxu0 %v1865
        %2516 = vmatpush1.bf16.msra.mxu0 %v1864
        %2517 = vmatprep.subr.bf16.mxu0 %v1869
        %2518 = vmatpush1.bf16.msra.mxu0 %v1868
        %2519 = vmatprep.subr.bf16.mxu0 %v1873
        %2520 = vmatpush1.bf16.msra.mxu0 %v1872
        %2521 = vmatprep.subr.bf16.mxu0 %v1877
        %2522 = vmatpush1.bf16.msra.mxu0 %v1876
        %2523 = vmatprep.subr.bf16.mxu0 %v1881
        %2524 = vmatpush1.bf16.msra.mxu0 %v1880
        %2525 = vmatprep.subr.bf16.mxu0 %v1885
        %2526 = vmatpush1.bf16.msra.mxu0 %v1884
        %2527 = vmatprep.subr.bf16.mxu0 %v1889
        %2528 = vmatpush1.bf16.msra.mxu0 %v1888
        %2529 = vmatprep.subr.bf16.mxu0 %v1893
        %2530 = vmatpush1.bf16.msra.mxu0 %v1892
        %2531 = vmatprep.subr.bf16.mxu0 %v1897
        %2532 = vmatpush1.bf16.msra.mxu0 %v1896
        %2533 = vmatprep.subr.bf16.mxu0 %v1901
        %2534 = vmatpush1.bf16.msra.mxu0 %v1900
        %2535 = vmatprep.subr.bf16.mxu0 %v1905
        %2536 = vmatpush1.bf16.msra.mxu0 %v1904
        %2537 = vmatprep.subr.bf16.mxu0 %v1909
        %2538 = vmatpush1.bf16.msra.mxu0 %v1908
        %2539 = vmatprep.subr.bf16.mxu0 %v1913
        %2540 = vmatpush1.bf16.msra.mxu0 %v1912
        %2541 = vmatprep.subr.bf16.mxu0 %v1917
        %2542 = vmatpush1.bf16.msra.mxu0 %v1916
        %2543 = vmatprep.subr.bf16.mxu0 %v1921
        %2544 = vmatpush1.bf16.msra.mxu0 %v1920
        %2545 = vmatprep.subr.bf16.mxu0 %v1925
        %2546 = vmatpush1.bf16.msra.mxu0 %v1924
        %2547 = vmatprep.mubr.bf16.mxu0 %v747
        %2548 = vmatmul.mubr.bf16.gmra.mrb[0].mxu0 %v746
        %v2549 = vpop.f32.mrb[0].mxu0
        %v2550 = vadd.f32 %v2509, %v2549
        %v2551 = vpop.f32.mrb[0].mxu0
        %v2552 = vadd.f32 %v2511, %v2551
        %v2553 = vpop.f32.mrb[0].mxu0
        %v2554 = vpop.f32.mrb[0].mxu0
        %2555 = vdwg.mxu0
        %2556 = vmatprep.subr.bf16.mxu0 %v1929
        %2557 = vmatpush1.bf16.msra.mxu0 %v1928
        %2558 = vmatprep.subr.bf16.mxu0 %v1933
        %2559 = vmatpush1.bf16.msra.mxu0 %v1932
        %2560 = vmatprep.subr.bf16.mxu0 %v1937
        %2561 = vmatpush1.bf16.msra.mxu0 %v1936
        %2562 = vmatprep.subr.bf16.mxu0 %v1941
        %2563 = vmatpush1.bf16.msra.mxu0 %v1940
        %2564 = vmatprep.subr.bf16.mxu0 %v1945
        %2565 = vmatpush1.bf16.msra.mxu0 %v1944
        %2566 = vmatprep.subr.bf16.mxu0 %v1949
        %2567 = vmatpush1.bf16.msra.mxu0 %v1948
        %2568 = vmatprep.subr.bf16.mxu0 %v1953
        %2569 = vmatpush1.bf16.msra.mxu0 %v1952
        %2570 = vmatprep.subr.bf16.mxu0 %v1957
        %2571 = vmatpush1.bf16.msra.mxu0 %v1956
        %2572 = vmatprep.subr.bf16.mxu0 %v1961
        %2573 = vmatpush1.bf16.msra.mxu0 %v1960
        %2574 = vmatprep.subr.bf16.mxu0 %v1965
        %2575 = vmatpush1.bf16.msra.mxu0 %v1964
        %2576 = vmatprep.subr.bf16.mxu0 %v1969
        %2577 = vmatpush1.bf16.msra.mxu0 %v1968
        %2578 = vmatprep.subr.bf16.mxu0 %v1973
        %2579 = vmatpush1.bf16.msra.mxu0 %v1972
        %2580 = vmatprep.subr.bf16.mxu0 %v1977
        %2581 = vmatpush1.bf16.msra.mxu0 %v1976
        %2582 = vmatprep.subr.bf16.mxu0 %v1981
        %2583 = vmatpush1.bf16.msra.mxu0 %v1980
        %2584 = vmatprep.subr.bf16.mxu0 %v1985
        %2585 = vmatpush1.bf16.msra.mxu0 %v1984
        %2586 = vmatprep.subr.bf16.mxu0 %v1989
        %2587 = vmatpush1.bf16.msra.mxu0 %v1988
        %2588 = vmatprep.mubr.bf16.mxu0 %v749
        %2589 = vmatmul.mubr.bf16.gmra.mrb[0].mxu0 %v748
        %v2590 = vpop.f32.mrb[0].mxu0
        %v2591 = vadd.f32 %v2550, %v2590
        %v2592 = vpop.f32.mrb[0].mxu0
        %v2593 = vadd.f32 %v2552, %v2592
        %v2594 = vpop.f32.mrb[0].mxu0
        %v2595 = vpop.f32.mrb[0].mxu0
        %2596 = vdwg.mxu0
        %2597 = vmatprep.subr.bf16.mxu0 %v1993
        %2598 = vmatpush1.bf16.msra.mxu0 %v1992
        %2599 = vmatprep.subr.bf16.mxu0 %v1997
        %2600 = vmatpush1.bf16.msra.mxu0 %v1996
        %2601 = vmatprep.subr.bf16.mxu0 %v2001
        %2602 = vmatpush1.bf16.msra.mxu0 %v2000
        %2603 = vmatprep.subr.bf16.mxu0 %v2005
        %2604 = vmatpush1.bf16.msra.mxu0 %v2004
        %2605 = vmatprep.subr.bf16.mxu0 %v2009
        %2606 = vmatpush1.bf16.msra.mxu0 %v2008
        %2607 = vmatprep.subr.bf16.mxu0 %v2013
        %2608 = vmatpush1.bf16.msra.mxu0 %v2012
        %2609 = vmatprep.subr.bf16.mxu0 %v2017
        %2610 = vmatpush1.bf16.msra.mxu0 %v2016
        %2611 = vmatprep.subr.bf16.mxu0 %v2021
        %2612 = vmatpush1.bf16.msra.mxu0 %v2020
        %2613 = vmatprep.subr.bf16.mxu0 %v2025
        %2614 = vmatpush1.bf16.msra.mxu0 %v2024
        %2615 = vmatprep.subr.bf16.mxu0 %v2029
        %2616 = vmatpush1.bf16.msra.mxu0 %v2028
        %2617 = vmatprep.subr.bf16.mxu0 %v2033
        %2618 = vmatpush1.bf16.msra.mxu0 %v2032
        %2619 = vmatprep.subr.bf16.mxu0 %v2037
        %2620 = vmatpush1.bf16.msra.mxu0 %v2036
        %2621 = vmatprep.subr.bf16.mxu0 %v2041
        %2622 = vmatpush1.bf16.msra.mxu0 %v2040
        %2623 = vmatprep.subr.bf16.mxu0 %v2045
        %2624 = vmatpush1.bf16.msra.mxu0 %v2044
        %2625 = vmatprep.subr.bf16.mxu0 %v2049
        %2626 = vmatpush1.bf16.msra.mxu0 %v2048
        %2627 = vmatprep.subr.bf16.mxu0 %v2053
        %2628 = vmatpush1.bf16.msra.mxu0 %v2052
        %2629 = vmatprep.mubr.bf16.mxu0 %v751
        %2630 = vmatmul.mubr.bf16.gmra.mrb[0].mxu0 %v750
        %v2631 = vpop.f32.mrb[0].mxu0
        %v2632 = vadd.f32 %v2591, %v2631
        %v2633 = vpop.f32.mrb[0].mxu0
        %v2634 = vadd.f32 %v2593, %v2633
        %v2635 = vpop.f32.mrb[0].mxu0
        %v2636 = vpop.f32.mrb[0].mxu0
        %2637 = vdwg.mxu0
        %v2638 = vmul.f32 %v2468, 0.2
        %v2639 = vmul.f32 %v2470, 0.2
        %v2640 = vmul.f32 %v2632, 0.2
        %v2641 = vmul.f32 %v2634, 0.2
        %v2642 = vmax.f32 %v2468, %v2638
        %v2643 = vmax.f32 %v2470, %v2639
        %v2644 = vmax.f32 %v2632, %v2640
        %v2645 = vmax.f32 %v2634, %v2641
        %v2646 = vpack.c.bf16 %v2642, %v2642
        %v2647 = vpack.c.bf16 %v2643, %v2643
        %v2648 = vpack.c.bf16 %v2644, %v2644
        %v2649 = vpack.c.bf16 %v2645, %v2645
        %v2650 = vld [vmem:[#allocation9] sm:$0xff]
        %v2651 = vld [vmem:[#allocation9 + $0x8] sm:$0xff]
        %v2652 = vld [vmem:[#allocation9 + $0x10] sm:$0xff]
        %v2653 = vld [vmem:[#allocation9 + $0x18] sm:$0xff]
        %v2654 = vld [vmem:[#allocation9 + $0x20] sm:$0xff]
        %v2655 = vld [vmem:[#allocation9 + $0x28] sm:$0xff]
        %v2656 = vld [vmem:[#allocation9 + $0x30] sm:$0xff]
        %v2657 = vld [vmem:[#allocation9 + $0x38] sm:$0xff]
        %v2658 = vld [vmem:[#allocation9 + $0x40] sm:$0xff]
        %v2659 = vld [vmem:[#allocation9 + $0x48] sm:$0xff]
        %v2660 = vld [vmem:[#allocation9 + $0x50] sm:$0xff]
        %v2661 = vld [vmem:[#allocation9 + $0x58] sm:$0xff]
        %v2662 = vld [vmem:[#allocation9 + $0x60] sm:$0xff]
        %v2663 = vld [vmem:[#allocation9 + $0x68] sm:$0xff]
        %v2664 = vld [vmem:[#allocation9 + $0x70] sm:$0xff]
        %v2665 = vld [vmem:[#allocation9 + $0x78] sm:$0xff]
        %v2666 = vld [vmem:[#allocation9 + $0x80] sm:$0xff]
        %v2667 = vld [vmem:[#allocation9 + $0x88] sm:$0xff]
        %v2668 = vld [vmem:[#allocation9 + $0x90] sm:$0xff]
        %v2669 = vld [vmem:[#allocation9 + $0x98] sm:$0xff]
        %v2670 = vld [vmem:[#allocation9 + $0xa0] sm:$0xff]
        %v2671 = vld [vmem:[#allocation9 + $0xa8] sm:$0xff]
        %v2672 = vld [vmem:[#allocation9 + $0xb0] sm:$0xff]
        %v2673 = vld [vmem:[#allocation9 + $0xb8] sm:$0xff]
        %v2674 = vld [vmem:[#allocation9 + $0xc0] sm:$0xff]
        %v2675 = vld [vmem:[#allocation9 + $0xc8] sm:$0xff]
        %v2676 = vld [vmem:[#allocation9 + $0xd0] sm:$0xff]
        %v2677 = vld [vmem:[#allocation9 + $0xd8] sm:$0xff]
        %v2678 = vld [vmem:[#allocation9 + $0xe0] sm:$0xff]
        %v2679 = vld [vmem:[#allocation9 + $0xe8] sm:$0xff]
        %v2680 = vld [vmem:[#allocation9 + $0xf0] sm:$0xff]
        %v2681 = vld [vmem:[#allocation9 + $0xf8] sm:$0xff]
        %v2682 = vld [vmem:[#allocation9 + $0x100] sm:$0xff]
        %v2683 = vld [vmem:[#allocation9 + $0x108] sm:$0xff]
        %v2684 = vld [vmem:[#allocation9 + $0x110] sm:$0xff]
        %v2685 = vld [vmem:[#allocation9 + $0x118] sm:$0xff]
        %v2686 = vld [vmem:[#allocation9 + $0x120] sm:$0xff]
        %v2687 = vld [vmem:[#allocation9 + $0x128] sm:$0xff]
        %v2688 = vld [vmem:[#allocation9 + $0x130] sm:$0xff]
        %v2689 = vld [vmem:[#allocation9 + $0x138] sm:$0xff]
        %v2690 = vld [vmem:[#allocation9 + $0x140] sm:$0xff]
        %v2691 = vld [vmem:[#allocation9 + $0x148] sm:$0xff]
        %v2692 = vld [vmem:[#allocation9 + $0x150] sm:$0xff]
        %v2693 = vld [vmem:[#allocation9 + $0x158] sm:$0xff]
        %v2694 = vld [vmem:[#allocation9 + $0x160] sm:$0xff]
        %v2695 = vld [vmem:[#allocation9 + $0x168] sm:$0xff]
        %v2696 = vld [vmem:[#allocation9 + $0x170] sm:$0xff]
        %v2697 = vld [vmem:[#allocation9 + $0x178] sm:$0xff]
        %v2698 = vld [vmem:[#allocation9 + $0x180] sm:$0xff]
        %v2699 = vld [vmem:[#allocation9 + $0x188] sm:$0xff]
        %v2700 = vld [vmem:[#allocation9 + $0x190] sm:$0xff]
        %v2701 = vld [vmem:[#allocation9 + $0x198] sm:$0xff]
        %v2702 = vld [vmem:[#allocation9 + $0x1a0] sm:$0xff]
        %v2703 = vld [vmem:[#allocation9 + $0x1a8] sm:$0xff]
        %v2704 = vld [vmem:[#allocation9 + $0x1b0] sm:$0xff]
        %v2705 = vld [vmem:[#allocation9 + $0x1b8] sm:$0xff]
        %v2706 = vld [vmem:[#allocation9 + $0x1c0] sm:$0xff]
        %v2707 = vld [vmem:[#allocation9 + $0x1c8] sm:$0xff]
        %v2708 = vld [vmem:[#allocation9 + $0x1d0] sm:$0xff]
        %v2709 = vld [vmem:[#allocation9 + $0x1d8] sm:$0xff]
        %v2710 = vld [vmem:[#allocation9 + $0x1e0] sm:$0xff]
        %v2711 = vld [vmem:[#allocation9 + $0x1e8] sm:$0xff]
        %v2712 = vld [vmem:[#allocation9 + $0x1f0] sm:$0xff]
        %v2713 = vld [vmem:[#allocation9 + $0x1f8] sm:$0xff]
        %v2714 = vld [vmem:[%s6] sm:$0x3]
        %v2716 = vlaneseq
        %v2717 = vshrl.u32 %v2716, 7
        %v2718 = vsub.s32 0, %v2717
        %v2719 = vrot.slane %v2714, %v2718
        %v2720 = vlaneseq
        %v2721 = vshrl.u32 %v2720, 7
        %v2722 = vsub.s32 1, %v2721
        %v2723 = vrot.slane %v2714, %v2722
        %v2790 = vunpack.c.l.b16 %v2650
        %v2791 = vunpack.c.h.b16 %v2650
        %v2792 = vunpack.c.l.b16 %v2651
        %v2793 = vunpack.c.h.b16 %v2651
        %v2794 = vunpack.c.l.b16 %v2652
        %v2795 = vunpack.c.h.b16 %v2652
        %v2796 = vunpack.c.l.b16 %v2653
        %v2797 = vunpack.c.h.b16 %v2653
        %v2798 = vunpack.c.l.b16 %v2654
        %v2799 = vunpack.c.h.b16 %v2654
        %v2800 = vunpack.c.l.b16 %v2655
        %v2801 = vunpack.c.h.b16 %v2655
        %v2802 = vunpack.c.l.b16 %v2656
        %v2803 = vunpack.c.h.b16 %v2656
        %v2804 = vunpack.c.l.b16 %v2657
        %v2805 = vunpack.c.h.b16 %v2657
        %v2806 = vunpack.c.l.b16 %v2658
        %v2807 = vunpack.c.h.b16 %v2658
        %v2808 = vunpack.c.l.b16 %v2659
        %v2809 = vunpack.c.h.b16 %v2659
        %v2810 = vunpack.c.l.b16 %v2660
        %v2811 = vunpack.c.h.b16 %v2660
        %v2812 = vunpack.c.l.b16 %v2661
        %v2813 = vunpack.c.h.b16 %v2661
        %v2814 = vunpack.c.l.b16 %v2662
        %v2815 = vunpack.c.h.b16 %v2662
        %v2816 = vunpack.c.l.b16 %v2663
        %v2817 = vunpack.c.h.b16 %v2663
        %v2818 = vunpack.c.l.b16 %v2664
        %v2819 = vunpack.c.h.b16 %v2664
        %v2820 = vunpack.c.l.b16 %v2665
        %v2821 = vunpack.c.h.b16 %v2665
        %v2822 = vunpack.c.l.b16 %v2666
        %v2823 = vunpack.c.h.b16 %v2666
        %v2824 = vunpack.c.l.b16 %v2667
        %v2825 = vunpack.c.h.b16 %v2667
        %v2826 = vunpack.c.l.b16 %v2668
        %v2827 = vunpack.c.h.b16 %v2668
        %v2828 = vunpack.c.l.b16 %v2669
        %v2829 = vunpack.c.h.b16 %v2669
        %v2830 = vunpack.c.l.b16 %v2670
        %v2831 = vunpack.c.h.b16 %v2670
        %v2832 = vunpack.c.l.b16 %v2671
        %v2833 = vunpack.c.h.b16 %v2671
        %v2834 = vunpack.c.l.b16 %v2672
        %v2835 = vunpack.c.h.b16 %v2672
        %v2836 = vunpack.c.l.b16 %v2673
        %v2837 = vunpack.c.h.b16 %v2673
        %v2838 = vunpack.c.l.b16 %v2674
        %v2839 = vunpack.c.h.b16 %v2674
        %v2840 = vunpack.c.l.b16 %v2675
        %v2841 = vunpack.c.h.b16 %v2675
        %v2842 = vunpack.c.l.b16 %v2676
        %v2843 = vunpack.c.h.b16 %v2676
        %v2844 = vunpack.c.l.b16 %v2677
        %v2845 = vunpack.c.h.b16 %v2677
        %v2846 = vunpack.c.l.b16 %v2678
        %v2847 = vunpack.c.h.b16 %v2678
        %v2848 = vunpack.c.l.b16 %v2679
        %v2849 = vunpack.c.h.b16 %v2679
        %v2850 = vunpack.c.l.b16 %v2680
        %v2851 = vunpack.c.h.b16 %v2680
        %v2852 = vunpack.c.l.b16 %v2681
        %v2853 = vunpack.c.h.b16 %v2681
        %v2854 = vunpack.c.l.b16 %v2682
        %v2855 = vunpack.c.h.b16 %v2682
        %v2856 = vunpack.c.l.b16 %v2683
        %v2857 = vunpack.c.h.b16 %v2683
        %v2858 = vunpack.c.l.b16 %v2684
        %v2859 = vunpack.c.h.b16 %v2684
        %v2860 = vunpack.c.l.b16 %v2685
        %v2861 = vunpack.c.h.b16 %v2685
        %v2862 = vunpack.c.l.b16 %v2686
        %v2863 = vunpack.c.h.b16 %v2686
        %v2864 = vunpack.c.l.b16 %v2687
        %v2865 = vunpack.c.h.b16 %v2687
        %v2866 = vunpack.c.l.b16 %v2688
        %v2867 = vunpack.c.h.b16 %v2688
        %v2868 = vunpack.c.l.b16 %v2689
        %v2869 = vunpack.c.h.b16 %v2689
        %v2870 = vunpack.c.l.b16 %v2690
        %v2871 = vunpack.c.h.b16 %v2690
        %v2872 = vunpack.c.l.b16 %v2691
        %v2873 = vunpack.c.h.b16 %v2691
        %v2874 = vunpack.c.l.b16 %v2692
        %v2875 = vunpack.c.h.b16 %v2692
        %v2876 = vunpack.c.l.b16 %v2693
        %v2877 = vunpack.c.h.b16 %v2693
        %v2878 = vunpack.c.l.b16 %v2694
        %v2879 = vunpack.c.h.b16 %v2694
        %v2880 = vunpack.c.l.b16 %v2695
        %v2881 = vunpack.c.h.b16 %v2695
        %v2882 = vunpack.c.l.b16 %v2696
        %v2883 = vunpack.c.h.b16 %v2696
        %v2884 = vunpack.c.l.b16 %v2697
        %v2885 = vunpack.c.h.b16 %v2697
        %v2886 = vunpack.c.l.b16 %v2698
        %v2887 = vunpack.c.h.b16 %v2698
        %v2888 = vunpack.c.l.b16 %v2699
        %v2889 = vunpack.c.h.b16 %v2699
        %v2890 = vunpack.c.l.b16 %v2700
        %v2891 = vunpack.c.h.b16 %v2700
        %v2892 = vunpack.c.l.b16 %v2701
        %v2893 = vunpack.c.h.b16 %v2701
        %v2894 = vunpack.c.l.b16 %v2702
        %v2895 = vunpack.c.h.b16 %v2702
        %v2896 = vunpack.c.l.b16 %v2703
        %v2897 = vunpack.c.h.b16 %v2703
        %v2898 = vunpack.c.l.b16 %v2704
        %v2899 = vunpack.c.h.b16 %v2704
        %v2900 = vunpack.c.l.b16 %v2705
        %v2901 = vunpack.c.h.b16 %v2705
        %v2902 = vunpack.c.l.b16 %v2706
        %v2903 = vunpack.c.h.b16 %v2706
        %v2904 = vunpack.c.l.b16 %v2707
        %v2905 = vunpack.c.h.b16 %v2707
        %v2906 = vunpack.c.l.b16 %v2708
        %v2907 = vunpack.c.h.b16 %v2708
        %v2908 = vunpack.c.l.b16 %v2709
        %v2909 = vunpack.c.h.b16 %v2709
        %v2910 = vunpack.c.l.b16 %v2710
        %v2911 = vunpack.c.h.b16 %v2710
        %v2912 = vunpack.c.l.b16 %v2711
        %v2913 = vunpack.c.h.b16 %v2711
        %v2914 = vunpack.c.l.b16 %v2712
        %v2915 = vunpack.c.h.b16 %v2712
        %v2916 = vunpack.c.l.b16 %v2713
        %v2917 = vunpack.c.h.b16 %v2713
        %v2918 = vpack.c.b16 %v2792, %v2790
        %v2919 = vpack.c.b16 %v2793, %v2791
        %v2920 = vpack.c.b16 %v2796, %v2794
        %v2921 = vpack.c.b16 %v2797, %v2795
        %v2922 = vpack.c.b16 %v2800, %v2798
        %v2923 = vpack.c.b16 %v2801, %v2799
        %v2924 = vpack.c.b16 %v2804, %v2802
        %v2925 = vpack.c.b16 %v2805, %v2803
        %v2926 = vpack.c.b16 %v2808, %v2806
        %v2927 = vpack.c.b16 %v2809, %v2807
        %v2928 = vpack.c.b16 %v2812, %v2810
        %v2929 = vpack.c.b16 %v2813, %v2811
        %v2930 = vpack.c.b16 %v2816, %v2814
        %v2931 = vpack.c.b16 %v2817, %v2815
        %v2932 = vpack.c.b16 %v2820, %v2818
        %v2933 = vpack.c.b16 %v2821, %v2819
        %v2934 = vpack.c.b16 %v2824, %v2822
        %v2935 = vpack.c.b16 %v2825, %v2823
        %v2936 = vpack.c.b16 %v2828, %v2826
        %v2937 = vpack.c.b16 %v2829, %v2827
        %v2938 = vpack.c.b16 %v2832, %v2830
        %v2939 = vpack.c.b16 %v2833, %v2831
        %v2940 = vpack.c.b16 %v2836, %v2834
        %v2941 = vpack.c.b16 %v2837, %v2835
        %v2942 = vpack.c.b16 %v2840, %v2838
        %v2943 = vpack.c.b16 %v2841, %v2839
        %v2944 = vpack.c.b16 %v2844, %v2842
        %v2945 = vpack.c.b16 %v2845, %v2843
        %v2946 = vpack.c.b16 %v2848, %v2846
        %v2947 = vpack.c.b16 %v2849, %v2847
        %v2948 = vpack.c.b16 %v2852, %v2850
        %v2949 = vpack.c.b16 %v2853, %v2851
        %v2950 = vpack.c.b16 %v2856, %v2854
        %v2951 = vpack.c.b16 %v2857, %v2855
        %v2952 = vpack.c.b16 %v2860, %v2858
        %v2953 = vpack.c.b16 %v2861, %v2859
        %v2954 = vpack.c.b16 %v2864, %v2862
        %v2955 = vpack.c.b16 %v2865, %v2863
        %v2956 = vpack.c.b16 %v2868, %v2866
        %v2957 = vpack.c.b16 %v2869, %v2867
        %v2958 = vpack.c.b16 %v2872, %v2870
        %v2959 = vpack.c.b16 %v2873, %v2871
        %v2960 = vpack.c.b16 %v2876, %v2874
        %v2961 = vpack.c.b16 %v2877, %v2875
        %v2962 = vpack.c.b16 %v2880, %v2878
        %v2963 = vpack.c.b16 %v2881, %v2879
        %v2964 = vpack.c.b16 %v2884, %v2882
        %v2965 = vpack.c.b16 %v2885, %v2883
        %v2966 = vpack.c.b16 %v2888, %v2886
        %v2967 = vpack.c.b16 %v2889, %v2887
        %v2968 = vpack.c.b16 %v2892, %v2890
        %v2969 = vpack.c.b16 %v2893, %v2891
        %v2970 = vpack.c.b16 %v2896, %v2894
        %v2971 = vpack.c.b16 %v2897, %v2895
        %v2972 = vpack.c.b16 %v2900, %v2898
        %v2973 = vpack.c.b16 %v2901, %v2899
        %v2974 = vpack.c.b16 %v2904, %v2902
        %v2975 = vpack.c.b16 %v2905, %v2903
        %v2976 = vpack.c.b16 %v2908, %v2906
        %v2977 = vpack.c.b16 %v2909, %v2907
        %v2978 = vpack.c.b16 %v2912, %v2910
        %v2979 = vpack.c.b16 %v2913, %v2911
        %v2980 = vpack.c.b16 %v2916, %v2914
        %v2981 = vpack.c.b16 %v2917, %v2915
        %3046 = vmatprep.subr.bf16.mxu0 %v2919
        %3047 = vmatpush1.bf16.msra.mxu0 %v2918
        %3048 = vmatprep.subr.bf16.mxu0 %v2921
        %3049 = vmatpush1.bf16.msra.mxu0 %v2920
        %3050 = vmatprep.subr.bf16.mxu0 %v2923
        %3051 = vmatpush1.bf16.msra.mxu0 %v2922
        %3052 = vmatprep.subr.bf16.mxu0 %v2925
        %3053 = vmatpush1.bf16.msra.mxu0 %v2924
        %3054 = vmatprep.subr.bf16.mxu0 %v2927
        %3055 = vmatpush1.bf16.msra.mxu0 %v2926
        %3056 = vmatprep.subr.bf16.mxu0 %v2929
        %3057 = vmatpush1.bf16.msra.mxu0 %v2928
        %3058 = vmatprep.subr.bf16.mxu0 %v2931
        %3059 = vmatpush1.bf16.msra.mxu0 %v2930
        %3060 = vmatprep.subr.bf16.mxu0 %v2933
        %3061 = vmatpush1.bf16.msra.mxu0 %v2932
        %3062 = vmatprep.subr.bf16.mxu0 %v2935
        %3063 = vmatpush1.bf16.msra.mxu0 %v2934
        %3064 = vmatprep.subr.bf16.mxu0 %v2937
        %3065 = vmatpush1.bf16.msra.mxu0 %v2936
        %3066 = vmatprep.subr.bf16.mxu0 %v2939
        %3067 = vmatpush1.bf16.msra.mxu0 %v2938
        %3068 = vmatprep.subr.bf16.mxu0 %v2941
        %3069 = vmatpush1.bf16.msra.mxu0 %v2940
        %3070 = vmatprep.subr.bf16.mxu0 %v2943
        %3071 = vmatpush1.bf16.msra.mxu0 %v2942
        %3072 = vmatprep.subr.bf16.mxu0 %v2945
        %3073 = vmatpush1.bf16.msra.mxu0 %v2944
        %3074 = vmatprep.subr.bf16.mxu0 %v2947
        %3075 = vmatpush1.bf16.msra.mxu0 %v2946
        %3076 = vmatprep.subr.bf16.mxu0 %v2949
        %3077 = vmatpush1.bf16.msra.mxu0 %v2948
        %3078 = vmatprep.mubr.bf16.mxu0 %v2647
        %3079 = vmatmul.mubr.bf16.gmra.mrb[0].mxu0 %v2646
        %v3080 = vpop.f32.mrb[0].mxu0
        %v3081 = vadd.f32 %v2719, %v3080
        %v3082 = vpop.f32.mrb[0].mxu0
        %v3083 = vadd.f32 %v2723, %v3082
        %v3084 = vpop.f32.mrb[0].mxu0
        %v3085 = vpop.f32.mrb[0].mxu0
        %3086 = vdwg.mxu0
        %3087 = vmatprep.subr.bf16.mxu0 %v2951
        %3088 = vmatpush1.bf16.msra.mxu0 %v2950
        %3089 = vmatprep.subr.bf16.mxu0 %v2953
        %3090 = vmatpush1.bf16.msra.mxu0 %v2952
        %3091 = vmatprep.subr.bf16.mxu0 %v2955
        %3092 = vmatpush1.bf16.msra.mxu0 %v2954
        %3093 = vmatprep.subr.bf16.mxu0 %v2957
        %3094 = vmatpush1.bf16.msra.mxu0 %v2956
        %3095 = vmatprep.subr.bf16.mxu0 %v2959
        %3096 = vmatpush1.bf16.msra.mxu0 %v2958
        %3097 = vmatprep.subr.bf16.mxu0 %v2961
        %3098 = vmatpush1.bf16.msra.mxu0 %v2960
        %3099 = vmatprep.subr.bf16.mxu0 %v2963
        %3100 = vmatpush1.bf16.msra.mxu0 %v2962
        %3101 = vmatprep.subr.bf16.mxu0 %v2965
        %3102 = vmatpush1.bf16.msra.mxu0 %v2964
        %3103 = vmatprep.subr.bf16.mxu0 %v2967
        %3104 = vmatpush1.bf16.msra.mxu0 %v2966
        %3105 = vmatprep.subr.bf16.mxu0 %v2969
        %3106 = vmatpush1.bf16.msra.mxu0 %v2968
        %3107 = vmatprep.subr.bf16.mxu0 %v2971
        %3108 = vmatpush1.bf16.msra.mxu0 %v2970
        %3109 = vmatprep.subr.bf16.mxu0 %v2973
        %3110 = vmatpush1.bf16.msra.mxu0 %v2972
        %3111 = vmatprep.subr.bf16.mxu0 %v2975
        %3112 = vmatpush1.bf16.msra.mxu0 %v2974
        %3113 = vmatprep.subr.bf16.mxu0 %v2977
        %3114 = vmatpush1.bf16.msra.mxu0 %v2976
        %3115 = vmatprep.subr.bf16.mxu0 %v2979
        %3116 = vmatpush1.bf16.msra.mxu0 %v2978
        %3117 = vmatprep.subr.bf16.mxu0 %v2981
        %3118 = vmatpush1.bf16.msra.mxu0 %v2980
        %3119 = vmatprep.mubr.bf16.mxu0 %v2649
        %3120 = vmatmul.mubr.bf16.gmra.mrb[0].mxu0 %v2648
        %v3121 = vpop.f32.mrb[0].mxu0
        %v3122 = vadd.f32 %v3081, %v3121
        %v3123 = vpop.f32.mrb[0].mxu0
        %v3124 = vadd.f32 %v3083, %v3123
        %v3125 = vpop.f32.mrb[0].mxu0
        %v3126 = vpop.f32.mrb[0].mxu0
        %3127 = vdwg.mxu0
        %v3128 = vmul.f32 %v3122, 0.2
        %v3129 = vmul.f32 %v3124, 0.2
        %v3130 = vmax.f32 %v3122, %v3128
        %v3131 = vmax.f32 %v3124, %v3129
        %v3132 = vpack.c.bf16 %v3130, %v3130
        %v3133 = vpack.c.bf16 %v3131, %v3131
        %v3134 = vld [vmem:[#allocation10] sm:$0xf]
        %v3135 = vld [vmem:[#allocation10 + $0x4] sm:$0xf]
        %v3136 = vld [vmem:[#allocation10 + $0x8] sm:$0xf]
        %v3137 = vld [vmem:[#allocation10 + $0xc] sm:$0xf]
        %v3138 = vld [vmem:[#allocation10 + $0x10] sm:$0xf]
        %v3139 = vld [vmem:[#allocation10 + $0x14] sm:$0xf]
        %v3140 = vld [vmem:[#allocation10 + $0x18] sm:$0xf]
        %v3141 = vld [vmem:[#allocation10 + $0x1c] sm:$0xf]
        %v3142 = vld [vmem:[#allocation10 + $0x20] sm:$0xf]
        %v3143 = vld [vmem:[#allocation10 + $0x24] sm:$0xf]
        %v3144 = vld [vmem:[#allocation10 + $0x28] sm:$0xf]
        %v3145 = vld [vmem:[#allocation10 + $0x2c] sm:$0xf]
        %v3146 = vld [vmem:[#allocation10 + $0x30] sm:$0xf]
        %v3147 = vld [vmem:[#allocation10 + $0x34] sm:$0xf]
        %v3148 = vld [vmem:[#allocation10 + $0x38] sm:$0xf]
        %v3149 = vld [vmem:[#allocation10 + $0x3c] sm:$0xf]
        %v3150 = vld [vmem:[#allocation10 + $0x40] sm:$0xf]
        %v3151 = vld [vmem:[#allocation10 + $0x44] sm:$0xf]
        %v3152 = vld [vmem:[#allocation10 + $0x48] sm:$0xf]
        %v3153 = vld [vmem:[#allocation10 + $0x4c] sm:$0xf]
        %v3154 = vld [vmem:[#allocation10 + $0x50] sm:$0xf]
        %v3155 = vld [vmem:[#allocation10 + $0x54] sm:$0xf]
        %v3156 = vld [vmem:[#allocation10 + $0x58] sm:$0xf]
        %v3157 = vld [vmem:[#allocation10 + $0x5c] sm:$0xf]
        %v3158 = vld [vmem:[#allocation10 + $0x60] sm:$0xf]
        %v3159 = vld [vmem:[#allocation10 + $0x64] sm:$0xf]
        %v3160 = vld [vmem:[#allocation10 + $0x68] sm:$0xf]
        %v3161 = vld [vmem:[#allocation10 + $0x6c] sm:$0xf]
        %v3162 = vld [vmem:[#allocation10 + $0x70] sm:$0xf]
        %v3163 = vld [vmem:[#allocation10 + $0x74] sm:$0xf]
        %v3164 = vld [vmem:[#allocation10 + $0x78] sm:$0xf]
        %v3165 = vld [vmem:[#allocation10 + $0x7c] sm:$0xf]
        %v3166 = vld [vmem:[%s8] sm:$0x1]
        %v3168 = vlaneseq
        %v3169 = vshrl.u32 %v3168, 7
        %v3170 = vsub.s32 0, %v3169
        %v3171 = vrot.slane %v3166, %v3170
        %v3205 = vunpack.c.l.b16 %v3134
        %v3206 = vunpack.c.l.b16 %v3135
        %v3207 = vunpack.c.l.b16 %v3136
        %v3208 = vunpack.c.l.b16 %v3137
        %v3209 = vunpack.c.l.b16 %v3138
        %v3210 = vunpack.c.l.b16 %v3139
        %v3211 = vunpack.c.l.b16 %v3140
        %v3212 = vunpack.c.l.b16 %v3141
        %v3213 = vunpack.c.l.b16 %v3142
        %v3214 = vunpack.c.l.b16 %v3143
        %v3215 = vunpack.c.l.b16 %v3144
        %v3216 = vunpack.c.l.b16 %v3145
        %v3217 = vunpack.c.l.b16 %v3146
        %v3218 = vunpack.c.l.b16 %v3147
        %v3219 = vunpack.c.l.b16 %v3148
        %v3220 = vunpack.c.l.b16 %v3149
        %v3221 = vunpack.c.l.b16 %v3150
        %v3222 = vunpack.c.l.b16 %v3151
        %v3223 = vunpack.c.l.b16 %v3152
        %v3224 = vunpack.c.l.b16 %v3153
        %v3225 = vunpack.c.l.b16 %v3154
        %v3226 = vunpack.c.l.b16 %v3155
        %v3227 = vunpack.c.l.b16 %v3156
        %v3228 = vunpack.c.l.b16 %v3157
        %v3229 = vunpack.c.l.b16 %v3158
        %v3230 = vunpack.c.l.b16 %v3159
        %v3231 = vunpack.c.l.b16 %v3160
        %v3232 = vunpack.c.l.b16 %v3161
        %v3233 = vunpack.c.l.b16 %v3162
        %v3234 = vunpack.c.l.b16 %v3163
        %v3235 = vunpack.c.l.b16 %v3164
        %v3236 = vunpack.c.l.b16 %v3165
        %v3237 = vpack.c.b16 %v3206, %v3205
        %v3238 = vpack.c.b16 %v3208, %v3207
        %v3239 = vpack.c.b16 %v3210, %v3209
        %v3240 = vpack.c.b16 %v3212, %v3211
        %v3241 = vpack.c.b16 %v3214, %v3213
        %v3242 = vpack.c.b16 %v3216, %v3215
        %v3243 = vpack.c.b16 %v3218, %v3217
        %v3244 = vpack.c.b16 %v3220, %v3219
        %v3245 = vpack.c.b16 %v3222, %v3221
        %v3246 = vpack.c.b16 %v3224, %v3223
        %v3247 = vpack.c.b16 %v3226, %v3225
        %v3248 = vpack.c.b16 %v3228, %v3227
        %v3249 = vpack.c.b16 %v3230, %v3229
        %v3250 = vpack.c.b16 %v3232, %v3231
        %v3251 = vpack.c.b16 %v3234, %v3233
        %v3252 = vpack.c.b16 %v3236, %v3235
        %3269 = vmatprep.subr.bf16.mxu0 0
        %3270 = vmatpush1.bf16.msra.mxu0 %v3237
        %3271 = vmatprep.subr.bf16.mxu0 0
        %3272 = vmatpush1.bf16.msra.mxu0 %v3238
        %3273 = vmatprep.subr.bf16.mxu0 0
        %3274 = vmatpush1.bf16.msra.mxu0 %v3239
        %3275 = vmatprep.subr.bf16.mxu0 0
        %3276 = vmatpush1.bf16.msra.mxu0 %v3240
        %3277 = vmatprep.subr.bf16.mxu0 0
        %3278 = vmatpush1.bf16.msra.mxu0 %v3241
        %3279 = vmatprep.subr.bf16.mxu0 0
        %3280 = vmatpush1.bf16.msra.mxu0 %v3242
        %3281 = vmatprep.subr.bf16.mxu0 0
        %3282 = vmatpush1.bf16.msra.mxu0 %v3243
        %3283 = vmatprep.subr.bf16.mxu0 0
        %3284 = vmatpush1.bf16.msra.mxu0 %v3244
        %3285 = vmatprep.subr.bf16.mxu0 0
        %3286 = vmatpush1.bf16.msra.mxu0 %v3245
        %3287 = vmatprep.subr.bf16.mxu0 0
        %3288 = vmatpush1.bf16.msra.mxu0 %v3246
        %3289 = vmatprep.subr.bf16.mxu0 0
        %3290 = vmatpush1.bf16.msra.mxu0 %v3247
        %3291 = vmatprep.subr.bf16.mxu0 0
        %3292 = vmatpush1.bf16.msra.mxu0 %v3248
        %3293 = vmatprep.subr.bf16.mxu0 0
        %3294 = vmatpush1.bf16.msra.mxu0 %v3249
        %3295 = vmatprep.subr.bf16.mxu0 0
        %3296 = vmatpush1.bf16.msra.mxu0 %v3250
        %3297 = vmatprep.subr.bf16.mxu0 0
        %3298 = vmatpush1.bf16.msra.mxu0 %v3251
        %3299 = vmatprep.subr.bf16.mxu0 0
        %3300 = vmatpush1.bf16.msra.mxu0 %v3252
        %3301 = vmatprep.mubr.bf16.mxu0 %v3133
        %3302 = vmatmul.mubr.bf16.gmra.mrb[0].mxu0 %v3132
        %v3303 = vpop.f32.mrb[0].mxu0
        %v3304 = vadd.f32 %v3171, %v3303
        %v3305 = vpop.f32.mrb[0].mxu0
        %v3306 = vpop.f32.mrb[0].mxu0
        %v3307 = vpop.f32.mrb[0].mxu0
        %3308 = vdwg.mxu0
        %vm3309 = vcmask 7168
        %3310 = vst.msk [vmem:[%s418] sm:$0xff] %vm3309, %v3304
        %p3311 = scmp.lt.s32.totalorder %s26, 1
        %s3312 = scalar_select %p3311, %s26, 1
        %s3313 = smul.addr %s3312, 8
        %s3314 = scalar_lea.vmem %s9, %s3313
        // Predicated region
        $region81: #{tpu_custom_call.1} parent=55 // pred_check
          %p3315 = pneg %p238
        $region82: #{tpu_custom_call.1} parent=55 // pred_check_branch
          %3317 = sbr.rel (%p3315) target = $region84
        $region83: #{tpu_custom_call.1} parent=55 // pred_region
          _
        $region84: #{tpu_custom_call.1} parent=55 // pred_fallthru
          _
      $region56: #{tpu_custom_call.1} parent=5 // pred_fallthru
        _
      %p3318 = scmp.le.s32.totalorder 2, %s21
      // Predicated region
      $region85: #{tpu_custom_call.1} parent=5 // pred_check
        %p3319 = pneg %p3318
      $region86: #{tpu_custom_call.1} parent=5 // pred_check_branch
        %3321 = sbr.rel (%p3319) target = $region88
      $region87: #{tpu_custom_call.1} parent=5 // pred_region
        %s3322 = ssub.s32 %s21, 2
        // Predicated region
        $region89: #{tpu_custom_call.1} parent=87 // pred_check
          %p3323 = pneg %p244
        $region90: #{tpu_custom_call.1} parent=87 // pred_check_branch
          %3325 = sbr.rel (%p3323) target = $region92
        $region91: #{tpu_custom_call.1} parent=87 // pred_region
          %p3326 = scmp.lt.s32.totalorder %s27, 1
          %s3327 = scalar_select %p3326, %s27, 1
          %s3328 = smul.addr %s3327, 8
          %s3329 = scalar_lea.vmem %s9, %s3328
        $region92: #{tpu_custom_call.1} parent=87 // pred_fallthru
          _
      $region88: #{tpu_custom_call.1} parent=5 // pred_fallthru
        _
    $region6: #{tpu_custom_call.1} parent=1 // loop_footer
      %s25 = sadd.s32 1, %s21
    $region7: #{tpu_custom_call.1} parent=1 // loop_footer_branch
      %20 = sbr.rel target = $region3
    $region8: #{tpu_custom_call.1} parent=1 // loop_exit
      _
    %3330 = vsyncpa [#allocation3], 1
    %s3331 = scalar_lea.sflag [#allocation3], 1
    %3332 = vsyncpa %s3331, 1
    %3333 = vsyncpa [#allocation5], 1
    %3334 = vsyncpa [#allocation8], 1
    %3335 = vsyncpa [#allocation11], 1

// kernel: tpu_custom_call.1
$region0: #{tpu_custom_call.1}
  #allocation0 [shape = 'u32[]', space=smem, size = 0x4, offset = 0x4, fixed_abs, tag = 'smem constant byte address 0x4 - core index']
  #allocation1 [shape = 'u32[144,128]{1,0:T(1,128)}', space=vmem, size = 0x12000, scoped, tag = 'internal scratch']
  %s0 = inlined_call_operand.hbm [shape: f32[16,32], index: 0, kind: input, shape index: {}]
  %s1 = inlined_call_operand.hbm [shape: bf16[32,1024], index: 1, kind: input, shape index: {}]
  %s2 = inlined_call_operand.hbm [shape: f32[1,1024], index: 2, kind: input, shape index: {}]
  %s3 = inlined_call_operand.hbm [shape: bf16[1024,512], index: 3, kind: input, shape index: {}]
  %s4 = inlined_call_operand.vmem [shape: f32[1,512], index: 4, kind: input, shape index: {}]
  %s5 = inlined_call_operand.hbm [shape: bf16[512,256], index: 5, kind: input, shape index: {}]
  %s6 = inlined_call_operand.vmem [shape: f32[1,256], index: 6, kind: input, shape index: {}]
  %s7 = inlined_call_operand.hbm [shape: bf16[256,128], index: 7, kind: input, shape index: {}]
  %s8 = inlined_call_operand.vmem [shape: f32[1,128], index: 8, kind: input, shape index: {}]
  %s9 = inlined_call_operand.vmem [shape: f32[16,1], index: 9, kind: output, shape index: {}]
  %s10 = sld [smem:[#allocation0]]
  $region93: #{tpu_custom_call.1} parent=0
    _
  %s12 = ssub.s32 1, %s10
  %s13 = scalar_select 0, %s12, %s10
  $region1: #{tpu_custom_call.1} parent=0
    #allocation2 [shape = 'u8[8192]{0}', space=vmem, size = 0x2000, scoped, tag = 'input window, operand 0']
    #allocation3 [shape = 's32[2]{0}', space=sflag, size = 0x8, scoped, tag = 'scoped memory for tpu_custom_call.1']
    #allocation4 [shape = 'u8[65536]{0}', space=vmem, size = 0x10000, scoped, tag = 'input window, operand 1, single buffered']
    #allocation5 [shape = 's32[1]{0}', space=sflag, size = 0x4, scoped, tag = 'scoped memory for tpu_custom_call.1']
    #allocation6 [shape = 'u8[4096]{0}', space=vmem, size = 0x1000, scoped, tag = 'input window, operand 2, single buffered']
    #allocation7 [shape = 'u8[1048576]{0}', space=vmem, size = 0x100000, scoped, tag = 'input window, operand 3, single buffered']
    #allocation8 [shape = 's32[1]{0}', space=sflag, size = 0x4, scoped, tag = 'scoped memory for tpu_custom_call.1']
    #allocation9 [shape = 'u8[262144]{0}', space=vmem, size = 0x40000, scoped, tag = 'input window, operand 5, single buffered']
    #allocation10 [shape = 'u8[65536]{0}', space=vmem, size = 0x10000, scoped, tag = 'input window, operand 7, single buffered']
    #allocation11 [shape = 's32[1]{0}', space=sflag, size = 0x4, scoped, tag = 'scoped memory for tpu_custom_call.1']
    %14 = vsyncpa [#allocation3], 0
    %s15 = scalar_lea.sflag [#allocation3], 1
    %16 = vsyncpa %s15, 0
    %17 = vsyncpa [#allocation5], 0
    %18 = vsyncpa [#allocation8], 0
    %19 = vsyncpa [#allocation11], 0
    loop: start=0, step=1, limit=4
    $region2: #{tpu_custom_call.1} parent=1 // loop_pre_header
      _
    $region3: #{tpu_custom_call.1} parent=1 // loop_header
      %s21 = sphi 0, %s25
      %p22 = scmp.ge.s32.totalorder %s21, 4
      %s31 = sphi 0, %s33
      %s34 = sphi 0, %s31
      %s35 = sphi 0, %s34
      %s51 = sphi 0, %s35
      %s55 = sphi 0, %s55
      %s57 = sphi 0, %s55
      %s58 = sphi 0, %s57
      %s72 = sphi 0, %s58
      %s76 = sphi 0, %s76
      %s78 = sphi 0, %s76
      %s79 = sphi 0, %s78
      %s93 = sphi 0, %s79
      %s97 = sphi 0, %s97
      %s99 = sphi 0, %s97
      %s100 = sphi 0, %s99
      %s114 = sphi 0, %s100
      %s118 = sphi 0, %s118
      %s120 = sphi 0, %s118
      %s121 = sphi 0, %s120
      %s135 = sphi 0, %s121
      %s139 = sphi 0, %s139
      %s141 = sphi 0, %s139
      %s142 = sphi 0, %s141
      %s156 = sphi 0, %s142
      %s160 = sphi 0, %s160
      %s162 = sphi 0, %s160
      %s163 = sphi 0, %s162
      %s177 = sphi 0, %s163
      %s181 = sphi 0, %s181
      %s183 = sphi 0, %s181
      %s184 = sphi 0, %s183
      %s198 = sphi 0, %s184
      %s202 = sphi 0, %s202
      %s204 = sphi 0, %s202
      %s205 = sphi 0, %s204
      %s219 = sphi 0, %s205
      %s225 = sphi 0, %s227
      %s228 = sphi 0, %s225
      %s229 = sphi 0, %s228
      %s245 = sphi 0, %s229
    $region4: #{tpu_custom_call.1} parent=1 // loop_header_branch
      %24 = sbr.rel (%p22) target = $region8
    $region5: #{tpu_custom_call.1} parent=1 // loop_body
      %s26 = ssub.s32 %s21, 1
      %s27 = ssub.s32 %s21, 2
      %s28 = sadd.s32 %s21, 1
      %s29 = ssub.s32 %s21, %s28
      %p30 = scmp.eq.s32.totalorder %s29, 0
      %s32 = sadd.s32 %s31, 1
      %s33 = scalar_select %p30, %s31, %s32
      %p36 = pneg %p30
      %p37 = scmp.eq.s32.totalorder %s21, 1
      %p38 = por %p36, %p37
      %p39 = scmp.ne.s32.totalorder %s31, %s34
      %p40 = scmp.eq.s32.totalorder %s21, 0
      %p41 = por %p39, %p40
      %p42 = scmp.ne.s32.totalorder %s31, %s34
      %p43 = scmp.eq.s32.totalorder %s26, 1
      %p44 = por %p42, %p43
      %p45 = scmp.ne.s32.totalorder %s34, %s35
      %p46 = scmp.eq.s32.totalorder %s26, 0
      %p47 = por %p45, %p46
      %p48 = scmp.ne.s32.totalorder %s34, %s35
      %p49 = scmp.eq.s32.totalorder %s27, 1
      %p50 = por %p48, %p49
      %p52 = scmp.ne.s32.totalorder %s35, %s51
      %p53 = scmp.eq.s32.totalorder %s27, 0
      %p54 = por %p52, %p53
      %s56 = sadd.s32 %s55, 1
      %p59 = scmp.eq.s32.totalorder %s21, 1
      %p60 = scmp.ne.s32.totalorder %s55, %s57
      %p61 = scmp.eq.s32.totalorder %s21, 0
      %p62 = por %p60, %p61
      %p63 = scmp.ne.s32.totalorder %s55, %s57
      %p64 = scmp.eq.s32.totalorder %s26, 1
      %p65 = por %p63, %p64
      %p66 = scmp.ne.s32.totalorder %s57, %s58
      %p67 = scmp.eq.s32.totalorder %s26, 0
      %p68 = por %p66, %p67
      %p69 = scmp.ne.s32.totalorder %s57, %s58
      %p70 = scmp.eq.s32.totalorder %s27, 1
      %p71 = por %p69, %p70
      %p73 = scmp.ne.s32.totalorder %s58, %s72
      %p74 = scmp.eq.s32.totalorder %s27, 0
      %p75 = por %p73, %p74
      %s77 = sadd.s32 %s76, 1
      %p80 = scmp.eq.s32.totalorder %s21, 1
      %p81 = scmp.ne.s32.totalorder %s76, %s78
      %p82 = scmp.eq.s32.totalorder %s21, 0
      %p83 = por %p81, %p82
      %p84 = scmp.ne.s32.totalorder %s76, %s78
      %p85 = scmp.eq.s32.totalorder %s26, 1
      %p86 = por %p84, %p85
      %p87 = scmp.ne.s32.totalorder %s78, %s79
      %p88 = scmp.eq.s32.totalorder %s26, 0
      %p89 = por %p87, %p88
      %p90 = scmp.ne.s32.totalorder %s78, %s79
      %p91 = scmp.eq.s32.totalorder %s27, 1
      %p92 = por %p90, %p91
      %p94 = scmp.ne.s32.totalorder %s79, %s93
      %p95 = scmp.eq.s32.totalorder %s27, 0
      %p96 = por %p94, %p95
      %s98 = sadd.s32 %s97, 1
      %p101 = scmp.eq.s32.totalorder %s21, 1
      %p102 = scmp.ne.s32.totalorder %s97, %s99
      %p103 = scmp.eq.s32.totalorder %s21, 0
      %p104 = por %p102, %p103
      %p105 = scmp.ne.s32.totalorder %s97, %s99
      %p106 = scmp.eq.s32.totalorder %s26, 1
      %p107 = por %p105, %p106
      %p108 = scmp.ne.s32.totalorder %s99, %s100
      %p109 = scmp.eq.s32.totalorder %s26, 0
      %p110 = por %p108, %p109
      %p111 = scmp.ne.s32.totalorder %s99, %s100
      %p112 = scmp.eq.s32.totalorder %s27, 1
      %p113 = por %p111, %p112
      %p115 = scmp.ne.s32.totalorder %s100, %s114
      %p116 = scmp.eq.s32.totalorder %s27, 0
      %p117 = por %p115, %p116
      %s119 = sadd.s32 %s118, 1
      %p122 = scmp.eq.s32.totalorder %s21, 1
      %p123 = scmp.ne.s32.totalorder %s118, %s120
      %p124 = scmp.eq.s32.totalorder %s21, 0
      %p125 = por %p123, %p124
      %p126 = scmp.ne.s32.totalorder %s118, %s120
      %p127 = scmp.eq.s32.totalorder %s26, 1
      %p128 = por %p126, %p127
      %p129 = scmp.ne.s32.totalorder %s120, %s121
      %p130 = scmp.eq.s32.totalorder %s26, 0
      %p131 = por %p129, %p130
      %p132 = scmp.ne.s32.totalorder %s120, %s121
      %p133 = scmp.eq.s32.totalorder %s27, 1
      %p134 = por %p132, %p133
      %p136 = scmp.ne.s32.totalorder %s121, %s135
      %p137 = scmp.eq.s32.totalorder %s27, 0
      %p138 = por %p136, %p137
      %s140 = sadd.s32 %s139, 1
      %p143 = scmp.eq.s32.totalorder %s21, 1
      %p144 = scmp.ne.s32.totalorder %s139, %s141
      %p145 = scmp.eq.s32.totalorder %s21, 0
      %p146 = por %p144, %p145
      %p147 = scmp.ne.s32.totalorder %s139, %s141
      %p148 = scmp.eq.s32.totalorder %s26, 1
      %p149 = por %p147, %p148
      %p150 = scmp.ne.s32.totalorder %s141, %s142
      %p151 = scmp.eq.s32.totalorder %s26, 0
      %p152 = por %p150, %p151
      %p153 = scmp.ne.s32.totalorder %s141, %s142
      %p154 = scmp.eq.s32.totalorder %s27, 1
      %p155 = por %p153, %p154
      %p157 = scmp.ne.s32.totalorder %s142, %s156
      %p158 = scmp.eq.s32.totalorder %s27, 0
      %p159 = por %p157, %p158
      %s161 = sadd.s32 %s160, 1
      %p164 = scmp.eq.s32.totalorder %s21, 1
      %p165 = scmp.ne.s32.totalorder %s160, %s162
      %p166 = scmp.eq.s32.totalorder %s21, 0
      %p167 = por %p165, %p166
      %p168 = scmp.ne.s32.totalorder %s160, %s162
      %p169 = scmp.eq.s32.totalorder %s26, 1
      %p170 = por %p168, %p169
      %p171 = scmp.ne.s32.totalorder %s162, %s163
      %p172 = scmp.eq.s32.totalorder %s26, 0
      %p173 = por %p171, %p172
      %p174 = scmp.ne.s32.totalorder %s162, %s163
      %p175 = scmp.eq.s32.totalorder %s27, 1
      %p176 = por %p174, %p175
      %p178 = scmp.ne.s32.totalorder %s163, %s177
      %p179 = scmp.eq.s32.totalorder %s27, 0
      %p180 = por %p178, %p179
      %s182 = sadd.s32 %s181, 1
      %p185 = scmp.eq.s32.totalorder %s21, 1
      %p186 = scmp.ne.s32.totalorder %s181, %s183
      %p187 = scmp.eq.s32.totalorder %s21, 0
      %p188 = por %p186, %p187
      %p189 = scmp.ne.s32.totalorder %s181, %s183
      %p190 = scmp.eq.s32.totalorder %s26, 1
      %p191 = por %p189, %p190
      %p192 = scmp.ne.s32.totalorder %s183, %s184
      %p193 = scmp.eq.s32.totalorder %s26, 0
      %p194 = por %p192, %p193
      %p195 = scmp.ne.s32.totalorder %s183, %s184
      %p196 = scmp.eq.s32.totalorder %s27, 1
      %p197 = por %p195, %p196
      %p199 = scmp.ne.s32.totalorder %s184, %s198
      %p200 = scmp.eq.s32.totalorder %s27, 0
      %p201 = por %p199, %p200
      %s203 = sadd.s32 %s202, 1
      %p206 = scmp.eq.s32.totalorder %s21, 1
      %p207 = scmp.ne.s32.totalorder %s202, %s204
      %p208 = scmp.eq.s32.totalorder %s21, 0
      %p209 = por %p207, %p208
      %p210 = scmp.ne.s32.totalorder %s202, %s204
      %p211 = scmp.eq.s32.totalorder %s26, 1
      %p212 = por %p210, %p211
      %p213 = scmp.ne.s32.totalorder %s204, %s205
      %p214 = scmp.eq.s32.totalorder %s26, 0
      %p215 = por %p213, %p214
      %p216 = scmp.ne.s32.totalorder %s204, %s205
      %p217 = scmp.eq.s32.totalorder %s27, 1
      %p218 = por %p216, %p217
      %p220 = scmp.ne.s32.totalorder %s205, %s219
      %p221 = scmp.eq.s32.totalorder %s27, 0
      %p222 = por %p220, %p221
      %s223 = ssub.s32 %s21, %s28
      %p224 = scmp.eq.s32.totalorder %s223, 0
      %s226 = sadd.s32 %s225, 1
      %s227 = scalar_select %p224, %s225, %s226
      %p230 = pneg %p224
      %p231 = scmp.eq.s32.totalorder %s21, 1
      %p232 = por %p230, %p231
      %p233 = scmp.ne.s32.totalorder %s225, %s228
      %p234 = scmp.eq.s32.totalorder %s21, 0
      %p235 = por %p233, %p234
      %p236 = scmp.ne.s32.totalorder %s225, %s228
      %p237 = scmp.eq.s32.totalorder %s26, 1
      %p238 = por %p236, %p237
      %p239 = scmp.ne.s32.totalorder %s228, %s229
      %p240 = scmp.eq.s32.totalorder %s26, 0
      %p241 = por %p239, %p240
      %p242 = scmp.ne.s32.totalorder %s228, %s229
      %p243 = scmp.eq.s32.totalorder %s27, 1
      %p244 = por %p242, %p243
      %p246 = scmp.ne.s32.totalorder %s229, %s245
      %p247 = scmp.eq.s32.totalorder %s27, 0
      %p248 = por %p246, %p247
      %p249 = scmp.le.s32.totalorder 1, %s21
      %p250 = scmp.lt.s32.totalorder %s21, 3
      %p251 = pnand %p249, %p250
      %p252 = pneg %p251
      // Predicated region
      $region9: #{tpu_custom_call.1} parent=5 // pred_check
        _
      $region10: #{tpu_custom_call.1} parent=5 // pred_check_branch
        %254 = sbr.rel (%p251) target = $region12
      $region11: #{tpu_custom_call.1} parent=5 // pred_region
        %s255 = ssub.s32 %s21, 1
        // Predicated region
        $region13: #{tpu_custom_call.1} parent=11 // pred_check
          %p256 = pneg %p68
        $region14: #{tpu_custom_call.1} parent=11 // pred_check_branch
          %258 = sbr.rel (%p256) target = $region16
        $region15: #{tpu_custom_call.1} parent=11 // pred_region
          %s260 = ssub.s32 2048, 2048
          %261 = vsyncadd [#allocation5], %s260
          %s262 = sshll.u32 [#allocation4], 4
          %s263 = int_to_ptr.vmem [resolvable:$true] %s262
          %268 = dma.hbm_to_vmem [thread:$0]  %s1, 2048, %s263, [#allocation5], 512, 512, 32
        $region16: #{tpu_custom_call.1} parent=11 // pred_fallthru
          _
        // Predicated region
        $region17: #{tpu_custom_call.1} parent=11 // pred_check
          %p269 = pneg %p89
        $region18: #{tpu_custom_call.1} parent=11 // pred_check_branch
          %271 = sbr.rel (%p269) target = $region20
        $region19: #{tpu_custom_call.1} parent=11 // pred_region
          %s273 = ssub.s32 128, 128
          %274 = vsyncadd [#allocation5], %s273
          %s276 = sshll.u32 [#allocation6], 4
          %s277 = int_to_ptr.vmem [resolvable:$true] %s276
          %279 = dma.hbm_to_vmem [thread:$0]  %s2, 128, %s277, [#allocation5]
        $region20: #{tpu_custom_call.1} parent=11 // pred_fallthru
          _
        // Predicated region
        $region21: #{tpu_custom_call.1} parent=11 // pred_check
          %p280 = pneg %p110
        $region22: #{tpu_custom_call.1} parent=11 // pred_check_branch
          %282 = sbr.rel (%p280) target = $region24
        $region23: #{tpu_custom_call.1} parent=11 // pred_region
          %s284 = ssub.s32 32768, 32768
          %285 = vsyncadd [#allocation8], %s284
          %s286 = sshll.u32 [#allocation7], 4
          %s287 = int_to_ptr.vmem [resolvable:$true] %s286
          %292 = dma.hbm_to_vmem [thread:$0]  %s3, 32768, %s287, [#allocation8], 256, 256, 16
        $region24: #{tpu_custom_call.1} parent=11 // pred_fallthru
          _
        // Predicated region
        $region25: #{tpu_custom_call.1} parent=11 // pred_check
          %p293 = pneg %p131
        $region26: #{tpu_custom_call.1} parent=11 // pred_check_branch
          %295 = sbr.rel (%p293) target = $region28
        $region27: #{tpu_custom_call.1} parent=11 // pred_region
          _
        $region28: #{tpu_custom_call.1} parent=11 // pred_fallthru
          _
        // Predicated region
        $region29: #{tpu_custom_call.1} parent=11 // pred_check
          %p296 = pneg %p152
        $region30: #{tpu_custom_call.1} parent=11 // pred_check_branch
          %298 = sbr.rel (%p296) target = $region32
        $region31: #{tpu_custom_call.1} parent=11 // pred_region
          %s300 = ssub.s32 8192, 8192
          %301 = vsyncadd [#allocation8], %s300
          %s302 = sshll.u32 [#allocation9], 4
          %s303 = int_to_ptr.vmem [resolvable:$true] %s302
          %308 = dma.hbm_to_vmem [thread:$0]  %s5, 8192, %s303, [#allocation8], 128, 128, 8
        $region32: #{tpu_custom_call.1} parent=11 // pred_fallthru
          _
        // Predicated region
        $region33: #{tpu_custom_call.1} parent=11 // pred_check
          %p309 = pneg %p173
        $region34: #{tpu_custom_call.1} parent=11 // pred_check_branch
          %311 = sbr.rel (%p309) target = $region36
        $region35: #{tpu_custom_call.1} parent=11 // pred_region
          _
        $region36: #{tpu_custom_call.1} parent=11 // pred_fallthru
          _
        // Predicated region
        $region37: #{tpu_custom_call.1} parent=11 // pred_check
          %p312 = pneg %p194
        $region38: #{tpu_custom_call.1} parent=11 // pred_check_branch
          %314 = sbr.rel (%p312) target = $region40
        $region39: #{tpu_custom_call.1} parent=11 // pred_region
          %s316 = ssub.s32 2048, 2048
          %317 = vsyncadd [#allocation11], %s316
          %s318 = sshll.u32 [#allocation10], 4
          %s319 = int_to_ptr.vmem [resolvable:$true] %s318
          %324 = dma.hbm_to_vmem [thread:$0]  %s7, 2048, %s319, [#allocation11], 64, 64, 4
        $region40: #{tpu_custom_call.1} parent=11 // pred_fallthru
          _
        // Predicated region
        $region41: #{tpu_custom_call.1} parent=11 // pred_check
          %p325 = pneg %p215
        $region42: #{tpu_custom_call.1} parent=11 // pred_check_branch
          %327 = sbr.rel (%p325) target = $region44
        $region43: #{tpu_custom_call.1} parent=11 // pred_region
          _
        $region44: #{tpu_custom_call.1} parent=11 // pred_fallthru
          _
      $region12: #{tpu_custom_call.1} parent=5 // pred_fallthru
        _
      %p328 = scmp.lt.s32.totalorder %s21, 2
      // Predicated region
      $region45: #{tpu_custom_call.1} parent=5 // pred_check
        %p329 = pneg %p328
      $region46: #{tpu_custom_call.1} parent=5 // pred_check_branch
        %331 = sbr.rel (%p329) target = $region48
      $region47: #{tpu_custom_call.1} parent=5 // pred_region
        // Predicated region
        $region49: #{tpu_custom_call.1} parent=47 // pred_check
          %p332 = pneg %p41
        $region50: #{tpu_custom_call.1} parent=47 // pred_check_branch
          %334 = sbr.rel (%p332) target = $region52
        $region51: #{tpu_custom_call.1} parent=47 // pred_region
          %s335 = sand.u32 %s31, 1
          %s336 = scalar_lea.sflag [#allocation3], %s335
          %s337 = sand.u32 %s31, 1
          %s338 = smul.addr %s337, 8
          %s339 = scalar_lea.vmem [#allocation2], %s338
          %s341 = ssub.s32 128, 128
          %342 = vsyncadd %s336, %s341
          %s343 = smul.addr %s21, 128
          %s344 = scalar_lea.hbm %s0, %s343
          %s346 = sshll.u32 %s339, 4
          %s347 = int_to_ptr.vmem [resolvable:$true] %s346
          %349 = dma.hbm_to_vmem [thread:$0]  %s344, 128, %s347, %s336
        $region52: #{tpu_custom_call.1} parent=47 // pred_fallthru
          _
      $region48: #{tpu_custom_call.1} parent=5 // pred_fallthru
        _
      %p350 = scmp.le.s32.totalorder 1, %s21
      %p351 = scmp.lt.s32.totalorder %s21, 3
      %p352 = pnand %p350, %p351
      %p353 = pneg %p352
      // Predicated region
      $region53: #{tpu_custom_call.1} parent=5 // pred_check
        _
      $region54: #{tpu_custom_call.1} parent=5 // pred_check_branch
        %355 = sbr.rel (%p352) target = $region56
      $region55: #{tpu_custom_call.1} parent=5 // pred_region
        %s356 = ssub.s32 %s21, 1
        %s357 = sand.u32 %s34, 1
        %s358 = scalar_lea.sflag [#allocation3], %s357
        %s359 = sand.u32 %s34, 1
        %s360 = smul.addr %s359, 8
        %s361 = scalar_lea.vmem [#allocation2], %s360
        // Predicated region
        $region57: #{tpu_custom_call.1} parent=55 // pred_check
          %p362 = pneg %p47
        $region58: #{tpu_custom_call.1} parent=55 // pred_check_branch
          %364 = sbr.rel (%p362) target = $region60
        $region59: #{tpu_custom_call.1} parent=55 // pred_region
          %365 = dma.done %s358, 128
        $region60: #{tpu_custom_call.1} parent=55 // pred_fallthru
          _
        // Predicated region
        $region61: #{tpu_custom_call.1} parent=55 // pred_check
          %p366 = pneg %p68
        $region62: #{tpu_custom_call.1} parent=55 // pred_check_branch
          %368 = sbr.rel (%p366) target = $region64
        $region63: #{tpu_custom_call.1} parent=55 // pred_region
          %369 = dma.done [#allocation5], 2048
        $region64: #{tpu_custom_call.1} parent=55 // pred_fallthru
          _
        // Predicated region
        $region65: #{tpu_custom_call.1} parent=55 // pred_check
          %p370 = pneg %p89
        $region66: #{tpu_custom_call.1} parent=55 // pred_check_branch
          %372 = sbr.rel (%p370) target = $region68
        $region67: #{tpu_custom_call.1} parent=55 // pred_region
          %373 = dma.done [#allocation5], 128
        $region68: #{tpu_custom_call.1} parent=55 // pred_fallthru
          _
        // Predicated region
        $region69: #{tpu_custom_call.1} parent=55 // pred_check
          %p374 = pneg %p110
        $region70: #{tpu_custom_call.1} parent=55 // pred_check_branch
          %376 = sbr.rel (%p374) target = $region72
        $region71: #{tpu_custom_call.1} parent=55 // pred_region
          %377 = dma.done [#allocation8], 32768
        $region72: #{tpu_custom_call.1} parent=55 // pred_fallthru
          _
        // Predicated region
        $region73: #{tpu_custom_call.1} parent=55 // pred_check
          %p378 = pneg %p152
        $region74: #{tpu_custom_call.1} parent=55 // pred_check_branch
          %380 = sbr.rel (%p378) target = $region76
        $region75: #{tpu_custom_call.1} parent=55 // pred_region
          %381 = dma.done [#allocation8], 8192
        $region76: #{tpu_custom_call.1} parent=55 // pred_fallthru
          _
        // Predicated region
        $region77: #{tpu_custom_call.1} parent=55 // pred_check
          %p382 = pneg %p194
        $region78: #{tpu_custom_call.1} parent=55 // pred_check_branch
          %384 = sbr.rel (%p382) target = $region80
        $region79: #{tpu_custom_call.1} parent=55 // pred_region
          %385 = dma.done [#allocation11], 2048
        $region80: #{tpu_custom_call.1} parent=55 // pred_fallthru
          _
        %s386 = sand.u32 %s34, 1
        %s387 = scalar_lea.sflag [#allocation3], %s386
        %s388 = sand.u32 %s34, 1
        %s389 = smul.addr %s388, 8
        %s390 = scalar_lea.vmem [#allocation2], %s389
        %p391 = pneg %p47
        %p392 = pneg %p44
        %p393 = pneg %p68
        %p394 = pneg %p65
        %p395 = pneg %p89
        %p396 = pneg %p86
        %p397 = pneg %p110
        %p398 = pneg %p107
        %p399 = pneg %p131
        %p400 = pneg %p128
        %p401 = pneg %p152
        %p402 = pneg %p149
        %p403 = pneg %p173
        %p404 = pneg %p170
        %p405 = pneg %p194
        %p406 = pneg %p191
        %p407 = pneg %p215
        %p408 = pneg %p212
        %p409 = pneg %p241
        %p410 = pneg %p238
        %p411 = scmp.lt.s32.totalorder %s26, 1
        %s412 = scalar_select %p411, %s26, 1
        %s413 = smul.addr %s412, 8
        %s414 = scalar_lea.vmem %s9, %s413
        %p415 = scmp.lt.s32.totalorder %s26, 1
        %s416 = scalar_select %p415, %s26, 1
        %s417 = smul.addr %s416, 8
        %s418 = scalar_lea.vmem %s9, %s417
        %v420 = vld [vmem:[%s361] sm:$0xff]
        %v421 = vpack.c.bf16 %v420, %v420
        %v422 = vld [vmem:[#allocation4] sm:$0xff]
        %v423 = vld [vmem:[#allocation4 + $0x8] sm:$0xff]
        %v424 = vld [vmem:[#allocation4 + $0x10] sm:$0xff]
        %v425 = vld [vmem:[#allocation4 + $0x18] sm:$0xff]
        %v426 = vld [vmem:[#allocation4 + $0x20] sm:$0xff]
        %v427 = vld [vmem:[#allocation4 + $0x28] sm:$0xff]
        %v428 = vld [vmem:[#allocation4 + $0x30] sm:$0xff]
        %v429 = vld [vmem:[#allocation4 + $0x38] sm:$0xff]
        %v430 = vld [vmem:[#allocation4 + $0x40] sm:$0xff]
        %v431 = vld [vmem:[#allocation4 + $0x48] sm:$0xff]
        %v432 = vld [vmem:[#allocation4 + $0x50] sm:$0xff]
        %v433 = vld [vmem:[#allocation4 + $0x58] sm:$0xff]
        %v434 = vld [vmem:[#allocation4 + $0x60] sm:$0xff]
        %v435 = vld [vmem:[#allocation4 + $0x68] sm:$0xff]
        %v436 = vld [vmem:[#allocation4 + $0x70] sm:$0xff]
        %v437 = vld [vmem:[#allocation4 + $0x78] sm:$0xff]
        %v438 = vld [vmem:[#allocation6] sm:$0xff]
        %v440 = vlaneseq
        %v441 = vshrl.u32 %v440, 7
        %v442 = vsub.s32 0, %v441
        %v443 = vrot.slane %v438, %v442
        %v444 = vlaneseq
        %v445 = vshrl.u32 %v444, 7
        %v446 = vsub.s32 1, %v445
        %v447 = vrot.slane %v438, %v446
        %v448 = vlaneseq
        %v449 = vshrl.u32 %v448, 7
        %v450 = vsub.s32 2, %v449
        %v451 = vrot.slane %v438, %v450
        %v452 = vlaneseq
        %v453 = vshrl.u32 %v452, 7
        %v454 = vsub.s32 3, %v453
        %v455 = vrot.slane %v438, %v454
        %v456 = vlaneseq
        %v457 = vshrl.u32 %v456, 7
        %v458 = vsub.s32 4, %v457
        %v459 = vrot.slane %v438, %v458
        %v460 = vlaneseq
        %v461 = vshrl.u32 %v460, 7
        %v462 = vsub.s32 5, %v461
        %v463 = vrot.slane %v438, %v462
        %v464 = vlaneseq
        %v465 = vshrl.u32 %v464, 7
        %v466 = vsub.s32 6, %v465
        %v467 = vrot.slane %v438, %v466
        %v468 = vlaneseq
        %v469 = vshrl.u32 %v468, 7
        %v470 = vsub.s32 7, %v469
        %v471 = vrot.slane %v438, %v470
        %v496 = vunpack.c.l.b16 %v422
        %v497 = vunpack.c.h.b16 %v422
        %v498 = vunpack.c.l.b16 %v423
        %v499 = vunpack.c.h.b16 %v423
        %v500 = vunpack.c.l.b16 %v424
        %v501 = vunpack.c.h.b16 %v424
        %v502 = vunpack.c.l.b16 %v425
        %v503 = vunpack.c.h.b16 %v425
        %v504 = vunpack.c.l.b16 %v426
        %v505 = vunpack.c.h.b16 %v426
        %v506 = vunpack.c.l.b16 %v427
        %v507 = vunpack.c.h.b16 %v427
        %v508 = vunpack.c.l.b16 %v428
        %v509 = vunpack.c.h.b16 %v428
        %v510 = vunpack.c.l.b16 %v429
        %v511 = vunpack.c.h.b16 %v429
        %v512 = vunpack.c.l.b16 %v430
        %v513 = vunpack.c.h.b16 %v430
        %v514 = vunpack.c.l.b16 %v431
        %v515 = vunpack.c.h.b16 %v431
        %v516 = vunpack.c.l.b16 %v432
        %v517 = vunpack.c.h.b16 %v432
        %v518 = vunpack.c.l.b16 %v433
        %v519 = vunpack.c.h.b16 %v433
        %v520 = vunpack.c.l.b16 %v434
        %v521 = vunpack.c.h.b16 %v434
        %v522 = vunpack.c.l.b16 %v435
        %v523 = vunpack.c.h.b16 %v435
        %v524 = vunpack.c.l.b16 %v436
        %v525 = vunpack.c.h.b16 %v436
        %v526 = vunpack.c.l.b16 %v437
        %v527 = vunpack.c.h.b16 %v437
        %v528 = vpack.c.b16 %v504, %v496
        %v529 = vpack.c.b16 %v505, %v497
        %v530 = vpack.c.b16 %v506, %v498
        %v531 = vpack.c.b16 %v507, %v499
        %v532 = vpack.c.b16 %v508, %v500
        %v533 = vpack.c.b16 %v509, %v501
        %v534 = vpack.c.b16 %v510, %v502
        %v535 = vpack.c.b16 %v511, %v503
        %v536 = vpack.c.b16 %v520, %v512
        %v537 = vpack.c.b16 %v521, %v513
        %v538 = vpack.c.b16 %v522, %v514
        %v539 = vpack.c.b16 %v523, %v515
        %v540 = vpack.c.b16 %v524, %v516
        %v541 = vpack.c.b16 %v525, %v517
        %v542 = vpack.c.b16 %v526, %v518
        %v543 = vpack.c.b16 %v527, %v519
        %vm560 = vcmask 261120
        %v562 = vsel %vm560, %v421, 0
        %564 = vmatprep.subr.bf16.mxu0 %v529
        %565 = vmatpush1.bf16.msra.mxu0 %v528
        %566 = vmatprep.subr.bf16.mxu0 %v537
        %567 = vmatpush1.bf16.msra.mxu0 %v536
        %568 = vmatprep.subr.bf16.mxu0 0
        %569 = vmatpush1.bf16.msra.mxu0 0
        %570 = vmatprep.subr.bf16.mxu0 0
        %571 = vmatpush1.bf16.msra.mxu0 0
        %572 = vmatprep.subr.bf16.mxu0 0
        %573 = vmatpush1.bf16.msra.mxu0 0
        %574 = vmatprep.subr.bf16.mxu0 0
        %575 = vmatpush1.bf16.msra.mxu0 0
        %576 = vmatprep.subr.bf16.mxu0 0
        %577 = vmatpush1.bf16.msra.mxu0 0
        %578 = vmatprep.subr.bf16.mxu0 0
        %579 = vmatpush1.bf16.msra.mxu0 0
        %580 = vmatprep.subr.bf16.mxu0 0
        %581 = vmatpush1.bf16.msra.mxu0 0
        %582 = vmatprep.subr.bf16.mxu0 0
        %583 = vmatpush1.bf16.msra.mxu0 0
        %584 = vmatprep.subr.bf16.mxu0 0
        %585 = vmatpush1.bf16.msra.mxu0 0
        %586 = vmatprep.subr.bf16.mxu0 0
        %587 = vmatpush1.bf16.msra.mxu0 0
        %588 = vmatprep.subr.bf16.mxu0 0
        %589 = vmatpush1.bf16.msra.mxu0 0
        %590 = vmatprep.subr.bf16.mxu0 0
        %591 = vmatpush1.bf16.msra.mxu0 0
        %592 = vmatprep.subr.bf16.mxu0 0
        %593 = vmatpush1.bf16.msra.mxu0 0
        %594 = vmatprep.subr.bf16.mxu0 0
        %595 = vmatpush1.bf16.msra.mxu0 0
        %596 = vmatprep.mubr.bf16.mxu0 0
        %597 = vmatmul.mubr.bf16.gmra.mrb[0].mxu0 %v562
        %v598 = vpop.f32.mrb[0].mxu0
        %v599 = vadd.f32 %v443, %v598
        %v600 = vpop.f32.mrb[0].mxu0
        %v601 = vadd.f32 %v447, %v600
        %v602 = vpop.f32.mrb[0].mxu0
        %v603 = vpop.f32.mrb[0].mxu0
        %604 = vdwg.mxu0
        %605 = vmatprep.subr.bf16.mxu0 %v531
        %606 = vmatpush1.bf16.msra.mxu0 %v530
        %607 = vmatprep.subr.bf16.mxu0 %v539
        %608 = vmatpush1.bf16.msra.mxu0 %v538
        %609 = vmatprep.subr.bf16.mxu0 0
        %610 = vmatpush1.bf16.msra.mxu0 0
        %611 = vmatprep.subr.bf16.mxu0 0
        %612 = vmatpush1.bf16.msra.mxu0 0
        %613 = vmatprep.subr.bf16.mxu0 0
        %614 = vmatpush1.bf16.msra.mxu0 0
        %615 = vmatprep.subr.bf16.mxu0 0
        %616 = vmatpush1.bf16.msra.mxu0 0
        %617 = vmatprep.subr.bf16.mxu0 0
        %618 = vmatpush1.bf16.msra.mxu0 0
        %619 = vmatprep.subr.bf16.mxu0 0
        %620 = vmatpush1.bf16.msra.mxu0 0
        %621 = vmatprep.subr.bf16.mxu0 0
        %622 = vmatpush1.bf16.msra.mxu0 0
        %623 = vmatprep.subr.bf16.mxu0 0
        %624 = vmatpush1.bf16.msra.mxu0 0
        %625 = vmatprep.subr.bf16.mxu0 0
        %626 = vmatpush1.bf16.msra.mxu0 0
        %627 = vmatprep.subr.bf16.mxu0 0
        %628 = vmatpush1.bf16.msra.mxu0 0
        %629 = vmatprep.subr.bf16.mxu0 0
        %630 = vmatpush1.bf16.msra.mxu0 0
        %631 = vmatprep.subr.bf16.mxu0 0
        %632 = vmatpush1.bf16.msra.mxu0 0
        %633 = vmatprep.subr.bf16.mxu0 0
        %634 = vmatpush1.bf16.msra.mxu0 0
        %635 = vmatprep.subr.bf16.mxu0 0
        %636 = vmatpush1.bf16.msra.mxu0 0
        %637 = vmatprep.mubr.bf16.mxu0 0
        %638 = vmatmul.mubr.bf16.gmra.mrb[0].mxu0 %v562
        %v639 = vpop.f32.mrb[0].mxu0
        %v640 = vadd.f32 %v451, %v639
        %v641 = vpop.f32.mrb[0].mxu0
        %v642 = vadd.f32 %v455, %v641
        %v643 = vpop.f32.mrb[0].mxu0
        %v644 = vpop.f32.mrb[0].mxu0
        %645 = vdwg.mxu0
        %646 = vmatprep.subr.bf16.mxu0 %v533
        %647 = vmatpush1.bf16.msra.mxu0 %v532
        %648 = vmatprep.subr.bf16.mxu0 %v541
        %649 = vmatpush1.bf16.msra.mxu0 %v540
        %650 = vmatprep.subr.bf16.mxu0 0
        %651 = vmatpush1.bf16.msra.mxu0 0
        %652 = vmatprep.subr.bf16.mxu0 0
        %653 = vmatpush1.bf16.msra.mxu0 0
        %654 = vmatprep.subr.bf16.mxu0 0
        %655 = vmatpush1.bf16.msra.mxu0 0
        %656 = vmatprep.subr.bf16.mxu0 0
        %657 = vmatpush1.bf16.msra.mxu0 0
        %658 = vmatprep.subr.bf16.mxu0 0
        %659 = vmatpush1.bf16.msra.mxu0 0
        %660 = vmatprep.subr.bf16.mxu0 0
        %661 = vmatpush1.bf16.msra.mxu0 0
        %662 = vmatprep.subr.bf16.mxu0 0
        %663 = vmatpush1.bf16.msra.mxu0 0
        %664 = vmatprep.subr.bf16.mxu0 0
        %665 = vmatpush1.bf16.msra.mxu0 0
        %666 = vmatprep.subr.bf16.mxu0 0
        %667 = vmatpush1.bf16.msra.mxu0 0
        %668 = vmatprep.subr.bf16.mxu0 0
        %669 = vmatpush1.bf16.msra.mxu0 0
        %670 = vmatprep.subr.bf16.mxu0 0
        %671 = vmatpush1.bf16.msra.mxu0 0
        %672 = vmatprep.subr.bf16.mxu0 0
        %673 = vmatpush1.bf16.msra.mxu0 0
        %674 = vmatprep.subr.bf16.mxu0 0
        %675 = vmatpush1.bf16.msra.mxu0 0
        %676 = vmatprep.subr.bf16.mxu0 0
        %677 = vmatpush1.bf16.msra.mxu0 0
        %678 = vmatprep.mubr.bf16.mxu0 0
        %679 = vmatmul.mubr.bf16.gmra.mrb[0].mxu0 %v562
        %v680 = vpop.f32.mrb[0].mxu0
        %v681 = vadd.f32 %v459, %v680
        %v682 = vpop.f32.mrb[0].mxu0
        %v683 = vadd.f32 %v463, %v682
        %v684 = vpop.f32.mrb[0].mxu0
        %v685 = vpop.f32.mrb[0].mxu0
        %686 = vdwg.mxu0
        %687 = vmatprep.subr.bf16.mxu0 %v535
        %688 = vmatpush1.bf16.msra.mxu0 %v534
        %689 = vmatprep.subr.bf16.mxu0 %v543
        %690 = vmatpush1.bf16.msra.mxu0 %v542
        %691 = vmatprep.subr.bf16.mxu0 0
        %692 = vmatpush1.bf16.msra.mxu0 0
        %693 = vmatprep.subr.bf16.mxu0 0
        %694 = vmatpush1.bf16.msra.mxu0 0
        %695 = vmatprep.subr.bf16.mxu0 0
        %696 = vmatpush1.bf16.msra.mxu0 0
        %697 = vmatprep.subr.bf16.mxu0 0
        %698 = vmatpush1.bf16.msra.mxu0 0
        %699 = vmatprep.subr.bf16.mxu0 0
        %700 = vmatpush1.bf16.msra.mxu0 0
        %701 = vmatprep.subr.bf16.mxu0 0
        %702 = vmatpush1.bf16.msra.mxu0 0
        %703 = vmatprep.subr.bf16.mxu0 0
        %704 = vmatpush1.bf16.msra.mxu0 0
        %705 = vmatprep.subr.bf16.mxu0 0
        %706 = vmatpush1.bf16.msra.mxu0 0
        %707 = vmatprep.subr.bf16.mxu0 0
        %708 = vmatpush1.bf16.msra.mxu0 0
        %709 = vmatprep.subr.bf16.mxu0 0
        %710 = vmatpush1.bf16.msra.mxu0 0
        %711 = vmatprep.subr.bf16.mxu0 0
        %712 = vmatpush1.bf16.msra.mxu0 0
        %713 = vmatprep.subr.bf16.mxu0 0
        %714 = vmatpush1.bf16.msra.mxu0 0
        %715 = vmatprep.subr.bf16.mxu0 0
        %716 = vmatpush1.bf16.msra.mxu0 0
        %717 = vmatprep.subr.bf16.mxu0 0
        %718 = vmatpush1.bf16.msra.mxu0 0
        %719 = vmatprep.mubr.bf16.mxu0 0
        %720 = vmatmul.mubr.bf16.gmra.mrb[0].mxu0 %v562
        %v721 = vpop.f32.mrb[0].mxu0
        %v722 = vadd.f32 %v467, %v721
        %v723 = vpop.f32.mrb[0].mxu0
        %v724 = vadd.f32 %v471, %v723
        %v725 = vpop.f32.mrb[0].mxu0
        %v726 = vpop.f32.mrb[0].mxu0
        %727 = vdwg.mxu0
        %v728 = vmul.f32 %v599, 0.2
        %v729 = vmul.f32 %v601, 0.2
        %v730 = vmul.f32 %v640, 0.2
        %v731 = vmul.f32 %v642, 0.2
        %v732 = vmul.f32 %v681, 0.2
        %v733 = vmul.f32 %v683, 0.2
        %v734 = vmul.f32 %v722, 0.2
        %v735 = vmul.f32 %v724, 0.2
        %v736 = vmax.f32 %v599, %v728
        %v737 = vmax.f32 %v601, %v729
        %v738 = vmax.f32 %v640, %v730
        %v739 = vmax.f32 %v642, %v731
        %v740 = vmax.f32 %v681, %v732
        %v741 = vmax.f32 %v683, %v733
        %v742 = vmax.f32 %v722, %v734
        %v743 = vmax.f32 %v724, %v735
        %v744 = vpack.c.bf16 %v736, %v736
        %v745 = vpack.c.bf16 %v737, %v737
        %v746 = vpack.c.bf16 %v738, %v738
        %v747 = vpack.c.bf16 %v739, %v739
        %v748 = vpack.c.bf16 %v740, %v740
        %v749 = vpack.c.bf16 %v741, %v741
        %v750 = vpack.c.bf16 %v742, %v742
        %v751 = vpack.c.bf16 %v743, %v743
        %v752 = vld [vmem:[#allocation7] sm:$0xff]
        %v753 = vld [vmem:[#allocation7 + $0x8] sm:$0xff]
        %v754 = vld [vmem:[#allocation7 + $0x10] sm:$0xff]
        %v755 = vld [vmem:[#allocation7 + $0x18] sm:$0xff]
        %v756 = vld [vmem:[#allocation7 + $0x20] sm:$0xff]
        %v757 = vld [vmem:[#allocation7 + $0x28] sm:$0xff]
        %v758 = vld [vmem:[#allocation7 + $0x30] sm:$0xff]
        %v759 = vld [vmem:[#allocation7 + $0x38] sm:$0xff]
        %v760 = vld [vmem:[#allocation7 + $0x40] sm:$0xff]
        %v761 = vld [vmem:[#allocation7 + $0x48] sm:$0xff]
        %v762 = vld [vmem:[#allocation7 + $0x50] sm:$0xff]
        %v763 = vld [vmem:[#allocation7 + $0x58] sm:$0xff]
        %v764 = vld [vmem:[#allocation7 + $0x60] sm:$0xff]
        %v765 = vld [vmem:[#allocation7 + $0x68] sm:$0xff]
        %v766 = vld [vmem:[#allocation7 + $0x70] sm:$0xff]
        %v767 = vld [vmem:[#allocation7 + $0x78] sm:$0xff]
        %v768 = vld [vmem:[#allocation7 + $0x80] sm:$0xff]
        %v769 = vld [vmem:[#allocation7 + $0x88] sm:$0xff]
        %v770 = vld [vmem:[#allocation7 + $0x90] sm:$0xff]
        %v771 = vld [vmem:[#allocation7 + $0x98] sm:$0xff]
        %v772 = vld [vmem:[#allocation7 + $0xa0] sm:$0xff]
        %v773 = vld [vmem:[#allocation7 + $0xa8] sm:$0xff]
        %v774 = vld [vmem:[#allocation7 + $0xb0] sm:$0xff]
        %v775 = vld [vmem:[#allocation7 + $0xb8] sm:$0xff]
        %v776 = vld [vmem:[#allocation7 + $0xc0] sm:$0xff]
        %v777 = vld [vmem:[#allocation7 + $0xc8] sm:$0xff]
        %v778 = vld [vmem:[#allocation7 + $0xd0] sm:$0xff]
        %v779 = vld [vmem:[#allocation7 + $0xd8] sm:$0xff]
        %v780 = vld [vmem:[#allocation7 + $0xe0] sm:$0xff]
        %v781 = vld [vmem:[#allocation7 + $0xe8] sm:$0xff]
        %v782 = vld [vmem:[#allocation7 + $0xf0] sm:$0xff]
        %v783 = vld [vmem:[#allocation7 + $0xf8] sm:$0xff]
        %v784 = vld [vmem:[#allocation7 + $0x100] sm:$0xff]
        %v785 = vld [vmem:[#allocation7 + $0x108] sm:$0xff]
        %v786 = vld [vmem:[#allocation7 + $0x110] sm:$0xff]
        %v787 = vld [vmem:[#allocation7 + $0x118] sm:$0xff]
        %v788 = vld [vmem:[#allocation7 + $0x120] sm:$0xff]
        %v789 = vld [vmem:[#allocation7 + $0x128] sm:$0xff]
        %v790 = vld [vmem:[#allocation7 + $0x130] sm:$0xff]
        %v791 = vld [vmem:[#allocation7 + $0x138] sm:$0xff]
        %v792 = vld [vmem:[#allocation7 + $0x140] sm:$0xff]
        %v793 = vld [vmem:[#allocation7 + $0x148] sm:$0xff]
        %v794 = vld [vmem:[#allocation7 + $0x150] sm:$0xff]
        %v795 = vld [vmem:[#allocation7 + $0x158] sm:$0xff]
        %v796 = vld [vmem:[#allocation7 + $0x160] sm:$0xff]
        %v797 = vld [vmem:[#allocation7 + $0x168] sm:$0xff]
        %v798 = vld [vmem:[#allocation7 + $0x170] sm:$0xff]
        %v799 = vld [vmem:[#allocation7 + $0x178] sm:$0xff]
        %v800 = vld [vmem:[#allocation7 + $0x180] sm:$0xff]
        %v801 = vld [vmem:[#allocation7 + $0x188] sm:$0xff]
        %v802 = vld [vmem:[#allocation7 + $0x190] sm:$0xff]
        %v803 = vld [vmem:[#allocation7 + $0x198] sm:$0xff]
        %v804 = vld [vmem:[#allocation7 + $0x1a0] sm:$0xff]
        %v805 = vld [vmem:[#allocation7 + $0x1a8] sm:$0xff]
        %v806 = vld [vmem:[#allocation7 + $0x1b0] sm:$0xff]
        %v807 = vld [vmem:[#allocation7 + $0x1b8] sm:$0xff]
        %v808 = vld [vmem:[#allocation7 + $0x1c0] sm:$0xff]
        %v809 = vld [vmem:[#allocation7 + $0x1c8] sm:$0xff]
        %v810 = vld [vmem:[#allocation7 + $0x1d0] sm:$0xff]
        %v811 = vld [vmem:[#allocation7 + $0x1d8] sm:$0xff]
        %v812 = vld [vmem:[#allocation7 + $0x1e0] sm:$0xff]
        %v813 = vld [vmem:[#allocation7 + $0x1e8] sm:$0xff]
        %v814 = vld [vmem:[#allocation7 + $0x1f0] sm:$0xff]
        %v815 = vld [vmem:[#allocation7 + $0x1f8] sm:$0xff]
        %v816 = vld [vmem:[#allocation7 + $0x200] sm:$0xff]
        %v817 = vld [vmem:[#allocation7 + $0x208] sm:$0xff]
        %v818 = vld [vmem:[#allocation7 + $0x210] sm:$0xff]
        %v819 = vld [vmem:[#allocation7 + $0x218] sm:$0xff]
        %v820 = vld [vmem:[#allocation7 + $0x220] sm:$0xff]
        %v821 = vld [vmem:[#allocation7 + $0x228] sm:$0xff]
        %v822 = vld [vmem:[#allocation7 + $0x230] sm:$0xff]
        %v823 = vld [vmem:[#allocation7 + $0x238] sm:$0xff]
        %v824 = vld [vmem:[#allocation7 + $0x240] sm:$0xff]
        %v825 = vld [vmem:[#allocation7 + $0x248] sm:$0xff]
        %v826 = vld [vmem:[#allocation7 + $0x250] sm:$0xff]
        %v827 = vld [vmem:[#allocation7 + $0x258] sm:$0xff]
        %v828 = vld [vmem:[#allocation7 + $0x260] sm:$0xff]
        %v829 = vld [vmem:[#allocation7 + $0x268] sm:$0xff]
        %v830 = vld [vmem:[#allocation7 + $0x270] sm:$0xff]
        %v831 = vld [vmem:[#allocation7 + $0x278] sm:$0xff]
        %v832 = vld [vmem:[#allocation7 + $0x280] sm:$0xff]
        %v833 = vld [vmem:[#allocation7 + $0x288] sm:$0xff]
        %v834 = vld [vmem:[#allocation7 + $0x290] sm:$0xff]
        %v835 = vld [vmem:[#allocation7 + $0x298] sm:$0xff]
        %v836 = vld [vmem:[#allocation7 + $0x2a0] sm:$0xff]
        %v837 = vld [vmem:[#allocation7 + $0x2a8] sm:$0xff]
        %v838 = vld [vmem:[#allocation7 + $0x2b0] sm:$0xff]
        %v839 = vld [vmem:[#allocation7 + $0x2b8] sm:$0xff]
        %v840 = vld [vmem:[#allocation7 + $0x2c0] sm:$0xff]
        %v841 = vld [vmem:[#allocation7 + $0x2c8] sm:$0xff]
        %v842 = vld [vmem:[#allocation7 + $0x2d0] sm:$0xff]
        %v843 = vld [vmem:[#allocation7 + $0x2d8] sm:$0xff]
        %v844 = vld [vmem:[#allocation7 + $0x2e0] sm:$0xff]
        %v845 = vld [vmem:[#allocation7 + $0x2e8] sm:$0xff]
        %v846 = vld [vmem:[#allocation7 + $0x2f0] sm:$0xff]
        %v847 = vld [vmem:[#allocation7 + $0x2f8] sm:$0xff]
        %v848 = vld [vmem:[#allocation7 + $0x300] sm:$0xff]
        %v849 = vld [vmem:[#allocation7 + $0x308] sm:$0xff]
        %v850 = vld [vmem:[#allocation7 + $0x310] sm:$0xff]
        %v851 = vld [vmem:[#allocation7 + $0x318] sm:$0xff]
        %v852 = vld [vmem:[#allocation7 + $0x320] sm:$0xff]
        %v853 = vld [vmem:[#allocation7 + $0x328] sm:$0xff]
        %v854 = vld [vmem:[#allocation7 + $0x330] sm:$0xff]
        %v855 = vld [vmem:[#allocation7 + $0x338] sm:$0xff]
        %v856 = vld [vmem:[#allocation7 + $0x340] sm:$0xff]
        %v857 = vld [vmem:[#allocation7 + $0x348] sm:$0xff]
        %v858 = vld [vmem:[#allocation7 + $0x350] sm:$0xff]
        %v859 = vld [vmem:[#allocation7 + $0x358] sm:$0xff]
        %v860 = vld [vmem:[#allocation7 + $0x360] sm:$0xff]
        %v861 = vld [vmem:[#allocation7 + $0x368] sm:$0xff]
        %v862 = vld [vmem:[#allocation7 + $0x370] sm:$0xff]
        %v863 = vld [vmem:[#allocation7 + $0x378] sm:$0xff]
        %v864 = vld [vmem:[#allocation7 + $0x380] sm:$0xff]
        %v865 = vld [vmem:[#allocation7 + $0x388] sm:$0xff]
        %v866 = vld [vmem:[#allocation7 + $0x390] sm:$0xff]
        %v867 = vld [vmem:[#allocation7 + $0x398] sm:$0xff]
        %v868 = vld [vmem:[#allocation7 + $0x3a0] sm:$0xff]
        %v869 = vld [vmem:[#allocation7 + $0x3a8] sm:$0xff]
        %v870 = vld [vmem:[#allocation7 + $0x3b0] sm:$0xff]
        %v871 = vld [vmem:[#allocation7 + $0x3b8] sm:$0xff]
        %v872 = vld [vmem:[#allocation7 + $0x3c0] sm:$0xff]
        %v873 = vld [vmem:[#allocation7 + $0x3c8] sm:$0xff]
        %v874 = vld [vmem:[#allocation7 + $0x3d0] sm:$0xff]
        %v875 = vld [vmem:[#allocation7 + $0x3d8] sm:$0xff]
        %v876 = vld [vmem:[#allocation7 + $0x3e0] sm:$0xff]
        %v877 = vld [vmem:[#allocation7 + $0x3e8] sm:$0xff]
        %v878 = vld [vmem:[#allocation7 + $0x3f0] sm:$0xff]
        %v879 = vld [vmem:[#allocation7 + $0x3f8] sm:$0xff]
        %v880 = vld [vmem:[#allocation7 + $0x400] sm:$0xff]
        %v881 = vld [vmem:[#allocation7 + $0x408] sm:$0xff]
        %v882 = vld [vmem:[#allocation7 + $0x410] sm:$0xff]
        %v883 = vld [vmem:[#allocation7 + $0x418] sm:$0xff]
        %v884 = vld [vmem:[#allocation7 + $0x420] sm:$0xff]
        %v885 = vld [vmem:[#allocation7 + $0x428] sm:$0xff]
        %v886 = vld [vmem:[#allocation7 + $0x430] sm:$0xff]
        %v887 = vld [vmem:[#allocation7 + $0x438] sm:$0xff]
        %v888 = vld [vmem:[#allocation7 + $0x440] sm:$0xff]
        %v889 = vld [vmem:[#allocation7 + $0x448] sm:$0xff]
        %v890 = vld [vmem:[#allocation7 + $0x450] sm:$0xff]
        %v891 = vld [vmem:[#allocation7 + $0x458] sm:$0xff]
        %v892 = vld [vmem:[#allocation7 + $0x460] sm:$0xff]
        %v893 = vld [vmem:[#allocation7 + $0x468] sm:$0xff]
        %v894 = vld [vmem:[#allocation7 + $0x470] sm:$0xff]
        %v895 = vld [vmem:[#allocation7 + $0x478] sm:$0xff]
        %v896 = vld [vmem:[#allocation7 + $0x480] sm:$0xff]
        %v897 = vld [vmem:[#allocation7 + $0x488] sm:$0xff]
        %v898 = vld [vmem:[#allocation7 + $0x490] sm:$0xff]
        %v899 = vld [vmem:[#allocation7 + $0x498] sm:$0xff]
        %v900 = vld [vmem:[#allocation7 + $0x4a0] sm:$0xff]
        %v901 = vld [vmem:[#allocation7 + $0x4a8] sm:$0xff]
        %v902 = vld [vmem:[#allocation7 + $0x4b0] sm:$0xff]
        %v903 = vld [vmem:[#allocation7 + $0x4b8] sm:$0xff]
        %v904 = vld [vmem:[#allocation7 + $0x4c0] sm:$0xff]
        %v905 = vld [vmem:[#allocation7 + $0x4c8] sm:$0xff]
        %v906 = vld [vmem:[#allocation7 + $0x4d0] sm:$0xff]
        %v907 = vld [vmem:[#allocation7 + $0x4d8] sm:$0xff]
        %v908 = vld [vmem:[#allocation7 + $0x4e0] sm:$0xff]
        %v909 = vld [vmem:[#allocation7 + $0x4e8] sm:$0xff]
        %v910 = vld [vmem:[#allocation7 + $0x4f0] sm:$0xff]
        %v911 = vld [vmem:[#allocation7 + $0x4f8] sm:$0xff]
        %v912 = vld [vmem:[#allocation7 + $0x500] sm:$0xff]
        %v913 = vld [vmem:[#allocation7 + $0x508] sm:$0xff]
        %v914 = vld [vmem:[#allocation7 + $0x510] sm:$0xff]
        %v915 = vld [vmem:[#allocation7 + $0x518] sm:$0xff]
        %v916 = vld [vmem:[#allocation7 + $0x520] sm:$0xff]
        %v917 = vld [vmem:[#allocation7 + $0x528] sm:$0xff]
        %v918 = vld [vmem:[#allocation7 + $0x530] sm:$0xff]
        %v919 = vld [vmem:[#allocation7 + $0x538] sm:$0xff]
        %v920 = vld [vmem:[#allocation7 + $0x540] sm:$0xff]
        %v921 = vld [vmem:[#allocation7 + $0x548] sm:$0xff]
        %v922 = vld [vmem:[#allocation7 + $0x550] sm:$0xff]
        %v923 = vld [vmem:[#allocation7 + $0x558] sm:$0xff]
        %v924 = vld [vmem:[#allocation7 + $0x560] sm:$0xff]
        %v925 = vld [vmem:[#allocation7 + $0x568] sm:$0xff]
        %v926 = vld [vmem:[#allocation7 + $0x570] sm:$0xff]
        %v927 = vld [vmem:[#allocation7 + $0x578] sm:$0xff]
        %v928 = vld [vmem:[#allocation7 + $0x580] sm:$0xff]
        %v929 = vld [vmem:[#allocation7 + $0x588] sm:$0xff]
        %v930 = vld [vmem:[#allocation7 + $0x590] sm:$0xff]
        %v931 = vld [vmem:[#allocation7 + $0x598] sm:$0xff]
        %v932 = vld [vmem:[#allocation7 + $0x5a0] sm:$0xff]
        %v933 = vld [vmem:[#allocation7 + $0x5a8] sm:$0xff]
        %v934 = vld [vmem:[#allocation7 + $0x5b0] sm:$0xff]
        %v935 = vld [vmem:[#allocation7 + $0x5b8] sm:$0xff]
        %v936 = vld [vmem:[#allocation7 + $0x5c0] sm:$0xff]
        %v937 = vld [vmem:[#allocation7 + $0x5c8] sm:$0xff]
        %v938 = vld [vmem:[#allocation7 + $0x5d0] sm:$0xff]
        %v939 = vld [vmem:[#allocation7 + $0x5d8] sm:$0xff]
        %v940 = vld [vmem:[#allocation7 + $0x5e0] sm:$0xff]
        %v941 = vld [vmem:[#allocation7 + $0x5e8] sm:$0xff]
        %v942 = vld [vmem:[#allocation7 + $0x5f0] sm:$0xff]
        %v943 = vld [vmem:[#allocation7 + $0x5f8] sm:$0xff]
        %v944 = vld [vmem:[#allocation7 + $0x600] sm:$0xff]
        %v945 = vld [vmem:[#allocation7 + $0x608] sm:$0xff]
        %v946 = vld [vmem:[#allocation7 + $0x610] sm:$0xff]
        %v947 = vld [vmem:[#allocation7 + $0x618] sm:$0xff]
        %v948 = vld [vmem:[#allocation7 + $0x620] sm:$0xff]
        %v949 = vld [vmem:[#allocation7 + $0x628] sm:$0xff]
        %v950 = vld [vmem:[#allocation7 + $0x630] sm:$0xff]
        %v951 = vld [vmem:[#allocation7 + $0x638] sm:$0xff]
        %v952 = vld [vmem:[#allocation7 + $0x640] sm:$0xff]
        %v953 = vld [vmem:[#allocation7 + $0x648] sm:$0xff]
        %v954 = vld [vmem:[#allocation7 + $0x650] sm:$0xff]
        %v955 = vld [vmem:[#allocation7 + $0x658] sm:$0xff]
        %v956 = vld [vmem:[#allocation7 + $0x660] sm:$0xff]
        %v957 = vld [vmem:[#allocation7 + $0x668] sm:$0xff]
        %v958 = vld [vmem:[#allocation7 + $0x670] sm:$0xff]
        %v959 = vld [vmem:[#allocation7 + $0x678] sm:$0xff]
        %v960 = vld [vmem:[#allocation7 + $0x680] sm:$0xff]
        %v961 = vld [vmem:[#allocation7 + $0x688] sm:$0xff]
        %v962 = vld [vmem:[#allocation7 + $0x690] sm:$0xff]
        %v963 = vld [vmem:[#allocation7 + $0x698] sm:$0xff]
        %v964 = vld [vmem:[#allocation7 + $0x6a0] sm:$0xff]
        %v965 = vld [vmem:[#allocation7 + $0x6a8] sm:$0xff]
        %v966 = vld [vmem:[#allocation7 + $0x6b0] sm:$0xff]
        %v967 = vld [vmem:[#allocation7 + $0x6b8] sm:$0xff]
        %v968 = vld [vmem:[#allocation7 + $0x6c0] sm:$0xff]
        %v969 = vld [vmem:[#allocation7 + $0x6c8] sm:$0xff]
        %v970 = vld [vmem:[#allocation7 + $0x6d0] sm:$0xff]
        %v971 = vld [vmem:[#allocation7 + $0x6d8] sm:$0xff]
        %v972 = vld [vmem:[#allocation7 + $0x6e0] sm:$0xff]
        %v973 = vld [vmem:[#allocation7 + $0x6e8] sm:$0xff]
        %v974 = vld [vmem:[#allocation7 + $0x6f0] sm:$0xff]
        %v975 = vld [vmem:[#allocation7 + $0x6f8] sm:$0xff]
        %v976 = vld [vmem:[#allocation7 + $0x700] sm:$0xff]
        %v977 = vld [vmem:[#allocation7 + $0x708] sm:$0xff]
        %v978 = vld [vmem:[#allocation7 + $0x710] sm:$0xff]
        %v979 = vld [vmem:[#allocation7 + $0x718] sm:$0xff]
        %v980 = vld [vmem:[#allocation7 + $0x720] sm:$0xff]
        %v981 = vld [vmem:[#allocation7 + $0x728] sm:$0xff]
        %v982 = vld [vmem:[#allocation7 + $0x730] sm:$0xff]
        %v983 = vld [vmem:[#allocation7 + $0x738] sm:$0xff]
        %v984 = vld [vmem:[#allocation7 + $0x740] sm:$0xff]
        %v985 = vld [vmem:[#allocation7 + $0x748] sm:$0xff]
        %v986 = vld [vmem:[#allocation7 + $0x750] sm:$0xff]
        %v987 = vld [vmem:[#allocation7 + $0x758] sm:$0xff]
        %v988 = vld [vmem:[#allocation7 + $0x760] sm:$0xff]
        %v989 = vld [vmem:[#allocation7 + $0x768] sm:$0xff]
        %v990 = vld [vmem:[#allocation7 + $0x770] sm:$0xff]
        %v991 = vld [vmem:[#allocation7 + $0x778] sm:$0xff]
        %v992 = vld [vmem:[#allocation7 + $0x780] sm:$0xff]
        %v993 = vld [vmem:[#allocation7 + $0x788] sm:$0xff]
        %v994 = vld [vmem:[#allocation7 + $0x790] sm:$0xff]
        %v995 = vld [vmem:[#allocation7 + $0x798] sm:$0xff]
        %v996 = vld [vmem:[#allocation7 + $0x7a0] sm:$0xff]
        %v997 = vld [vmem:[#allocation7 + $0x7a8] sm:$0xff]
        %v998 = vld [vmem:[#allocation7 + $0x7b0] sm:$0xff]
        %v999 = vld [vmem:[#allocation7 + $0x7b8] sm:$0xff]
        %v1000 = vld [vmem:[#allocation7 + $0x7c0] sm:$0xff]
        %v1001 = vld [vmem:[#allocation7 + $0x7c8] sm:$0xff]
        %v1002 = vld [vmem:[#allocation7 + $0x7d0] sm:$0xff]
        %v1003 = vld [vmem:[#allocation7 + $0x7d8] sm:$0xff]
        %v1004 = vld [vmem:[#allocation7 + $0x7e0] sm:$0xff]
        %v1005 = vld [vmem:[#allocation7 + $0x7e8] sm:$0xff]
        %v1006 = vld [vmem:[#allocation7 + $0x7f0] sm:$0xff]
        %v1007 = vld [vmem:[#allocation7 + $0x7f8] sm:$0xff]
        %v1008 = vld [vmem:[%s4] sm:$0xf]
        %v1010 = vlaneseq
        %v1011 = vshrl.u32 %v1010, 7
        %v1012 = vsub.s32 0, %v1011
        %v1013 = vrot.slane %v1008, %v1012
        %v1014 = vlaneseq
        %v1015 = vshrl.u32 %v1014, 7
        %v1016 = vsub.s32 1, %v1015
        %v1017 = vrot.slane %v1008, %v1016
        %v1018 = vlaneseq
        %v1019 = vshrl.u32 %v1018, 7
        %v1020 = vsub.s32 2, %v1019
        %v1021 = vrot.slane %v1008, %v1020
        %v1022 = vlaneseq
        %v1023 = vshrl.u32 %v1022, 7
        %v1024 = vsub.s32 3, %v1023
        %v1025 = vrot.slane %v1008, %v1024
        %v1286 = vunpack.c.l.b16 %v752
        %v1287 = vunpack.c.h.b16 %v752
        %v1288 = vunpack.c.l.b16 %v753
        %v1289 = vunpack.c.h.b16 %v753
        %v1290 = vunpack.c.l.b16 %v754
        %v1291 = vunpack.c.h.b16 %v754
        %v1292 = vunpack.c.l.b16 %v755
        %v1293 = vunpack.c.h.b16 %v755
        %v1294 = vunpack.c.l.b16 %v756
        %v1295 = vunpack.c.h.b16 %v756
        %v1296 = vunpack.c.l.b16 %v757
        %v1297 = vunpack.c.h.b16 %v757
        %v1298 = vunpack.c.l.b16 %v758
        %v1299 = vunpack.c.h.b16 %v758
        %v1300 = vunpack.c.l.b16 %v759
        %v1301 = vunpack.c.h.b16 %v759
        %v1302 = vunpack.c.l.b16 %v760
        %v1303 = vunpack.c.h.b16 %v760
        %v1304 = vunpack.c.l.b16 %v761
        %v1305 = vunpack.c.h.b16 %v761
        %v1306 = vunpack.c.l.b16 %v762
        %v1307 = vunpack.c.h.b16 %v762
        %v1308 = vunpack.c.l.b16 %v763
        %v1309 = vunpack.c.h.b16 %v763
        %v1310 = vunpack.c.l.b16 %v764
        %v1311 = vunpack.c.h.b16 %v764
        %v1312 = vunpack.c.l.b16 %v765
        %v1313 = vunpack.c.h.b16 %v765
        %v1314 = vunpack.c.l.b16 %v766
        %v1315 = vunpack.c.h.b16 %v766
        %v1316 = vunpack.c.l.b16 %v767
        %v1317 = vunpack.c.h.b16 %v767
        %v1318 = vunpack.c.l.b16 %v768
        %v1319 = vunpack.c.h.b16 %v768
        %v1320 = vunpack.c.l.b16 %v769
        %v1321 = vunpack.c.h.b16 %v769
        %v1322 = vunpack.c.l.b16 %v770
        %v1323 = vunpack.c.h.b16 %v770
        %v1324 = vunpack.c.l.b16 %v771
        %v1325 = vunpack.c.h.b16 %v771
        %v1326 = vunpack.c.l.b16 %v772
        %v1327 = vunpack.c.h.b16 %v772
        %v1328 = vunpack.c.l.b16 %v773
        %v1329 = vunpack.c.h.b16 %v773
        %v1330 = vunpack.c.l.b16 %v774
        %v1331 = vunpack.c.h.b16 %v774
        %v1332 = vunpack.c.l.b16 %v775
        %v1333 = vunpack.c.h.b16 %v775
        %v1334 = vunpack.c.l.b16 %v776
        %v1335 = vunpack.c.h.b16 %v776
        %v1336 = vunpack.c.l.b16 %v777
        %v1337 = vunpack.c.h.b16 %v777
        %v1338 = vunpack.c.l.b16 %v778
        %v1339 = vunpack.c.h.b16 %v778
        %v1340 = vunpack.c.l.b16 %v779
        %v1341 = vunpack.c.h.b16 %v779
        %v1342 = vunpack.c.l.b16 %v780
        %v1343 = vunpack.c.h.b16 %v780
        %v1344 = vunpack.c.l.b16 %v781
        %v1345 = vunpack.c.h.b16 %v781
        %v1346 = vunpack.c.l.b16 %v782
        %v1347 = vunpack.c.h.b16 %v782
        %v1348 = vunpack.c.l.b16 %v783
        %v1349 = vunpack.c.h.b16 %v783
        %v1350 = vunpack.c.l.b16 %v784
        %v1351 = vunpack.c.h.b16 %v784
        %v1352 = vunpack.c.l.b16 %v785
        %v1353 = vunpack.c.h.b16 %v785
        %v1354 = vunpack.c.l.b16 %v786
        %v1355 = vunpack.c.h.b16 %v786
        %v1356 = vunpack.c.l.b16 %v787
        %v1357 = vunpack.c.h.b16 %v787
        %v1358 = vunpack.c.l.b16 %v788
        %v1359 = vunpack.c.h.b16 %v788
        %v1360 = vunpack.c.l.b16 %v789
        %v1361 = vunpack.c.h.b16 %v789
        %v1362 = vunpack.c.l.b16 %v790
        %v1363 = vunpack.c.h.b16 %v790
        %v1364 = vunpack.c.l.b16 %v791
        %v1365 = vunpack.c.h.b16 %v791
        %v1366 = vunpack.c.l.b16 %v792
        %v1367 = vunpack.c.h.b16 %v792
        %v1368 = vunpack.c.l.b16 %v793
        %v1369 = vunpack.c.h.b16 %v793
        %v1370 = vunpack.c.l.b16 %v794
        %v1371 = vunpack.c.h.b16 %v794
        %v1372 = vunpack.c.l.b16 %v795
        %v1373 = vunpack.c.h.b16 %v795
        %v1374 = vunpack.c.l.b16 %v796
        %v1375 = vunpack.c.h.b16 %v796
        %v1376 = vunpack.c.l.b16 %v797
        %v1377 = vunpack.c.h.b16 %v797
        %v1378 = vunpack.c.l.b16 %v798
        %v1379 = vunpack.c.h.b16 %v798
        %v1380 = vunpack.c.l.b16 %v799
        %v1381 = vunpack.c.h.b16 %v799
        %v1382 = vunpack.c.l.b16 %v800
        %v1383 = vunpack.c.h.b16 %v800
        %v1384 = vunpack.c.l.b16 %v801
        %v1385 = vunpack.c.h.b16 %v801
        %v1386 = vunpack.c.l.b16 %v802
        %v1387 = vunpack.c.h.b16 %v802
        %v1388 = vunpack.c.l.b16 %v803
        %v1389 = vunpack.c.h.b16 %v803
        %v1390 = vunpack.c.l.b16 %v804
        %v1391 = vunpack.c.h.b16 %v804
        %v1392 = vunpack.c.l.b16 %v805
        %v1393 = vunpack.c.h.b16 %v805
        %v1394 = vunpack.c.l.b16 %v806
        %v1395 = vunpack.c.h.b16 %v806
        %v1396 = vunpack.c.l.b16 %v807
        %v1397 = vunpack.c.h.b16 %v807
        %v1398 = vunpack.c.l.b16 %v808
        %v1399 = vunpack.c.h.b16 %v808
        %v1400 = vunpack.c.l.b16 %v809
        %v1401 = vunpack.c.h.b16 %v809
        %v1402 = vunpack.c.l.b16 %v810
        %v1403 = vunpack.c.h.b16 %v810
        %v1404 = vunpack.c.l.b16 %v811
        %v1405 = vunpack.c.h.b16 %v811
        %v1406 = vunpack.c.l.b16 %v812
        %v1407 = vunpack.c.h.b16 %v812
        %v1408 = vunpack.c.l.b16 %v813
        %v1409 = vunpack.c.h.b16 %v813
        %v1410 = vunpack.c.l.b16 %v814
        %v1411 = vunpack.c.h.b16 %v814
        %v1412 = vunpack.c.l.b16 %v815
        %v1413 = vunpack.c.h.b16 %v815
        %v1414 = vunpack.c.l.b16 %v816
        %v1415 = vunpack.c.h.b16 %v816
        %v1416 = vunpack.c.l.b16 %v817
        %v1417 = vunpack.c.h.b16 %v817
        %v1418 = vunpack.c.l.b16 %v818
        %v1419 = vunpack.c.h.b16 %v818
        %v1420 = vunpack.c.l.b16 %v819
        %v1421 = vunpack.c.h.b16 %v819
        %v1422 = vunpack.c.l.b16 %v820
        %v1423 = vunpack.c.h.b16 %v820
        %v1424 = vunpack.c.l.b16 %v821
        %v1425 = vunpack.c.h.b16 %v821
        %v1426 = vunpack.c.l.b16 %v822
        %v1427 = vunpack.c.h.b16 %v822
        %v1428 = vunpack.c.l.b16 %v823
        %v1429 = vunpack.c.h.b16 %v823
        %v1430 = vunpack.c.l.b16 %v824
        %v1431 = vunpack.c.h.b16 %v824
        %v1432 = vunpack.c.l.b16 %v825
        %v1433 = vunpack.c.h.b16 %v825
        %v1434 = vunpack.c.l.b16 %v826
        %v1435 = vunpack.c.h.b16 %v826
        %v1436 = vunpack.c.l.b16 %v827
        %v1437 = vunpack.c.h.b16 %v827
        %v1438 = vunpack.c.l.b16 %v828
        %v1439 = vunpack.c.h.b16 %v828
        %v1440 = vunpack.c.l.b16 %v829
        %v1441 = vunpack.c.h.b16 %v829
        %v1442 = vunpack.c.l.b16 %v830
        %v1443 = vunpack.c.h.b16 %v830
        %v1444 = vunpack.c.l.b16 %v831
        %v1445 = vunpack.c.h.b16 %v831
        %v1446 = vunpack.c.l.b16 %v832
        %v1447 = vunpack.c.h.b16 %v832
        %v1448 = vunpack.c.l.b16 %v833
        %v1449 = vunpack.c.h.b16 %v833
        %v1450 = vunpack.c.l.b16 %v834
        %v1451 = vunpack.c.h.b16 %v834
        %v1452 = vunpack.c.l.b16 %v835
        %v1453 = vunpack.c.h.b16 %v835
        %v1454 = vunpack.c.l.b16 %v836
        %v1455 = vunpack.c.h.b16 %v836
        %v1456 = vunpack.c.l.b16 %v837
        %v1457 = vunpack.c.h.b16 %v837
        %v1458 = vunpack.c.l.b16 %v838
        %v1459 = vunpack.c.h.b16 %v838
        %v1460 = vunpack.c.l.b16 %v839
        %v1461 = vunpack.c.h.b16 %v839
        %v1462 = vunpack.c.l.b16 %v840
        %v1463 = vunpack.c.h.b16 %v840
        %v1464 = vunpack.c.l.b16 %v841
        %v1465 = vunpack.c.h.b16 %v841
        %v1466 = vunpack.c.l.b16 %v842
        %v1467 = vunpack.c.h.b16 %v842
        %v1468 = vunpack.c.l.b16 %v843
        %v1469 = vunpack.c.h.b16 %v843
        %v1470 = vunpack.c.l.b16 %v844
        %v1471 = vunpack.c.h.b16 %v844
        %v1472 = vunpack.c.l.b16 %v845
        %v1473 = vunpack.c.h.b16 %v845
        %v1474 = vunpack.c.l.b16 %v846
        %v1475 = vunpack.c.h.b16 %v846
        %v1476 = vunpack.c.l.b16 %v847
        %v1477 = vunpack.c.h.b16 %v847
        %v1478 = vunpack.c.l.b16 %v848
        %v1479 = vunpack.c.h.b16 %v848
        %v1480 = vunpack.c.l.b16 %v849
        %v1481 = vunpack.c.h.b16 %v849
        %v1482 = vunpack.c.l.b16 %v850
        %v1483 = vunpack.c.h.b16 %v850
        %v1484 = vunpack.c.l.b16 %v851
        %v1485 = vunpack.c.h.b16 %v851
        %v1486 = vunpack.c.l.b16 %v852
        %v1487 = vunpack.c.h.b16 %v852
        %v1488 = vunpack.c.l.b16 %v853
        %v1489 = vunpack.c.h.b16 %v853
        %v1490 = vunpack.c.l.b16 %v854
        %v1491 = vunpack.c.h.b16 %v854
        %v1492 = vunpack.c.l.b16 %v855
        %v1493 = vunpack.c.h.b16 %v855
        %v1494 = vunpack.c.l.b16 %v856
        %v1495 = vunpack.c.h.b16 %v856
        %v1496 = vunpack.c.l.b16 %v857
        %v1497 = vunpack.c.h.b16 %v857
        %v1498 = vunpack.c.l.b16 %v858
        %v1499 = vunpack.c.h.b16 %v858
        %v1500 = vunpack.c.l.b16 %v859
        %v1501 = vunpack.c.h.b16 %v859
        %v1502 = vunpack.c.l.b16 %v860
        %v1503 = vunpack.c.h.b16 %v860
        %v1504 = vunpack.c.l.b16 %v861
        %v1505 = vunpack.c.h.b16 %v861
        %v1506 = vunpack.c.l.b16 %v862
        %v1507 = vunpack.c.h.b16 %v862
        %v1508 = vunpack.c.l.b16 %v863
        %v1509 = vunpack.c.h.b16 %v863
        %v1510 = vunpack.c.l.b16 %v864
        %v1511 = vunpack.c.h.b16 %v864
        %v1512 = vunpack.c.l.b16 %v865
        %v1513 = vunpack.c.h.b16 %v865
        %v1514 = vunpack.c.l.b16 %v866
        %v1515 = vunpack.c.h.b16 %v866
        %v1516 = vunpack.c.l.b16 %v867
        %v1517 = vunpack.c.h.b16 %v867
        %v1518 = vunpack.c.l.b16 %v868
        %v1519 = vunpack.c.h.b16 %v868
        %v1520 = vunpack.c.l.b16 %v869
        %v1521 = vunpack.c.h.b16 %v869
        %v1522 = vunpack.c.l.b16 %v870
        %v1523 = vunpack.c.h.b16 %v870
        %v1524 = vunpack.c.l.b16 %v871
        %v1525 = vunpack.c.h.b16 %v871
        %v1526 = vunpack.c.l.b16 %v872
        %v1527 = vunpack.c.h.b16 %v872
        %v1528 = vunpack.c.l.b16 %v873
        %v1529 = vunpack.c.h.b16 %v873
        %v1530 = vunpack.c.l.b16 %v874
        %v1531 = vunpack.c.h.b16 %v874
        %v1532 = vunpack.c.l.b16 %v875
        %v1533 = vunpack.c.h.b16 %v875
        %v1534 = vunpack.c.l.b16 %v876
        %v1535 = vunpack.c.h.b16 %v876
        %v1536 = vunpack.c.l.b16 %v877
        %v1537 = vunpack.c.h.b16 %v877
        %v1538 = vunpack.c.l.b16 %v878
        %v1539 = vunpack.c.h.b16 %v878
        %v1540 = vunpack.c.l.b16 %v879
        %v1541 = vunpack.c.h.b16 %v879
        %v1542 = vunpack.c.l.b16 %v880
        %v1543 = vunpack.c.h.b16 %v880
        %v1544 = vunpack.c.l.b16 %v881
        %v1545 = vunpack.c.h.b16 %v881
        %v1546 = vunpack.c.l.b16 %v882
        %v1547 = vunpack.c.h.b16 %v882
        %v1548 = vunpack.c.l.b16 %v883
        %v1549 = vunpack.c.h.b16 %v883
        %v1550 = vunpack.c.l.b16 %v884
        %v1551 = vunpack.c.h.b16 %v884
        %v1552 = vunpack.c.l.b16 %v885
        %v1553 = vunpack.c.h.b16 %v885
        %v1554 = vunpack.c.l.b16 %v886
        %v1555 = vunpack.c.h.b16 %v886
        %v1556 = vunpack.c.l.b16 %v887
        %v1557 = vunpack.c.h.b16 %v887
        %v1558 = vunpack.c.l.b16 %v888
        %v1559 = vunpack.c.h.b16 %v888
        %v1560 = vunpack.c.l.b16 %v889
        %v1561 = vunpack.c.h.b16 %v889
        %v1562 = vunpack.c.l.b16 %v890
        %v1563 = vunpack.c.h.b16 %v890
        %v1564 = vunpack.c.l.b16 %v891
        %v1565 = vunpack.c.h.b16 %v891
        %v1566 = vunpack.c.l.b16 %v892
        %v1567 = vunpack.c.h.b16 %v892
        %v1568 = vunpack.c.l.b16 %v893
        %v1569 = vunpack.c.h.b16 %v893
        %v1570 = vunpack.c.l.b16 %v894
        %v1571 = vunpack.c.h.b16 %v894
        %v1572 = vunpack.c.l.b16 %v895
        %v1573 = vunpack.c.h.b16 %v895
        %v1574 = vunpack.c.l.b16 %v896
        %v1575 = vunpack.c.h.b16 %v896
        %v1576 = vunpack.c.l.b16 %v897
        %v1577 = vunpack.c.h.b16 %v897
        %v1578 = vunpack.c.l.b16 %v898
        %v1579 = vunpack.c.h.b16 %v898
        %v1580 = vunpack.c.l.b16 %v899
        %v1581 = vunpack.c.h.b16 %v899
        %v1582 = vunpack.c.l.b16 %v900
        %v1583 = vunpack.c.h.b16 %v900
        %v1584 = vunpack.c.l.b16 %v901
        %v1585 = vunpack.c.h.b16 %v901
        %v1586 = vunpack.c.l.b16 %v902
        %v1587 = vunpack.c.h.b16 %v902
        %v1588 = vunpack.c.l.b16 %v903
        %v1589 = vunpack.c.h.b16 %v903
        %v1590 = vunpack.c.l.b16 %v904
        %v1591 = vunpack.c.h.b16 %v904
        %v1592 = vunpack.c.l.b16 %v905
        %v1593 = vunpack.c.h.b16 %v905
        %v1594 = vunpack.c.l.b16 %v906
        %v1595 = vunpack.c.h.b16 %v906
        %v1596 = vunpack.c.l.b16 %v907
        %v1597 = vunpack.c.h.b16 %v907
        %v1598 = vunpack.c.l.b16 %v908
        %v1599 = vunpack.c.h.b16 %v908
        %v1600 = vunpack.c.l.b16 %v909
        %v1601 = vunpack.c.h.b16 %v909
        %v1602 = vunpack.c.l.b16 %v910
        %v1603 = vunpack.c.h.b16 %v910
        %v1604 = vunpack.c.l.b16 %v911
        %v1605 = vunpack.c.h.b16 %v911
        %v1606 = vunpack.c.l.b16 %v912
        %v1607 = vunpack.c.h.b16 %v912
        %v1608 = vunpack.c.l.b16 %v913
        %v1609 = vunpack.c.h.b16 %v913
        %v1610 = vunpack.c.l.b16 %v914
        %v1611 = vunpack.c.h.b16 %v914
        %v1612 = vunpack.c.l.b16 %v915
        %v1613 = vunpack.c.h.b16 %v915
        %v1614 = vunpack.c.l.b16 %v916
        %v1615 = vunpack.c.h.b16 %v916
        %v1616 = vunpack.c.l.b16 %v917
        %v1617 = vunpack.c.h.b16 %v917
        %v1618 = vunpack.c.l.b16 %v918
        %v1619 = vunpack.c.h.b16 %v918
        %v1620 = vunpack.c.l.b16 %v919
        %v1621 = vunpack.c.h.b16 %v919
        %v1622 = vunpack.c.l.b16 %v920
        %v1623 = vunpack.c.h.b16 %v920
        %v1624 = vunpack.c.l.b16 %v921
        %v1625 = vunpack.c.h.b16 %v921
        %v1626 = vunpack.c.l.b16 %v922
        %v1627 = vunpack.c.h.b16 %v922
        %v1628 = vunpack.c.l.b16 %v923
        %v1629 = vunpack.c.h.b16 %v923
        %v1630 = vunpack.c.l.b16 %v924
        %v1631 = vunpack.c.h.b16 %v924
        %v1632 = vunpack.c.l.b16 %v925
        %v1633 = vunpack.c.h.b16 %v925
        %v1634 = vunpack.c.l.b16 %v926
        %v1635 = vunpack.c.h.b16 %v926
        %v1636 = vunpack.c.l.b16 %v927
        %v1637 = vunpack.c.h.b16 %v927
        %v1638 = vunpack.c.l.b16 %v928
        %v1639 = vunpack.c.h.b16 %v928
        %v1640 = vunpack.c.l.b16 %v929
        %v1641 = vunpack.c.h.b16 %v929
        %v1642 = vunpack.c.l.b16 %v930
        %v1643 = vunpack.c.h.b16 %v930
        %v1644 = vunpack.c.l.b16 %v931
        %v1645 = vunpack.c.h.b16 %v931
        %v1646 = vunpack.c.l.b16 %v932
        %v1647 = vunpack.c.h.b16 %v932
        %v1648 = vunpack.c.l.b16 %v933
        %v1649 = vunpack.c.h.b16 %v933
        %v1650 = vunpack.c.l.b16 %v934
        %v1651 = vunpack.c.h.b16 %v934
        %v1652 = vunpack.c.l.b16 %v935
        %v1653 = vunpack.c.h.b16 %v935
        %v1654 = vunpack.c.l.b16 %v936
        %v1655 = vunpack.c.h.b16 %v936
        %v1656 = vunpack.c.l.b16 %v937
        %v1657 = vunpack.c.h.b16 %v937
        %v1658 = vunpack.c.l.b16 %v938
        %v1659 = vunpack.c.h.b16 %v938
        %v1660 = vunpack.c.l.b16 %v939
        %v1661 = vunpack.c.h.b16 %v939
        %v1662 = vunpack.c.l.b16 %v940
        %v1663 = vunpack.c.h.b16 %v940
        %v1664 = vunpack.c.l.b16 %v941
        %v1665 = vunpack.c.h.b16 %v941
        %v1666 = vunpack.c.l.b16 %v942
        %v1667 = vunpack.c.h.b16 %v942
        %v1668 = vunpack.c.l.b16 %v943
        %v1669 = vunpack.c.h.b16 %v943
        %v1670 = vunpack.c.l.b16 %v944
        %v1671 = vunpack.c.h.b16 %v944
        %v1672 = vunpack.c.l.b16 %v945
        %v1673 = vunpack.c.h.b16 %v945
        %v1674 = vunpack.c.l.b16 %v946
        %v1675 = vunpack.c.h.b16 %v946
        %v1676 = vunpack.c.l.b16 %v947
        %v1677 = vunpack.c.h.b16 %v947
        %v1678 = vunpack.c.l.b16 %v948
        %v1679 = vunpack.c.h.b16 %v948
        %v1680 = vunpack.c.l.b16 %v949
        %v1681 = vunpack.c.h.b16 %v949
        %v1682 = vunpack.c.l.b16 %v950
        %v1683 = vunpack.c.h.b16 %v950
        %v1684 = vunpack.c.l.b16 %v951
        %v1685 = vunpack.c.h.b16 %v951
        %v1686 = vunpack.c.l.b16 %v952
        %v1687 = vunpack.c.h.b16 %v952
        %v1688 = vunpack.c.l.b16 %v953
        %v1689 = vunpack.c.h.b16 %v953
        %v1690 = vunpack.c.l.b16 %v954
        %v1691 = vunpack.c.h.b16 %v954
        %v1692 = vunpack.c.l.b16 %v955
        %v1693 = vunpack.c.h.b16 %v955
        %v1694 = vunpack.c.l.b16 %v956
        %v1695 = vunpack.c.h.b16 %v956
        %v1696 = vunpack.c.l.b16 %v957
        %v1697 = vunpack.c.h.b16 %v957
        %v1698 = vunpack.c.l.b16 %v958
        %v1699 = vunpack.c.h.b16 %v958
        %v1700 = vunpack.c.l.b16 %v959
        %v1701 = vunpack.c.h.b16 %v959
        %v1702 = vunpack.c.l.b16 %v960
        %v1703 = vunpack.c.h.b16 %v960
        %v1704 = vunpack.c.l.b16 %v961
        %v1705 = vunpack.c.h.b16 %v961
        %v1706 = vunpack.c.l.b16 %v962
        %v1707 = vunpack.c.h.b16 %v962
        %v1708 = vunpack.c.l.b16 %v963
        %v1709 = vunpack.c.h.b16 %v963
        %v1710 = vunpack.c.l.b16 %v964
        %v1711 = vunpack.c.h.b16 %v964
        %v1712 = vunpack.c.l.b16 %v965
        %v1713 = vunpack.c.h.b16 %v965
        %v1714 = vunpack.c.l.b16 %v966
        %v1715 = vunpack.c.h.b16 %v966
        %v1716 = vunpack.c.l.b16 %v967
        %v1717 = vunpack.c.h.b16 %v967
        %v1718 = vunpack.c.l.b16 %v968
        %v1719 = vunpack.c.h.b16 %v968
        %v1720 = vunpack.c.l.b16 %v969
        %v1721 = vunpack.c.h.b16 %v969
        %v1722 = vunpack.c.l.b16 %v970
        %v1723 = vunpack.c.h.b16 %v970
        %v1724 = vunpack.c.l.b16 %v971
        %v1725 = vunpack.c.h.b16 %v971
        %v1726 = vunpack.c.l.b16 %v972
        %v1727 = vunpack.c.h.b16 %v972
        %v1728 = vunpack.c.l.b16 %v973
        %v1729 = vunpack.c.h.b16 %v973
        %v1730 = vunpack.c.l.b16 %v974
        %v1731 = vunpack.c.h.b16 %v974
        %v1732 = vunpack.c.l.b16 %v975
        %v1733 = vunpack.c.h.b16 %v975
        %v1734 = vunpack.c.l.b16 %v976
        %v1735 = vunpack.c.h.b16 %v976
        %v1736 = vunpack.c.l.b16 %v977
        %v1737 = vunpack.c.h.b16 %v977
        %v1738 = vunpack.c.l.b16 %v978
        %v1739 = vunpack.c.h.b16 %v978
        %v1740 = vunpack.c.l.b16 %v979
        %v1741 = vunpack.c.h.b16 %v979
        %v1742 = vunpack.c.l.b16 %v980
        %v1743 = vunpack.c.h.b16 %v980
        %v1744 = vunpack.c.l.b16 %v981
        %v1745 = vunpack.c.h.b16 %v981
        %v1746 = vunpack.c.l.b16 %v982
        %v1747 = vunpack.c.h.b16 %v982
        %v1748 = vunpack.c.l.b16 %v983
        %v1749 = vunpack.c.h.b16 %v983
        %v1750 = vunpack.c.l.b16 %v984
        %v1751 = vunpack.c.h.b16 %v984
        %v1752 = vunpack.c.l.b16 %v985
        %v1753 = vunpack.c.h.b16 %v985
        %v1754 = vunpack.c.l.b16 %v986
        %v1755 = vunpack.c.h.b16 %v986
        %v1756 = vunpack.c.l.b16 %v987
        %v1757 = vunpack.c.h.b16 %v987
        %v1758 = vunpack.c.l.b16 %v988
        %v1759 = vunpack.c.h.b16 %v988
        %v1760 = vunpack.c.l.b16 %v989
        %v1761 = vunpack.c.h.b16 %v989
        %v1762 = vunpack.c.l.b16 %v990
        %v1763 = vunpack.c.h.b16 %v990
        %v1764 = vunpack.c.l.b16 %v991
        %v1765 = vunpack.c.h.b16 %v991
        %v1766 = vunpack.c.l.b16 %v992
        %v1767 = vunpack.c.h.b16 %v992
        %v1768 = vunpack.c.l.b16 %v993
        %v1769 = vunpack.c.h.b16 %v993
        %v1770 = vunpack.c.l.b16 %v994
        %v1771 = vunpack.c.h.b16 %v994
        %v1772 = vunpack.c.l.b16 %v995
        %v1773 = vunpack.c.h.b16 %v995
        %v1774 = vunpack.c.l.b16 %v996
        %v1775 = vunpack.c.h.b16 %v996
        %v1776 = vunpack.c.l.b16 %v997
        %v1777 = vunpack.c.h.b16 %v997
        %v1778 = vunpack.c.l.b16 %v998
        %v1779 = vunpack.c.h.b16 %v998
        %v1780 = vunpack.c.l.b16 %v999
        %v1781 = vunpack.c.h.b16 %v999
        %v1782 = vunpack.c.l.b16 %v1000
        %v1783 = vunpack.c.h.b16 %v1000
        %v1784 = vunpack.c.l.b16 %v1001
        %v1785 = vunpack.c.h.b16 %v1001
        %v1786 = vunpack.c.l.b16 %v1002
        %v1787 = vunpack.c.h.b16 %v1002
        %v1788 = vunpack.c.l.b16 %v1003
        %v1789 = vunpack.c.h.b16 %v1003
        %v1790 = vunpack.c.l.b16 %v1004
        %v1791 = vunpack.c.h.b16 %v1004
        %v1792 = vunpack.c.l.b16 %v1005
        %v1793 = vunpack.c.h.b16 %v1005
        %v1794 = vunpack.c.l.b16 %v1006
        %v1795 = vunpack.c.h.b16 %v1006
        %v1796 = vunpack.c.l.b16 %v1007
        %v1797 = vunpack.c.h.b16 %v1007
        %v1798 = vpack.c.b16 %v1290, %v1286
        %v1799 = vpack.c.b16 %v1291, %v1287
        %v1800 = vpack.c.b16 %v1292, %v1288
        %v1801 = vpack.c.b16 %v1293, %v1289
        %v1802 = vpack.c.b16 %v1298, %v1294
        %v1803 = vpack.c.b16 %v1299, %v1295
        %v1804 = vpack.c.b16 %v1300, %v1296
        %v1805 = vpack.c.b16 %v1301, %v1297
        %v1806 = vpack.c.b16 %v1306, %v1302
        %v1807 = vpack.c.b16 %v1307, %v1303
        %v1808 = vpack.c.b16 %v1308, %v1304
        %v1809 = vpack.c.b16 %v1309, %v1305
        %v1810 = vpack.c.b16 %v1314, %v1310
        %v1811 = vpack.c.b16 %v1315, %v1311
        %v1812 = vpack.c.b16 %v1316, %v1312
        %v1813 = vpack.c.b16 %v1317, %v1313
        %v1814 = vpack.c.b16 %v1322, %v1318
        %v1815 = vpack.c.b16 %v1323, %v1319
        %v1816 = vpack.c.b16 %v1324, %v1320
        %v1817 = vpack.c.b16 %v1325, %v1321
        %v1818 = vpack.c.b16 %v1330, %v1326
        %v1819 = vpack.c.b16 %v1331, %v1327
        %v1820 = vpack.c.b16 %v1332, %v1328
        %v1821 = vpack.c.b16 %v1333, %v1329
        %v1822 = vpack.c.b16 %v1338, %v1334
        %v1823 = vpack.c.b16 %v1339, %v1335
        %v1824 = vpack.c.b16 %v1340, %v1336
        %v1825 = vpack.c.b16 %v1341, %v1337
        %v1826 = vpack.c.b16 %v1346, %v1342
        %v1827 = vpack.c.b16 %v1347, %v1343
        %v1828 = vpack.c.b16 %v1348, %v1344
        %v1829 = vpack.c.b16 %v1349, %v1345
        %v1830 = vpack.c.b16 %v1354, %v1350
        %v1831 = vpack.c.b16 %v1355, %v1351
        %v1832 = vpack.c.b16 %v1356, %v1352
        %v1833 = vpack.c.b16 %v1357, %v1353
        %v1834 = vpack.c.b16 %v1362, %v1358
        %v1835 = vpack.c.b16 %v1363, %v1359
        %v1836 = vpack.c.b16 %v1364, %v1360
        %v1837 = vpack.c.b16 %v1365, %v1361
        %v1838 = vpack.c.b16 %v1370, %v1366
        %v1839 = vpack.c.b16 %v1371, %v1367
        %v1840 = vpack.c.b16 %v1372, %v1368
        %v1841 = vpack.c.b16 %v1373, %v1369
        %v1842 = vpack.c.b16 %v1378, %v1374
        %v1843 = vpack.c.b16 %v1379, %v1375
        %v1844 = vpack.c.b16 %v1380, %v1376
        %v1845 = vpack.c.b16 %v1381, %v1377
        %v1846 = vpack.c.b16 %v1386, %v1382
        %v1847 = vpack.c.b16 %v1387, %v1383
        %v1848 = vpack.c.b16 %v1388, %v1384
        %v1849 = vpack.c.b16 %v1389, %v1385
        %v1850 = vpack.c.b16 %v1394, %v1390
        %v1851 = vpack.c.b16 %v1395, %v1391
        %v1852 = vpack.c.b16 %v1396, %v1392
        %v1853 = vpack.c.b16 %v1397, %v1393
        %v1854 = vpack.c.b16 %v1402, %v1398
        %v1855 = vpack.c.b16 %v1403, %v1399
        %v1856 = vpack.c.b16 %v1404, %v1400
        %v1857 = vpack.c.b16 %v1405, %v1401
        %v1858 = vpack.c.b16 %v1410, %v1406
        %v1859 = vpack.c.b16 %v1411, %v1407
        %v1860 = vpack.c.b16 %v1412, %v1408
        %v1861 = vpack.c.b16 %v1413, %v1409
        %v1862 = vpack.c.b16 %v1418, %v1414
        %v1863 = vpack.c.b16 %v1419, %v1415
        %v1864 = vpack.c.b16 %v1420, %v1416
        %v1865 = vpack.c.b16 %v1421, %v1417
        %v1866 = vpack.c.b16 %v1426, %v1422
        %v1867 = vpack.c.b16 %v1427, %v1423
        %v1868 = vpack.c.b16 %v1428, %v1424
        %v1869 = vpack.c.b16 %v1429, %v1425
        %v1870 = vpack.c.b16 %v1434, %v1430
        %v1871 = vpack.c.b16 %v1435, %v1431
        %v1872 = vpack.c.b16 %v1436, %v1432
        %v1873 = vpack.c.b16 %v1437, %v1433
        %v1874 = vpack.c.b16 %v1442, %v1438
        %v1875 = vpack.c.b16 %v1443, %v1439
        %v1876 = vpack.c.b16 %v1444, %v1440
        %v1877 = vpack.c.b16 %v1445, %v1441
        %v1878 = vpack.c.b16 %v1450, %v1446
        %v1879 = vpack.c.b16 %v1451, %v1447
        %v1880 = vpack.c.b16 %v1452, %v1448
        %v1881 = vpack.c.b16 %v1453, %v1449
        %v1882 = vpack.c.b16 %v1458, %v1454
        %v1883 = vpack.c.b16 %v1459, %v1455
        %v1884 = vpack.c.b16 %v1460, %v1456
        %v1885 = vpack.c.b16 %v1461, %v1457
        %v1886 = vpack.c.b16 %v1466, %v1462
        %v1887 = vpack.c.b16 %v1467, %v1463
        %v1888 = vpack.c.b16 %v1468, %v1464
        %v1889 = vpack.c.b16 %v1469, %v1465
        %v1890 = vpack.c.b16 %v1474, %v1470
        %v1891 = vpack.c.b16 %v1475, %v1471
        %v1892 = vpack.c.b16 %v1476, %v1472
        %v1893 = vpack.c.b16 %v1477, %v1473
        %v1894 = vpack.c.b16 %v1482, %v1478
        %v1895 = vpack.c.b16 %v1483, %v1479
        %v1896 = vpack.c.b16 %v1484, %v1480
        %v1897 = vpack.c.b16 %v1485, %v1481
        %v1898 = vpack.c.b16 %v1490, %v1486
        %v1899 = vpack.c.b16 %v1491, %v1487
        %v1900 = vpack.c.b16 %v1492, %v1488
        %v1901 = vpack.c.b16 %v1493, %v1489
        %v1902 = vpack.c.b16 %v1498, %v1494
        %v1903 = vpack.c.b16 %v1499, %v1495
        %v1904 = vpack.c.b16 %v1500, %v1496
        %v1905 = vpack.c.b16 %v1501, %v1497
        %v1906 = vpack.c.b16 %v1506, %v1502
        %v1907 = vpack.c.b16 %v1507, %v1503
        %v1908 = vpack.c.b16 %v1508, %v1504
        %v1909 = vpack.c.b16 %v1509, %v1505
        %v1910 = vpack.c.b16 %v1514, %v1510
        %v1911 = vpack.c.b16 %v1515, %v1511
        %v1912 = vpack.c.b16 %v1516, %v1512
        %v1913 = vpack.c.b16 %v1517, %v1513
        %v1914 = vpack.c.b16 %v1522, %v1518
        %v1915 = vpack.c.b16 %v1523, %v1519
        %v1916 = vpack.c.b16 %v1524, %v1520
        %v1917 = vpack.c.b16 %v1525, %v1521
        %v1918 = vpack.c.b16 %v1530, %v1526
        %v1919 = vpack.c.b16 %v1531, %v1527
        %v1920 = vpack.c.b16 %v1532, %v1528
        %v1921 = vpack.c.b16 %v1533, %v1529
        %v1922 = vpack.c.b16 %v1538, %v1534
        %v1923 = vpack.c.b16 %v1539, %v1535
        %v1924 = vpack.c.b16 %v1540, %v1536
        %v1925 = vpack.c.b16 %v1541, %v1537
        %v1926 = vpack.c.b16 %v1546, %v1542
        %v1927 = vpack.c.b16 %v1547, %v1543
        %v1928 = vpack.c.b16 %v1548, %v1544
        %v1929 = vpack.c.b16 %v1549, %v1545
        %v1930 = vpack.c.b16 %v1554, %v1550
        %v1931 = vpack.c.b16 %v1555, %v1551
        %v1932 = vpack.c.b16 %v1556, %v1552
        %v1933 = vpack.c.b16 %v1557, %v1553
        %v1934 = vpack.c.b16 %v1562, %v1558
        %v1935 = vpack.c.b16 %v1563, %v1559
        %v1936 = vpack.c.b16 %v1564, %v1560
        %v1937 = vpack.c.b16 %v1565, %v1561
        %v1938 = vpack.c.b16 %v1570, %v1566
        %v1939 = vpack.c.b16 %v1571, %v1567
        %v1940 = vpack.c.b16 %v1572, %v1568
        %v1941 = vpack.c.b16 %v1573, %v1569
        %v1942 = vpack.c.b16 %v1578, %v1574
        %v1943 = vpack.c.b16 %v1579, %v1575
        %v1944 = vpack.c.b16 %v1580, %v1576
        %v1945 = vpack.c.b16 %v1581, %v1577
        %v1946 = vpack.c.b16 %v1586, %v1582
        %v1947 = vpack.c.b16 %v1587, %v1583
        %v1948 = vpack.c.b16 %v1588, %v1584
        %v1949 = vpack.c.b16 %v1589, %v1585
        %v1950 = vpack.c.b16 %v1594, %v1590
        %v1951 = vpack.c.b16 %v1595, %v1591
        %v1952 = vpack.c.b16 %v1596, %v1592
        %v1953 = vpack.c.b16 %v1597, %v1593
        %v1954 = vpack.c.b16 %v1602, %v1598
        %v1955 = vpack.c.b16 %v1603, %v1599
        %v1956 = vpack.c.b16 %v1604, %v1600
        %v1957 = vpack.c.b16 %v1605, %v1601
        %v1958 = vpack.c.b16 %v1610, %v1606
        %v1959 = vpack.c.b16 %v1611, %v1607
        %v1960 = vpack.c.b16 %v1612, %v1608
        %v1961 = vpack.c.b16 %v1613, %v1609
        %v1962 = vpack.c.b16 %v1618, %v1614
        %v1963 = vpack.c.b16 %v1619, %v1615
        %v1964 = vpack.c.b16 %v1620, %v1616
        %v1965 = vpack.c.b16 %v1621, %v1617
        %v1966 = vpack.c.b16 %v1626, %v1622
        %v1967 = vpack.c.b16 %v1627, %v1623
        %v1968 = vpack.c.b16 %v1628, %v1624
        %v1969 = vpack.c.b16 %v1629, %v1625
        %v1970 = vpack.c.b16 %v1634, %v1630
        %v1971 = vpack.c.b16 %v1635, %v1631
        %v1972 = vpack.c.b16 %v1636, %v1632
        %v1973 = vpack.c.b16 %v1637, %v1633
        %v1974 = vpack.c.b16 %v1642, %v1638
        %v1975 = vpack.c.b16 %v1643, %v1639
        %v1976 = vpack.c.b16 %v1644, %v1640
        %v1977 = vpack.c.b16 %v1645, %v1641
        %v1978 = vpack.c.b16 %v1650, %v1646
        %v1979 = vpack.c.b16 %v1651, %v1647
        %v1980 = vpack.c.b16 %v1652, %v1648
        %v1981 = vpack.c.b16 %v1653, %v1649
        %v1982 = vpack.c.b16 %v1658, %v1654
        %v1983 = vpack.c.b16 %v1659, %v1655
        %v1984 = vpack.c.b16 %v1660, %v1656
        %v1985 = vpack.c.b16 %v1661, %v1657
        %v1986 = vpack.c.b16 %v1666, %v1662
        %v1987 = vpack.c.b16 %v1667, %v1663
        %v1988 = vpack.c.b16 %v1668, %v1664
        %v1989 = vpack.c.b16 %v1669, %v1665
        %v1990 = vpack.c.b16 %v1674, %v1670
        %v1991 = vpack.c.b16 %v1675, %v1671
        %v1992 = vpack.c.b16 %v1676, %v1672
        %v1993 = vpack.c.b16 %v1677, %v1673
        %v1994 = vpack.c.b16 %v1682, %v1678
        %v1995 = vpack.c.b16 %v1683, %v1679
        %v1996 = vpack.c.b16 %v1684, %v1680
        %v1997 = vpack.c.b16 %v1685, %v1681
        %v1998 = vpack.c.b16 %v1690, %v1686
        %v1999 = vpack.c.b16 %v1691, %v1687
        %v2000 = vpack.c.b16 %v1692, %v1688
        %v2001 = vpack.c.b16 %v1693, %v1689
        %v2002 = vpack.c.b16 %v1698, %v1694
        %v2003 = vpack.c.b16 %v1699, %v1695
        %v2004 = vpack.c.b16 %v1700, %v1696
        %v2005 = vpack.c.b16 %v1701, %v1697
        %v2006 = vpack.c.b16 %v1706, %v1702
        %v2007 = vpack.c.b16 %v1707, %v1703
        %v2008 = vpack.c.b16 %v1708, %v1704
        %v2009 = vpack.c.b16 %v1709, %v1705
        %v2010 = vpack.c.b16 %v1714, %v1710
        %v2011 = vpack.c.b16 %v1715, %v1711
        %v2012 = vpack.c.b16 %v1716, %v1712
        %v2013 = vpack.c.b16 %v1717, %v1713
        %v2014 = vpack.c.b16 %v1722, %v1718
        %v2015 = vpack.c.b16 %v1723, %v1719
        %v2016 = vpack.c.b16 %v1724, %v1720
        %v2017 = vpack.c.b16 %v1725, %v1721
        %v2018 = vpack.c.b16 %v1730, %v1726
        %v2019 = vpack.c.b16 %v1731, %v1727
        %v2020 = vpack.c.b16 %v1732, %v1728
        %v2021 = vpack.c.b16 %v1733, %v1729
        %v2022 = vpack.c.b16 %v1738, %v1734
        %v2023 = vpack.c.b16 %v1739, %v1735
        %v2024 = vpack.c.b16 %v1740, %v1736
        %v2025 = vpack.c.b16 %v1741, %v1737
        %v2026 = vpack.c.b16 %v1746, %v1742
        %v2027 = vpack.c.b16 %v1747, %v1743
        %v2028 = vpack.c.b16 %v1748, %v1744
        %v2029 = vpack.c.b16 %v1749, %v1745
        %v2030 = vpack.c.b16 %v1754, %v1750
        %v2031 = vpack.c.b16 %v1755, %v1751
        %v2032 = vpack.c.b16 %v1756, %v1752
        %v2033 = vpack.c.b16 %v1757, %v1753
        %v2034 = vpack.c.b16 %v1762, %v1758
        %v2035 = vpack.c.b16 %v1763, %v1759
        %v2036 = vpack.c.b16 %v1764, %v1760
        %v2037 = vpack.c.b16 %v1765, %v1761
        %v2038 = vpack.c.b16 %v1770, %v1766
        %v2039 = vpack.c.b16 %v1771, %v1767
        %v2040 = vpack.c.b16 %v1772, %v1768
        %v2041 = vpack.c.b16 %v1773, %v1769
        %v2042 = vpack.c.b16 %v1778, %v1774
        %v2043 = vpack.c.b16 %v1779, %v1775
        %v2044 = vpack.c.b16 %v1780, %v1776
        %v2045 = vpack.c.b16 %v1781, %v1777
        %v2046 = vpack.c.b16 %v1786, %v1782
        %v2047 = vpack.c.b16 %v1787, %v1783
        %v2048 = vpack.c.b16 %v1788, %v1784
        %v2049 = vpack.c.b16 %v1789, %v1785
        %v2050 = vpack.c.b16 %v1794, %v1790
        %v2051 = vpack.c.b16 %v1795, %v1791
        %v2052 = vpack.c.b16 %v1796, %v1792
        %v2053 = vpack.c.b16 %v1797, %v1793
        %2310 = vmatprep.subr.bf16.mxu0 %v1799
        %2311 = vmatpush1.bf16.msra.mxu0 %v1798
        %2312 = vmatprep.subr.bf16.mxu0 %v1803
        %2313 = vmatpush1.bf16.msra.mxu0 %v1802
        %2314 = vmatprep.subr.bf16.mxu0 %v1807
        %2315 = vmatpush1.bf16.msra.mxu0 %v1806
        %2316 = vmatprep.subr.bf16.mxu0 %v1811
        %2317 = vmatpush1.bf16.msra.mxu0 %v1810
        %2318 = vmatprep.subr.bf16.mxu0 %v1815
        %2319 = vmatpush1.bf16.msra.mxu0 %v1814
        %2320 = vmatprep.subr.bf16.mxu0 %v1819
        %2321 = vmatpush1.bf16.msra.mxu0 %v1818
        %2322 = vmatprep.subr.bf16.mxu0 %v1823
        %2323 = vmatpush1.bf16.msra.mxu0 %v1822
        %2324 = vmatprep.subr.bf16.mxu0 %v1827
        %2325 = vmatpush1.bf16.msra.mxu0 %v1826
        %2326 = vmatprep.subr.bf16.mxu0 %v1831
        %2327 = vmatpush1.bf16.msra.mxu0 %v1830
        %2328 = vmatprep.subr.bf16.mxu0 %v1835
        %2329 = vmatpush1.bf16.msra.mxu0 %v1834
        %2330 = vmatprep.subr.bf16.mxu0 %v1839
        %2331 = vmatpush1.bf16.msra.mxu0 %v1838
        %2332 = vmatprep.subr.bf16.mxu0 %v1843
        %2333 = vmatpush1.bf16.msra.mxu0 %v1842
        %2334 = vmatprep.subr.bf16.mxu0 %v1847
        %2335 = vmatpush1.bf16.msra.mxu0 %v1846
        %2336 = vmatprep.subr.bf16.mxu0 %v1851
        %2337 = vmatpush1.bf16.msra.mxu0 %v1850
        %2338 = vmatprep.subr.bf16.mxu0 %v1855
        %2339 = vmatpush1.bf16.msra.mxu0 %v1854
        %2340 = vmatprep.subr.bf16.mxu0 %v1859
        %2341 = vmatpush1.bf16.msra.mxu0 %v1858
        %2342 = vmatprep.mubr.bf16.mxu0 %v745
        %2343 = vmatmul.mubr.bf16.gmra.mrb[0].mxu0 %v744
        %v2344 = vpop.f32.mrb[0].mxu0
        %v2345 = vadd.f32 %v1013, %v2344
        %v2346 = vpop.f32.mrb[0].mxu0
        %v2347 = vadd.f32 %v1017, %v2346
        %v2348 = vpop.f32.mrb[0].mxu0
        %v2349 = vpop.f32.mrb[0].mxu0
        %2350 = vdwg.mxu0
        %2351 = vmatprep.subr.bf16.mxu0 %v1863
        %2352 = vmatpush1.bf16.msra.mxu0 %v1862
        %2353 = vmatprep.subr.bf16.mxu0 %v1867
        %2354 = vmatpush1.bf16.msra.mxu0 %v1866
        %2355 = vmatprep.subr.bf16.mxu0 %v1871
        %2356 = vmatpush1.bf16.msra.mxu0 %v1870
        %2357 = vmatprep.subr.bf16.mxu0 %v1875
        %2358 = vmatpush1.bf16.msra.mxu0 %v1874
        %2359 = vmatprep.subr.bf16.mxu0 %v1879
        %2360 = vmatpush1.bf16.msra.mxu0 %v1878
        %2361 = vmatprep.subr.bf16.mxu0 %v1883
        %2362 = vmatpush1.bf16.msra.mxu0 %v1882
        %2363 = vmatprep.subr.bf16.mxu0 %v1887
        %2364 = vmatpush1.bf16.msra.mxu0 %v1886
        %2365 = vmatprep.subr.bf16.mxu0 %v1891
        %2366 = vmatpush1.bf16.msra.mxu0 %v1890
        %2367 = vmatprep.subr.bf16.mxu0 %v1895
        %2368 = vmatpush1.bf16.msra.mxu0 %v1894
        %2369 = vmatprep.subr.bf16.mxu0 %v1899
        %2370 = vmatpush1.bf16.msra.mxu0 %v1898
        %2371 = vmatprep.subr.bf16.mxu0 %v1903
        %2372 = vmatpush1.bf16.msra.mxu0 %v1902
        %2373 = vmatprep.subr.bf16.mxu0 %v1907
        %2374 = vmatpush1.bf16.msra.mxu0 %v1906
        %2375 = vmatprep.subr.bf16.mxu0 %v1911
        %2376 = vmatpush1.bf16.msra.mxu0 %v1910
        %2377 = vmatprep.subr.bf16.mxu0 %v1915
        %2378 = vmatpush1.bf16.msra.mxu0 %v1914
        %2379 = vmatprep.subr.bf16.mxu0 %v1919
        %2380 = vmatpush1.bf16.msra.mxu0 %v1918
        %2381 = vmatprep.subr.bf16.mxu0 %v1923
        %2382 = vmatpush1.bf16.msra.mxu0 %v1922
        %2383 = vmatprep.mubr.bf16.mxu0 %v747
        %2384 = vmatmul.mubr.bf16.gmra.mrb[0].mxu0 %v746
        %v2385 = vpop.f32.mrb[0].mxu0
        %v2386 = vadd.f32 %v2345, %v2385
        %v2387 = vpop.f32.mrb[0].mxu0
        %v2388 = vadd.f32 %v2347, %v2387
        %v2389 = vpop.f32.mrb[0].mxu0
        %v2390 = vpop.f32.mrb[0].mxu0
        %2391 = vdwg.mxu0
        %2392 = vmatprep.subr.bf16.mxu0 %v1927
        %2393 = vmatpush1.bf16.msra.mxu0 %v1926
        %2394 = vmatprep.subr.bf16.mxu0 %v1931
        %2395 = vmatpush1.bf16.msra.mxu0 %v1930
        %2396 = vmatprep.subr.bf16.mxu0 %v1935
        %2397 = vmatpush1.bf16.msra.mxu0 %v1934
        %2398 = vmatprep.subr.bf16.mxu0 %v1939
        %2399 = vmatpush1.bf16.msra.mxu0 %v1938
        %2400 = vmatprep.subr.bf16.mxu0 %v1943
        %2401 = vmatpush1.bf16.msra.mxu0 %v1942
        %2402 = vmatprep.subr.bf16.mxu0 %v1947
        %2403 = vmatpush1.bf16.msra.mxu0 %v1946
        %2404 = vmatprep.subr.bf16.mxu0 %v1951
        %2405 = vmatpush1.bf16.msra.mxu0 %v1950
        %2406 = vmatprep.subr.bf16.mxu0 %v1955
        %2407 = vmatpush1.bf16.msra.mxu0 %v1954
        %2408 = vmatprep.subr.bf16.mxu0 %v1959
        %2409 = vmatpush1.bf16.msra.mxu0 %v1958
        %2410 = vmatprep.subr.bf16.mxu0 %v1963
        %2411 = vmatpush1.bf16.msra.mxu0 %v1962
        %2412 = vmatprep.subr.bf16.mxu0 %v1967
        %2413 = vmatpush1.bf16.msra.mxu0 %v1966
        %2414 = vmatprep.subr.bf16.mxu0 %v1971
        %2415 = vmatpush1.bf16.msra.mxu0 %v1970
        %2416 = vmatprep.subr.bf16.mxu0 %v1975
        %2417 = vmatpush1.bf16.msra.mxu0 %v1974
        %2418 = vmatprep.subr.bf16.mxu0 %v1979
        %2419 = vmatpush1.bf16.msra.mxu0 %v1978
        %2420 = vmatprep.subr.bf16.mxu0 %v1983
        %2421 = vmatpush1.bf16.msra.mxu0 %v1982
        %2422 = vmatprep.subr.bf16.mxu0 %v1987
        %2423 = vmatpush1.bf16.msra.mxu0 %v1986
        %2424 = vmatprep.mubr.bf16.mxu0 %v749
        %2425 = vmatmul.mubr.bf16.gmra.mrb[0].mxu0 %v748
        %v2426 = vpop.f32.mrb[0].mxu0
        %v2427 = vadd.f32 %v2386, %v2426
        %v2428 = vpop.f32.mrb[0].mxu0
        %v2429 = vadd.f32 %v2388, %v2428
        %v2430 = vpop.f32.mrb[0].mxu0
        %v2431 = vpop.f32.mrb[0].mxu0
        %2432 = vdwg.mxu0
        %2433 = vmatprep.subr.bf16.mxu0 %v1991
        %2434 = vmatpush1.bf16.msra.mxu0 %v1990
        %2435 = vmatprep.subr.bf16.mxu0 %v1995
        %2436 = vmatpush1.bf16.msra.mxu0 %v1994
        %2437 = vmatprep.subr.bf16.mxu0 %v1999
        %2438 = vmatpush1.bf16.msra.mxu0 %v1998
        %2439 = vmatprep.subr.bf16.mxu0 %v2003
        %2440 = vmatpush1.bf16.msra.mxu0 %v2002
        %2441 = vmatprep.subr.bf16.mxu0 %v2007
        %2442 = vmatpush1.bf16.msra.mxu0 %v2006
        %2443 = vmatprep.subr.bf16.mxu0 %v2011
        %2444 = vmatpush1.bf16.msra.mxu0 %v2010
        %2445 = vmatprep.subr.bf16.mxu0 %v2015
        %2446 = vmatpush1.bf16.msra.mxu0 %v2014
        %2447 = vmatprep.subr.bf16.mxu0 %v2019
        %2448 = vmatpush1.bf16.msra.mxu0 %v2018
        %2449 = vmatprep.subr.bf16.mxu0 %v2023
        %2450 = vmatpush1.bf16.msra.mxu0 %v2022
        %2451 = vmatprep.subr.bf16.mxu0 %v2027
        %2452 = vmatpush1.bf16.msra.mxu0 %v2026
        %2453 = vmatprep.subr.bf16.mxu0 %v2031
        %2454 = vmatpush1.bf16.msra.mxu0 %v2030
        %2455 = vmatprep.subr.bf16.mxu0 %v2035
        %2456 = vmatpush1.bf16.msra.mxu0 %v2034
        %2457 = vmatprep.subr.bf16.mxu0 %v2039
        %2458 = vmatpush1.bf16.msra.mxu0 %v2038
        %2459 = vmatprep.subr.bf16.mxu0 %v2043
        %2460 = vmatpush1.bf16.msra.mxu0 %v2042
        %2461 = vmatprep.subr.bf16.mxu0 %v2047
        %2462 = vmatpush1.bf16.msra.mxu0 %v2046
        %2463 = vmatprep.subr.bf16.mxu0 %v2051
        %2464 = vmatpush1.bf16.msra.mxu0 %v2050
        %2465 = vmatprep.mubr.bf16.mxu0 %v751
        %2466 = vmatmul.mubr.bf16.gmra.mrb[0].mxu0 %v750
        %v2467 = vpop.f32.mrb[0].mxu0
        %v2468 = vadd.f32 %v2427, %v2467
        %v2469 = vpop.f32.mrb[0].mxu0
        %v2470 = vadd.f32 %v2429, %v2469
        %v2471 = vpop.f32.mrb[0].mxu0
        %v2472 = vpop.f32.mrb[0].mxu0
        %2473 = vdwg.mxu0
        %2474 = vmatprep.subr.bf16.mxu0 %v1801
        %2475 = vmatpush1.bf16.msra.mxu0 %v1800
        %2476 = vmatprep.subr.bf16.mxu0 %v1805
        %2477 = vmatpush1.bf16.msra.mxu0 %v1804
        %2478 = vmatprep.subr.bf16.mxu0 %v1809
        %2479 = vmatpush1.bf16.msra.mxu0 %v1808
        %2480 = vmatprep.subr.bf16.mxu0 %v1813
        %2481 = vmatpush1.bf16.msra.mxu0 %v1812
        %2482 = vmatprep.subr.bf16.mxu0 %v1817
        %2483 = vmatpush1.bf16.msra.mxu0 %v1816
        %2484 = vmatprep.subr.bf16.mxu0 %v1821
        %2485 = vmatpush1.bf16.msra.mxu0 %v1820
        %2486 = vmatprep.subr.bf16.mxu0 %v1825
        %2487 = vmatpush1.bf16.msra.mxu0 %v1824
        %2488 = vmatprep.subr.bf16.mxu0 %v1829
        %2489 = vmatpush1.bf16.msra.mxu0 %v1828
        %2490 = vmatprep.subr.bf16.mxu0 %v1833
        %2491 = vmatpush1.bf16.msra.mxu0 %v1832
        %2492 = vmatprep.subr.bf16.mxu0 %v1837
        %2493 = vmatpush1.bf16.msra.mxu0 %v1836
        %2494 = vmatprep.subr.bf16.mxu0 %v1841
        %2495 = vmatpush1.bf16.msra.mxu0 %v1840
        %2496 = vmatprep.subr.bf16.mxu0 %v1845
        %2497 = vmatpush1.bf16.msra.mxu0 %v1844
        %2498 = vmatprep.subr.bf16.mxu0 %v1849
        %2499 = vmatpush1.bf16.msra.mxu0 %v1848
        %2500 = vmatprep.subr.bf16.mxu0 %v1853
        %2501 = vmatpush1.bf16.msra.mxu0 %v1852
        %2502 = vmatprep.subr.bf16.mxu0 %v1857
        %2503 = vmatpush1.bf16.msra.mxu0 %v1856
        %2504 = vmatprep.subr.bf16.mxu0 %v1861
        %2505 = vmatpush1.bf16.msra.mxu0 %v1860
        %2506 = vmatprep.mubr.bf16.mxu0 %v745
        %2507 = vmatmul.mubr.bf16.gmra.mrb[0].mxu0 %v744
        %v2508 = vpop.f32.mrb[0].mxu0
        %v2509 = vadd.f32 %v1021, %v2508
        %v2510 = vpop.f32.mrb[0].mxu0
        %v2511 = vadd.f32 %v1025, %v2510
        %v2512 = vpop.f32.mrb[0].mxu0
        %v2513 = vpop.f32.mrb[0].mxu0
        %2514 = vdwg.mxu0
        %2515 = vmatprep.subr.bf16.mxu0 %v1865
        %2516 = vmatpush1.bf16.msra.mxu0 %v1864
        %2517 = vmatprep.subr.bf16.mxu0 %v1869
        %2518 = vmatpush1.bf16.msra.mxu0 %v1868
        %2519 = vmatprep.subr.bf16.mxu0 %v1873
        %2520 = vmatpush1.bf16.msra.mxu0 %v1872
        %2521 = vmatprep.subr.bf16.mxu0 %v1877
        %2522 = vmatpush1.bf16.msra.mxu0 %v1876
        %2523 = vmatprep.subr.bf16.mxu0 %v1881
        %2524 = vmatpush1.bf16.msra.mxu0 %v1880
        %2525 = vmatprep.subr.bf16.mxu0 %v1885
        %2526 = vmatpush1.bf16.msra.mxu0 %v1884
        %2527 = vmatprep.subr.bf16.mxu0 %v1889
        %2528 = vmatpush1.bf16.msra.mxu0 %v1888
        %2529 = vmatprep.subr.bf16.mxu0 %v1893
        %2530 = vmatpush1.bf16.msra.mxu0 %v1892
        %2531 = vmatprep.subr.bf16.mxu0 %v1897
        %2532 = vmatpush1.bf16.msra.mxu0 %v1896
        %2533 = vmatprep.subr.bf16.mxu0 %v1901
        %2534 = vmatpush1.bf16.msra.mxu0 %v1900
        %2535 = vmatprep.subr.bf16.mxu0 %v1905
        %2536 = vmatpush1.bf16.msra.mxu0 %v1904
        %2537 = vmatprep.subr.bf16.mxu0 %v1909
        %2538 = vmatpush1.bf16.msra.mxu0 %v1908
        %2539 = vmatprep.subr.bf16.mxu0 %v1913
        %2540 = vmatpush1.bf16.msra.mxu0 %v1912
        %2541 = vmatprep.subr.bf16.mxu0 %v1917
        %2542 = vmatpush1.bf16.msra.mxu0 %v1916
        %2543 = vmatprep.subr.bf16.mxu0 %v1921
        %2544 = vmatpush1.bf16.msra.mxu0 %v1920
        %2545 = vmatprep.subr.bf16.mxu0 %v1925
        %2546 = vmatpush1.bf16.msra.mxu0 %v1924
        %2547 = vmatprep.mubr.bf16.mxu0 %v747
        %2548 = vmatmul.mubr.bf16.gmra.mrb[0].mxu0 %v746
        %v2549 = vpop.f32.mrb[0].mxu0
        %v2550 = vadd.f32 %v2509, %v2549
        %v2551 = vpop.f32.mrb[0].mxu0
        %v2552 = vadd.f32 %v2511, %v2551
        %v2553 = vpop.f32.mrb[0].mxu0
        %v2554 = vpop.f32.mrb[0].mxu0
        %2555 = vdwg.mxu0
        %2556 = vmatprep.subr.bf16.mxu0 %v1929
        %2557 = vmatpush1.bf16.msra.mxu0 %v1928
        %2558 = vmatprep.subr.bf16.mxu0 %v1933
        %2559 = vmatpush1.bf16.msra.mxu0 %v1932
        %2560 = vmatprep.subr.bf16.mxu0 %v1937
        %2561 = vmatpush1.bf16.msra.mxu0 %v1936
        %2562 = vmatprep.subr.bf16.mxu0 %v1941
        %2563 = vmatpush1.bf16.msra.mxu0 %v1940
        %2564 = vmatprep.subr.bf16.mxu0 %v1945
        %2565 = vmatpush1.bf16.msra.mxu0 %v1944
        %2566 = vmatprep.subr.bf16.mxu0 %v1949
        %2567 = vmatpush1.bf16.msra.mxu0 %v1948
        %2568 = vmatprep.subr.bf16.mxu0 %v1953
        %2569 = vmatpush1.bf16.msra.mxu0 %v1952
        %2570 = vmatprep.subr.bf16.mxu0 %v1957
        %2571 = vmatpush1.bf16.msra.mxu0 %v1956
        %2572 = vmatprep.subr.bf16.mxu0 %v1961
        %2573 = vmatpush1.bf16.msra.mxu0 %v1960
        %2574 = vmatprep.subr.bf16.mxu0 %v1965
        %2575 = vmatpush1.bf16.msra.mxu0 %v1964
        %2576 = vmatprep.subr.bf16.mxu0 %v1969
        %2577 = vmatpush1.bf16.msra.mxu0 %v1968
        %2578 = vmatprep.subr.bf16.mxu0 %v1973
        %2579 = vmatpush1.bf16.msra.mxu0 %v1972
        %2580 = vmatprep.subr.bf16.mxu0 %v1977
        %2581 = vmatpush1.bf16.msra.mxu0 %v1976
        %2582 = vmatprep.subr.bf16.mxu0 %v1981
        %2583 = vmatpush1.bf16.msra.mxu0 %v1980
        %2584 = vmatprep.subr.bf16.mxu0 %v1985
        %2585 = vmatpush1.bf16.msra.mxu0 %v1984
        %2586 = vmatprep.subr.bf16.mxu0 %v1989
        %2587 = vmatpush1.bf16.msra.mxu0 %v1988
        %2588 = vmatprep.mubr.bf16.mxu0 %v749
        %2589 = vmatmul.mubr.bf16.gmra.mrb[0].mxu0 %v748
        %v2590 = vpop.f32.mrb[0].mxu0
        %v2591 = vadd.f32 %v2550, %v2590
        %v2592 = vpop.f32.mrb[0].mxu0
        %v2593 = vadd.f32 %v2552, %v2592
        %v2594 = vpop.f32.mrb[0].mxu0
        %v2595 = vpop.f32.mrb[0].mxu0
        %2596 = vdwg.mxu0
        %2597 = vmatprep.subr.bf16.mxu0 %v1993
        %2598 = vmatpush1.bf16.msra.mxu0 %v1992
        %2599 = vmatprep.subr.bf16.mxu0 %v1997
        %2600 = vmatpush1.bf16.msra.mxu0 %v1996
        %2601 = vmatprep.subr.bf16.mxu0 %v2001
        %2602 = vmatpush1.bf16.msra.mxu0 %v2000
        %2603 = vmatprep.subr.bf16.mxu0 %v2005
        %2604 = vmatpush1.bf16.msra.mxu0 %v2004
        %2605 = vmatprep.subr.bf16.mxu0 %v2009
        %2606 = vmatpush1.bf16.msra.mxu0 %v2008
        %2607 = vmatprep.subr.bf16.mxu0 %v2013
        %2608 = vmatpush1.bf16.msra.mxu0 %v2012
        %2609 = vmatprep.subr.bf16.mxu0 %v2017
        %2610 = vmatpush1.bf16.msra.mxu0 %v2016
        %2611 = vmatprep.subr.bf16.mxu0 %v2021
        %2612 = vmatpush1.bf16.msra.mxu0 %v2020
        %2613 = vmatprep.subr.bf16.mxu0 %v2025
        %2614 = vmatpush1.bf16.msra.mxu0 %v2024
        %2615 = vmatprep.subr.bf16.mxu0 %v2029
        %2616 = vmatpush1.bf16.msra.mxu0 %v2028
        %2617 = vmatprep.subr.bf16.mxu0 %v2033
        %2618 = vmatpush1.bf16.msra.mxu0 %v2032
        %2619 = vmatprep.subr.bf16.mxu0 %v2037
        %2620 = vmatpush1.bf16.msra.mxu0 %v2036
        %2621 = vmatprep.subr.bf16.mxu0 %v2041
        %2622 = vmatpush1.bf16.msra.mxu0 %v2040
        %2623 = vmatprep.subr.bf16.mxu0 %v2045
        %2624 = vmatpush1.bf16.msra.mxu0 %v2044
        %2625 = vmatprep.subr.bf16.mxu0 %v2049
        %2626 = vmatpush1.bf16.msra.mxu0 %v2048
        %2627 = vmatprep.subr.bf16.mxu0 %v2053
        %2628 = vmatpush1.bf16.msra.mxu0 %v2052
        %2629 = vmatprep.mubr.bf16.mxu0 %v751
        %2630 = vmatmul.mubr.bf16.gmra.mrb[0].mxu0 %v750
        %v2631 = vpop.f32.mrb[0].mxu0
        %v2632 = vadd.f32 %v2591, %v2631
        %v2633 = vpop.f32.mrb[0].mxu0
        %v2634 = vadd.f32 %v2593, %v2633
        %v2635 = vpop.f32.mrb[0].mxu0
        %v2636 = vpop.f32.mrb[0].mxu0
        %2637 = vdwg.mxu0
        %v2638 = vmul.f32 %v2468, 0.2
        %v2639 = vmul.f32 %v2470, 0.2
        %v2640 = vmul.f32 %v2632, 0.2
        %v2641 = vmul.f32 %v2634, 0.2
        %v2642 = vmax.f32 %v2468, %v2638
        %v2643 = vmax.f32 %v2470, %v2639
        %v2644 = vmax.f32 %v2632, %v2640
        %v2645 = vmax.f32 %v2634, %v2641
        %v2646 = vpack.c.bf16 %v2642, %v2642
        %v2647 = vpack.c.bf16 %v2643, %v2643
        %v2648 = vpack.c.bf16 %v2644, %v2644
        %v2649 = vpack.c.bf16 %v2645, %v2645
        %v2650 = vld [vmem:[#allocation9] sm:$0xff]
        %v2651 = vld [vmem:[#allocation9 + $0x8] sm:$0xff]
        %v2652 = vld [vmem:[#allocation9 + $0x10] sm:$0xff]
        %v2653 = vld [vmem:[#allocation9 + $0x18] sm:$0xff]
        %v2654 = vld [vmem:[#allocation9 + $0x20] sm:$0xff]
        %v2655 = vld [vmem:[#allocation9 + $0x28] sm:$0xff]
        %v2656 = vld [vmem:[#allocation9 + $0x30] sm:$0xff]
        %v2657 = vld [vmem:[#allocation9 + $0x38] sm:$0xff]
        %v2658 = vld [vmem:[#allocation9 + $0x40] sm:$0xff]
        %v2659 = vld [vmem:[#allocation9 + $0x48] sm:$0xff]
        %v2660 = vld [vmem:[#allocation9 + $0x50] sm:$0xff]
        %v2661 = vld [vmem:[#allocation9 + $0x58] sm:$0xff]
        %v2662 = vld [vmem:[#allocation9 + $0x60] sm:$0xff]
        %v2663 = vld [vmem:[#allocation9 + $0x68] sm:$0xff]
        %v2664 = vld [vmem:[#allocation9 + $0x70] sm:$0xff]
        %v2665 = vld [vmem:[#allocation9 + $0x78] sm:$0xff]
        %v2666 = vld [vmem:[#allocation9 + $0x80] sm:$0xff]
        %v2667 = vld [vmem:[#allocation9 + $0x88] sm:$0xff]
        %v2668 = vld [vmem:[#allocation9 + $0x90] sm:$0xff]
        %v2669 = vld [vmem:[#allocation9 + $0x98] sm:$0xff]
        %v2670 = vld [vmem:[#allocation9 + $0xa0] sm:$0xff]
        %v2671 = vld [vmem:[#allocation9 + $0xa8] sm:$0xff]
        %v2672 = vld [vmem:[#allocation9 + $0xb0] sm:$0xff]
        %v2673 = vld [vmem:[#allocation9 + $0xb8] sm:$0xff]
        %v2674 = vld [vmem:[#allocation9 + $0xc0] sm:$0xff]
        %v2675 = vld [vmem:[#allocation9 + $0xc8] sm:$0xff]
        %v2676 = vld [vmem:[#allocation9 + $0xd0] sm:$0xff]
        %v2677 = vld [vmem:[#allocation9 + $0xd8] sm:$0xff]
        %v2678 = vld [vmem:[#allocation9 + $0xe0] sm:$0xff]
        %v2679 = vld [vmem:[#allocation9 + $0xe8] sm:$0xff]
        %v2680 = vld [vmem:[#allocation9 + $0xf0] sm:$0xff]
        %v2681 = vld [vmem:[#allocation9 + $0xf8] sm:$0xff]
        %v2682 = vld [vmem:[#allocation9 + $0x100] sm:$0xff]
        %v2683 = vld [vmem:[#allocation9 + $0x108] sm:$0xff]
        %v2684 = vld [vmem:[#allocation9 + $0x110] sm:$0xff]
        %v2685 = vld [vmem:[#allocation9 + $0x118] sm:$0xff]
        %v2686 = vld [vmem:[#allocation9 + $0x120] sm:$0xff]
        %v2687 = vld [vmem:[#allocation9 + $0x128] sm:$0xff]
        %v2688 = vld [vmem:[#allocation9 + $0x130] sm:$0xff]
        %v2689 = vld [vmem:[#allocation9 + $0x138] sm:$0xff]
        %v2690 = vld [vmem:[#allocation9 + $0x140] sm:$0xff]
        %v2691 = vld [vmem:[#allocation9 + $0x148] sm:$0xff]
        %v2692 = vld [vmem:[#allocation9 + $0x150] sm:$0xff]
        %v2693 = vld [vmem:[#allocation9 + $0x158] sm:$0xff]
        %v2694 = vld [vmem:[#allocation9 + $0x160] sm:$0xff]
        %v2695 = vld [vmem:[#allocation9 + $0x168] sm:$0xff]
        %v2696 = vld [vmem:[#allocation9 + $0x170] sm:$0xff]
        %v2697 = vld [vmem:[#allocation9 + $0x178] sm:$0xff]
        %v2698 = vld [vmem:[#allocation9 + $0x180] sm:$0xff]
        %v2699 = vld [vmem:[#allocation9 + $0x188] sm:$0xff]
        %v2700 = vld [vmem:[#allocation9 + $0x190] sm:$0xff]
        %v2701 = vld [vmem:[#allocation9 + $0x198] sm:$0xff]
        %v2702 = vld [vmem:[#allocation9 + $0x1a0] sm:$0xff]
        %v2703 = vld [vmem:[#allocation9 + $0x1a8] sm:$0xff]
        %v2704 = vld [vmem:[#allocation9 + $0x1b0] sm:$0xff]
        %v2705 = vld [vmem:[#allocation9 + $0x1b8] sm:$0xff]
        %v2706 = vld [vmem:[#allocation9 + $0x1c0] sm:$0xff]
        %v2707 = vld [vmem:[#allocation9 + $0x1c8] sm:$0xff]
        %v2708 = vld [vmem:[#allocation9 + $0x1d0] sm:$0xff]
        %v2709 = vld [vmem:[#allocation9 + $0x1d8] sm:$0xff]
        %v2710 = vld [vmem:[#allocation9 + $0x1e0] sm:$0xff]
        %v2711 = vld [vmem:[#allocation9 + $0x1e8] sm:$0xff]
        %v2712 = vld [vmem:[#allocation9 + $0x1f0] sm:$0xff]
        %v2713 = vld [vmem:[#allocation9 + $0x1f8] sm:$0xff]
        %v2714 = vld [vmem:[%s6] sm:$0x3]
        %v2716 = vlaneseq
        %v2717 = vshrl.u32 %v2716, 7
        %v2718 = vsub.s32 0, %v2717
        %v2719 = vrot.slane %v2714, %v2718
        %v2720 = vlaneseq
        %v2721 = vshrl.u32 %v2720, 7
        %v2722 = vsub.s32 1, %v2721
        %v2723 = vrot.slane %v2714, %v2722
        %v2790 = vunpack.c.l.b16 %v2650
        %v2791 = vunpack.c.h.b16 %v2650
        %v2792 = vunpack.c.l.b16 %v2651
        %v2793 = vunpack.c.h.b16 %v2651
        %v2794 = vunpack.c.l.b16 %v2652
        %v2795 = vunpack.c.h.b16 %v2652
        %v2796 = vunpack.c.l.b16 %v2653
        %v2797 = vunpack.c.h.b16 %v2653
        %v2798 = vunpack.c.l.b16 %v2654
        %v2799 = vunpack.c.h.b16 %v2654
        %v2800 = vunpack.c.l.b16 %v2655
        %v2801 = vunpack.c.h.b16 %v2655
        %v2802 = vunpack.c.l.b16 %v2656
        %v2803 = vunpack.c.h.b16 %v2656
        %v2804 = vunpack.c.l.b16 %v2657
        %v2805 = vunpack.c.h.b16 %v2657
        %v2806 = vunpack.c.l.b16 %v2658
        %v2807 = vunpack.c.h.b16 %v2658
        %v2808 = vunpack.c.l.b16 %v2659
        %v2809 = vunpack.c.h.b16 %v2659
        %v2810 = vunpack.c.l.b16 %v2660
        %v2811 = vunpack.c.h.b16 %v2660
        %v2812 = vunpack.c.l.b16 %v2661
        %v2813 = vunpack.c.h.b16 %v2661
        %v2814 = vunpack.c.l.b16 %v2662
        %v2815 = vunpack.c.h.b16 %v2662
        %v2816 = vunpack.c.l.b16 %v2663
        %v2817 = vunpack.c.h.b16 %v2663
        %v2818 = vunpack.c.l.b16 %v2664
        %v2819 = vunpack.c.h.b16 %v2664
        %v2820 = vunpack.c.l.b16 %v2665
        %v2821 = vunpack.c.h.b16 %v2665
        %v2822 = vunpack.c.l.b16 %v2666
        %v2823 = vunpack.c.h.b16 %v2666
        %v2824 = vunpack.c.l.b16 %v2667
        %v2825 = vunpack.c.h.b16 %v2667
        %v2826 = vunpack.c.l.b16 %v2668
        %v2827 = vunpack.c.h.b16 %v2668
        %v2828 = vunpack.c.l.b16 %v2669
        %v2829 = vunpack.c.h.b16 %v2669
        %v2830 = vunpack.c.l.b16 %v2670
        %v2831 = vunpack.c.h.b16 %v2670
        %v2832 = vunpack.c.l.b16 %v2671
        %v2833 = vunpack.c.h.b16 %v2671
        %v2834 = vunpack.c.l.b16 %v2672
        %v2835 = vunpack.c.h.b16 %v2672
        %v2836 = vunpack.c.l.b16 %v2673
        %v2837 = vunpack.c.h.b16 %v2673
        %v2838 = vunpack.c.l.b16 %v2674
        %v2839 = vunpack.c.h.b16 %v2674
        %v2840 = vunpack.c.l.b16 %v2675
        %v2841 = vunpack.c.h.b16 %v2675
        %v2842 = vunpack.c.l.b16 %v2676
        %v2843 = vunpack.c.h.b16 %v2676
        %v2844 = vunpack.c.l.b16 %v2677
        %v2845 = vunpack.c.h.b16 %v2677
        %v2846 = vunpack.c.l.b16 %v2678
        %v2847 = vunpack.c.h.b16 %v2678
        %v2848 = vunpack.c.l.b16 %v2679
        %v2849 = vunpack.c.h.b16 %v2679
        %v2850 = vunpack.c.l.b16 %v2680
        %v2851 = vunpack.c.h.b16 %v2680
        %v2852 = vunpack.c.l.b16 %v2681
        %v2853 = vunpack.c.h.b16 %v2681
        %v2854 = vunpack.c.l.b16 %v2682
        %v2855 = vunpack.c.h.b16 %v2682
        %v2856 = vunpack.c.l.b16 %v2683
        %v2857 = vunpack.c.h.b16 %v2683
        %v2858 = vunpack.c.l.b16 %v2684
        %v2859 = vunpack.c.h.b16 %v2684
        %v2860 = vunpack.c.l.b16 %v2685
        %v2861 = vunpack.c.h.b16 %v2685
        %v2862 = vunpack.c.l.b16 %v2686
        %v2863 = vunpack.c.h.b16 %v2686
        %v2864 = vunpack.c.l.b16 %v2687
        %v2865 = vunpack.c.h.b16 %v2687
        %v2866 = vunpack.c.l.b16 %v2688
        %v2867 = vunpack.c.h.b16 %v2688
        %v2868 = vunpack.c.l.b16 %v2689
        %v2869 = vunpack.c.h.b16 %v2689
        %v2870 = vunpack.c.l.b16 %v2690
        %v2871 = vunpack.c.h.b16 %v2690
        %v2872 = vunpack.c.l.b16 %v2691
        %v2873 = vunpack.c.h.b16 %v2691
        %v2874 = vunpack.c.l.b16 %v2692
        %v2875 = vunpack.c.h.b16 %v2692
        %v2876 = vunpack.c.l.b16 %v2693
        %v2877 = vunpack.c.h.b16 %v2693
        %v2878 = vunpack.c.l.b16 %v2694
        %v2879 = vunpack.c.h.b16 %v2694
        %v2880 = vunpack.c.l.b16 %v2695
        %v2881 = vunpack.c.h.b16 %v2695
        %v2882 = vunpack.c.l.b16 %v2696
        %v2883 = vunpack.c.h.b16 %v2696
        %v2884 = vunpack.c.l.b16 %v2697
        %v2885 = vunpack.c.h.b16 %v2697
        %v2886 = vunpack.c.l.b16 %v2698
        %v2887 = vunpack.c.h.b16 %v2698
        %v2888 = vunpack.c.l.b16 %v2699
        %v2889 = vunpack.c.h.b16 %v2699
        %v2890 = vunpack.c.l.b16 %v2700
        %v2891 = vunpack.c.h.b16 %v2700
        %v2892 = vunpack.c.l.b16 %v2701
        %v2893 = vunpack.c.h.b16 %v2701
        %v2894 = vunpack.c.l.b16 %v2702
        %v2895 = vunpack.c.h.b16 %v2702
        %v2896 = vunpack.c.l.b16 %v2703
        %v2897 = vunpack.c.h.b16 %v2703
        %v2898 = vunpack.c.l.b16 %v2704
        %v2899 = vunpack.c.h.b16 %v2704
        %v2900 = vunpack.c.l.b16 %v2705
        %v2901 = vunpack.c.h.b16 %v2705
        %v2902 = vunpack.c.l.b16 %v2706
        %v2903 = vunpack.c.h.b16 %v2706
        %v2904 = vunpack.c.l.b16 %v2707
        %v2905 = vunpack.c.h.b16 %v2707
        %v2906 = vunpack.c.l.b16 %v2708
        %v2907 = vunpack.c.h.b16 %v2708
        %v2908 = vunpack.c.l.b16 %v2709
        %v2909 = vunpack.c.h.b16 %v2709
        %v2910 = vunpack.c.l.b16 %v2710
        %v2911 = vunpack.c.h.b16 %v2710
        %v2912 = vunpack.c.l.b16 %v2711
        %v2913 = vunpack.c.h.b16 %v2711
        %v2914 = vunpack.c.l.b16 %v2712
        %v2915 = vunpack.c.h.b16 %v2712
        %v2916 = vunpack.c.l.b16 %v2713
        %v2917 = vunpack.c.h.b16 %v2713
        %v2918 = vpack.c.b16 %v2792, %v2790
        %v2919 = vpack.c.b16 %v2793, %v2791
        %v2920 = vpack.c.b16 %v2796, %v2794
        %v2921 = vpack.c.b16 %v2797, %v2795
        %v2922 = vpack.c.b16 %v2800, %v2798
        %v2923 = vpack.c.b16 %v2801, %v2799
        %v2924 = vpack.c.b16 %v2804, %v2802
        %v2925 = vpack.c.b16 %v2805, %v2803
        %v2926 = vpack.c.b16 %v2808, %v2806
        %v2927 = vpack.c.b16 %v2809, %v2807
        %v2928 = vpack.c.b16 %v2812, %v2810
        %v2929 = vpack.c.b16 %v2813, %v2811
        %v2930 = vpack.c.b16 %v2816, %v2814
        %v2931 = vpack.c.b16 %v2817, %v2815
        %v2932 = vpack.c.b16 %v2820, %v2818
        %v2933 = vpack.c.b16 %v2821, %v2819
        %v2934 = vpack.c.b16 %v2824, %v2822
        %v2935 = vpack.c.b16 %v2825, %v2823
        %v2936 = vpack.c.b16 %v2828, %v2826
        %v2937 = vpack.c.b16 %v2829, %v2827
        %v2938 = vpack.c.b16 %v2832, %v2830
        %v2939 = vpack.c.b16 %v2833, %v2831
        %v2940 = vpack.c.b16 %v2836, %v2834
        %v2941 = vpack.c.b16 %v2837, %v2835
        %v2942 = vpack.c.b16 %v2840, %v2838
        %v2943 = vpack.c.b16 %v2841, %v2839
        %v2944 = vpack.c.b16 %v2844, %v2842
        %v2945 = vpack.c.b16 %v2845, %v2843
        %v2946 = vpack.c.b16 %v2848, %v2846
        %v2947 = vpack.c.b16 %v2849, %v2847
        %v2948 = vpack.c.b16 %v2852, %v2850
        %v2949 = vpack.c.b16 %v2853, %v2851
        %v2950 = vpack.c.b16 %v2856, %v2854
        %v2951 = vpack.c.b16 %v2857, %v2855
        %v2952 = vpack.c.b16 %v2860, %v2858
        %v2953 = vpack.c.b16 %v2861, %v2859
        %v2954 = vpack.c.b16 %v2864, %v2862
        %v2955 = vpack.c.b16 %v2865, %v2863
        %v2956 = vpack.c.b16 %v2868, %v2866
        %v2957 = vpack.c.b16 %v2869, %v2867
        %v2958 = vpack.c.b16 %v2872, %v2870
        %v2959 = vpack.c.b16 %v2873, %v2871
        %v2960 = vpack.c.b16 %v2876, %v2874
        %v2961 = vpack.c.b16 %v2877, %v2875
        %v2962 = vpack.c.b16 %v2880, %v2878
        %v2963 = vpack.c.b16 %v2881, %v2879
        %v2964 = vpack.c.b16 %v2884, %v2882
        %v2965 = vpack.c.b16 %v2885, %v2883
        %v2966 = vpack.c.b16 %v2888, %v2886
        %v2967 = vpack.c.b16 %v2889, %v2887
        %v2968 = vpack.c.b16 %v2892, %v2890
        %v2969 = vpack.c.b16 %v2893, %v2891
        %v2970 = vpack.c.b16 %v2896, %v2894
        %v2971 = vpack.c.b16 %v2897, %v2895
        %v2972 = vpack.c.b16 %v2900, %v2898
        %v2973 = vpack.c.b16 %v2901, %v2899
        %v2974 = vpack.c.b16 %v2904, %v2902
        %v2975 = vpack.c.b16 %v2905, %v2903
        %v2976 = vpack.c.b16 %v2908, %v2906
        %v2977 = vpack.c.b16 %v2909, %v2907
        %v2978 = vpack.c.b16 %v2912, %v2910
        %v2979 = vpack.c.b16 %v2913, %v2911
        %v2980 = vpack.c.b16 %v2916, %v2914
        %v2981 = vpack.c.b16 %v2917, %v2915
        %3046 = vmatprep.subr.bf16.mxu0 %v2919
        %3047 = vmatpush1.bf16.msra.mxu0 %v2918
        %3048 = vmatprep.subr.bf16.mxu0 %v2921
        %3049 = vmatpush1.bf16.msra.mxu0 %v2920
        %3050 = vmatprep.subr.bf16.mxu0 %v2923
        %3051 = vmatpush1.bf16.msra.mxu0 %v2922
        %3052 = vmatprep.subr.bf16.mxu0 %v2925
        %3053 = vmatpush1.bf16.msra.mxu0 %v2924
        %3054 = vmatprep.subr.bf16.mxu0 %v2927
        %3055 = vmatpush1.bf16.msra.mxu0 %v2926
        %3056 = vmatprep.subr.bf16.mxu0 %v2929
        %3057 = vmatpush1.bf16.msra.mxu0 %v2928
        %3058 = vmatprep.subr.bf16.mxu0 %v2931
        %3059 = vmatpush1.bf16.msra.mxu0 %v2930
        %3060 = vmatprep.subr.bf16.mxu0 %v2933
        %3061 = vmatpush1.bf16.msra.mxu0 %v2932
        %3062 = vmatprep.subr.bf16.mxu0 %v2935
        %3063 = vmatpush1.bf16.msra.mxu0 %v2934
        %3064 = vmatprep.subr.bf16.mxu0 %v2937
        %3065 = vmatpush1.bf16.msra.mxu0 %v2936
        %3066 = vmatprep.subr.bf16.mxu0 %v2939
        %3067 = vmatpush1.bf16.msra.mxu0 %v2938
        %3068 = vmatprep.subr.bf16.mxu0 %v2941
        %3069 = vmatpush1.bf16.msra.mxu0 %v2940
        %3070 = vmatprep.subr.bf16.mxu0 %v2943
        %3071 = vmatpush1.bf16.msra.mxu0 %v2942
        %3072 = vmatprep.subr.bf16.mxu0 %v2945
        %3073 = vmatpush1.bf16.msra.mxu0 %v2944
        %3074 = vmatprep.subr.bf16.mxu0 %v2947
        %3075 = vmatpush1.bf16.msra.mxu0 %v2946
        %3076 = vmatprep.subr.bf16.mxu0 %v2949
        %3077 = vmatpush1.bf16.msra.mxu0 %v2948
        %3078 = vmatprep.mubr.bf16.mxu0 %v2647
        %3079 = vmatmul.mubr.bf16.gmra.mrb[0].mxu0 %v2646
        %v3080 = vpop.f32.mrb[0].mxu0
        %v3081 = vadd.f32 %v2719, %v3080
        %v3082 = vpop.f32.mrb[0].mxu0
        %v3083 = vadd.f32 %v2723, %v3082
        %v3084 = vpop.f32.mrb[0].mxu0
        %v3085 = vpop.f32.mrb[0].mxu0
        %3086 = vdwg.mxu0
        %3087 = vmatprep.subr.bf16.mxu0 %v2951
        %3088 = vmatpush1.bf16.msra.mxu0 %v2950
        %3089 = vmatprep.subr.bf16.mxu0 %v2953
        %3090 = vmatpush1.bf16.msra.mxu0 %v2952
        %3091 = vmatprep.subr.bf16.mxu0 %v2955
        %3092 = vmatpush1.bf16.msra.mxu0 %v2954
        %3093 = vmatprep.subr.bf16.mxu0 %v2957
        %3094 = vmatpush1.bf16.msra.mxu0 %v2956
        %3095 = vmatprep.subr.bf16.mxu0 %v2959
        %3096 = vmatpush1.bf16.msra.mxu0 %v2958
        %3097 = vmatprep.subr.bf16.mxu0 %v2961
        %3098 = vmatpush1.bf16.msra.mxu0 %v2960
        %3099 = vmatprep.subr.bf16.mxu0 %v2963
        %3100 = vmatpush1.bf16.msra.mxu0 %v2962
        %3101 = vmatprep.subr.bf16.mxu0 %v2965
        %3102 = vmatpush1.bf16.msra.mxu0 %v2964
        %3103 = vmatprep.subr.bf16.mxu0 %v2967
        %3104 = vmatpush1.bf16.msra.mxu0 %v2966
        %3105 = vmatprep.subr.bf16.mxu0 %v2969
        %3106 = vmatpush1.bf16.msra.mxu0 %v2968
        %3107 = vmatprep.subr.bf16.mxu0 %v2971
        %3108 = vmatpush1.bf16.msra.mxu0 %v2970
        %3109 = vmatprep.subr.bf16.mxu0 %v2973
        %3110 = vmatpush1.bf16.msra.mxu0 %v2972
        %3111 = vmatprep.subr.bf16.mxu0 %v2975
        %3112 = vmatpush1.bf16.msra.mxu0 %v2974
        %3113 = vmatprep.subr.bf16.mxu0 %v2977
        %3114 = vmatpush1.bf16.msra.mxu0 %v2976
        %3115 = vmatprep.subr.bf16.mxu0 %v2979
        %3116 = vmatpush1.bf16.msra.mxu0 %v2978
        %3117 = vmatprep.subr.bf16.mxu0 %v2981
        %3118 = vmatpush1.bf16.msra.mxu0 %v2980
        %3119 = vmatprep.mubr.bf16.mxu0 %v2649
        %3120 = vmatmul.mubr.bf16.gmra.mrb[0].mxu0 %v2648
        %v3121 = vpop.f32.mrb[0].mxu0
        %v3122 = vadd.f32 %v3081, %v3121
        %v3123 = vpop.f32.mrb[0].mxu0
        %v3124 = vadd.f32 %v3083, %v3123
        %v3125 = vpop.f32.mrb[0].mxu0
        %v3126 = vpop.f32.mrb[0].mxu0
        %3127 = vdwg.mxu0
        %v3128 = vmul.f32 %v3122, 0.2
        %v3129 = vmul.f32 %v3124, 0.2
        %v3130 = vmax.f32 %v3122, %v3128
        %v3131 = vmax.f32 %v3124, %v3129
        %v3132 = vpack.c.bf16 %v3130, %v3130
        %v3133 = vpack.c.bf16 %v3131, %v3131
        %v3134 = vld [vmem:[#allocation10] sm:$0xf]
        %v3135 = vld [vmem:[#allocation10 + $0x4] sm:$0xf]
        %v3136 = vld [vmem:[#allocation10 + $0x8] sm:$0xf]
        %v3137 = vld [vmem:[#allocation10 + $0xc] sm:$0xf]
        %v3138 = vld [vmem:[#allocation10 + $0x10] sm:$0xf]
        %v3139 = vld [vmem:[#allocation10 + $0x14] sm:$0xf]
        %v3140 = vld [vmem:[#allocation10 + $0x18] sm:$0xf]
        %v3141 = vld [vmem:[#allocation10 + $0x1c] sm:$0xf]
        %v3142 = vld [vmem:[#allocation10 + $0x20] sm:$0xf]
        %v3143 = vld [vmem:[#allocation10 + $0x24] sm:$0xf]
        %v3144 = vld [vmem:[#allocation10 + $0x28] sm:$0xf]
        %v3145 = vld [vmem:[#allocation10 + $0x2c] sm:$0xf]
        %v3146 = vld [vmem:[#allocation10 + $0x30] sm:$0xf]
        %v3147 = vld [vmem:[#allocation10 + $0x34] sm:$0xf]
        %v3148 = vld [vmem:[#allocation10 + $0x38] sm:$0xf]
        %v3149 = vld [vmem:[#allocation10 + $0x3c] sm:$0xf]
        %v3150 = vld [vmem:[#allocation10 + $0x40] sm:$0xf]
        %v3151 = vld [vmem:[#allocation10 + $0x44] sm:$0xf]
        %v3152 = vld [vmem:[#allocation10 + $0x48] sm:$0xf]
        %v3153 = vld [vmem:[#allocation10 + $0x4c] sm:$0xf]
        %v3154 = vld [vmem:[#allocation10 + $0x50] sm:$0xf]
        %v3155 = vld [vmem:[#allocation10 + $0x54] sm:$0xf]
        %v3156 = vld [vmem:[#allocation10 + $0x58] sm:$0xf]
        %v3157 = vld [vmem:[#allocation10 + $0x5c] sm:$0xf]
        %v3158 = vld [vmem:[#allocation10 + $0x60] sm:$0xf]
        %v3159 = vld [vmem:[#allocation10 + $0x64] sm:$0xf]
        %v3160 = vld [vmem:[#allocation10 + $0x68] sm:$0xf]
        %v3161 = vld [vmem:[#allocation10 + $0x6c] sm:$0xf]
        %v3162 = vld [vmem:[#allocation10 + $0x70] sm:$0xf]
        %v3163 = vld [vmem:[#allocation10 + $0x74] sm:$0xf]
        %v3164 = vld [vmem:[#allocation10 + $0x78] sm:$0xf]
        %v3165 = vld [vmem:[#allocation10 + $0x7c] sm:$0xf]
        %v3166 = vld [vmem:[%s8] sm:$0x1]
        %v3168 = vlaneseq
        %v3169 = vshrl.u32 %v3168, 7
        %v3170 = vsub.s32 0, %v3169
        %v3171 = vrot.slane %v3166, %v3170
        %v3205 = vunpack.c.l.b16 %v3134
        %v3206 = vunpack.c.l.b16 %v3135
        %v3207 = vunpack.c.l.b16 %v3136
        %v3208 = vunpack.c.l.b16 %v3137
        %v3209 = vunpack.c.l.b16 %v3138
        %v3210 = vunpack.c.l.b16 %v3139
        %v3211 = vunpack.c.l.b16 %v3140
        %v3212 = vunpack.c.l.b16 %v3141
        %v3213 = vunpack.c.l.b16 %v3142
        %v3214 = vunpack.c.l.b16 %v3143
        %v3215 = vunpack.c.l.b16 %v3144
        %v3216 = vunpack.c.l.b16 %v3145
        %v3217 = vunpack.c.l.b16 %v3146
        %v3218 = vunpack.c.l.b16 %v3147
        %v3219 = vunpack.c.l.b16 %v3148
        %v3220 = vunpack.c.l.b16 %v3149
        %v3221 = vunpack.c.l.b16 %v3150
        %v3222 = vunpack.c.l.b16 %v3151
        %v3223 = vunpack.c.l.b16 %v3152
        %v3224 = vunpack.c.l.b16 %v3153
        %v3225 = vunpack.c.l.b16 %v3154
        %v3226 = vunpack.c.l.b16 %v3155
        %v3227 = vunpack.c.l.b16 %v3156
        %v3228 = vunpack.c.l.b16 %v3157
        %v3229 = vunpack.c.l.b16 %v3158
        %v3230 = vunpack.c.l.b16 %v3159
        %v3231 = vunpack.c.l.b16 %v3160
        %v3232 = vunpack.c.l.b16 %v3161
        %v3233 = vunpack.c.l.b16 %v3162
        %v3234 = vunpack.c.l.b16 %v3163
        %v3235 = vunpack.c.l.b16 %v3164
        %v3236 = vunpack.c.l.b16 %v3165
        %v3237 = vpack.c.b16 %v3206, %v3205
        %v3238 = vpack.c.b16 %v3208, %v3207
        %v3239 = vpack.c.b16 %v3210, %v3209
        %v3240 = vpack.c.b16 %v3212, %v3211
        %v3241 = vpack.c.b16 %v3214, %v3213
        %v3242 = vpack.c.b16 %v3216, %v3215
        %v3243 = vpack.c.b16 %v3218, %v3217
        %v3244 = vpack.c.b16 %v3220, %v3219
        %v3245 = vpack.c.b16 %v3222, %v3221
        %v3246 = vpack.c.b16 %v3224, %v3223
        %v3247 = vpack.c.b16 %v3226, %v3225
        %v3248 = vpack.c.b16 %v3228, %v3227
        %v3249 = vpack.c.b16 %v3230, %v3229
        %v3250 = vpack.c.b16 %v3232, %v3231
        %v3251 = vpack.c.b16 %v3234, %v3233
        %v3252 = vpack.c.b16 %v3236, %v3235
        %3269 = vmatprep.subr.bf16.mxu0 0
        %3270 = vmatpush1.bf16.msra.mxu0 %v3237
        %3271 = vmatprep.subr.bf16.mxu0 0
        %3272 = vmatpush1.bf16.msra.mxu0 %v3238
        %3273 = vmatprep.subr.bf16.mxu0 0
        %3274 = vmatpush1.bf16.msra.mxu0 %v3239
        %3275 = vmatprep.subr.bf16.mxu0 0
        %3276 = vmatpush1.bf16.msra.mxu0 %v3240
        %3277 = vmatprep.subr.bf16.mxu0 0
        %3278 = vmatpush1.bf16.msra.mxu0 %v3241
        %3279 = vmatprep.subr.bf16.mxu0 0
        %3280 = vmatpush1.bf16.msra.mxu0 %v3242
        %3281 = vmatprep.subr.bf16.mxu0 0
        %3282 = vmatpush1.bf16.msra.mxu0 %v3243
        %3283 = vmatprep.subr.bf16.mxu0 0
        %3284 = vmatpush1.bf16.msra.mxu0 %v3244
        %3285 = vmatprep.subr.bf16.mxu0 0
        %3286 = vmatpush1.bf16.msra.mxu0 %v3245
        %3287 = vmatprep.subr.bf16.mxu0 0
        %3288 = vmatpush1.bf16.msra.mxu0 %v3246
        %3289 = vmatprep.subr.bf16.mxu0 0
        %3290 = vmatpush1.bf16.msra.mxu0 %v3247
        %3291 = vmatprep.subr.bf16.mxu0 0
        %3292 = vmatpush1.bf16.msra.mxu0 %v3248
        %3293 = vmatprep.subr.bf16.mxu0 0
        %3294 = vmatpush1.bf16.msra.mxu0 %v3249
        %3295 = vmatprep.subr.bf16.mxu0 0
        %3296 = vmatpush1.bf16.msra.mxu0 %v3250
        %3297 = vmatprep.subr.bf16.mxu0 0
        %3298 = vmatpush1.bf16.msra.mxu0 %v3251
        %3299 = vmatprep.subr.bf16.mxu0 0
        %3300 = vmatpush1.bf16.msra.mxu0 %v3252
        %3301 = vmatprep.mubr.bf16.mxu0 %v3133
        %3302 = vmatmul.mubr.bf16.gmra.mrb[0].mxu0 %v3132
        %v3303 = vpop.f32.mrb[0].mxu0
        %v3304 = vadd.f32 %v3171, %v3303
        %v3305 = vpop.f32.mrb[0].mxu0
        %v3306 = vpop.f32.mrb[0].mxu0
        %v3307 = vpop.f32.mrb[0].mxu0
        %3308 = vdwg.mxu0
        %vm3309 = vcmask 7168
        %3310 = vst.msk [vmem:[%s418] sm:$0xff] %vm3309, %v3304
        %p3311 = scmp.lt.s32.totalorder %s26, 1
        %s3312 = scalar_select %p3311, %s26, 1
        %s3313 = smul.addr %s3312, 8
        %s3314 = scalar_lea.vmem %s9, %s3313
        // Predicated region
        $region81: #{tpu_custom_call.1} parent=55 // pred_check
          %p3315 = pneg %p238
        $region82: #{tpu_custom_call.1} parent=55 // pred_check_branch
          %3317 = sbr.rel (%p3315) target = $region84
        $region83: #{tpu_custom_call.1} parent=55 // pred_region
          _
        $region84: #{tpu_custom_call.1} parent=55 // pred_fallthru
          _
      $region56: #{tpu_custom_call.1} parent=5 // pred_fallthru
        _
      %p3318 = scmp.le.s32.totalorder 2, %s21
      // Predicated region
      $region85: #{tpu_custom_call.1} parent=5 // pred_check
        %p3319 = pneg %p3318
      $region86: #{tpu_custom_call.1} parent=5 // pred_check_branch
        %3321 = sbr.rel (%p3319) target = $region88
      $region87: #{tpu_custom_call.1} parent=5 // pred_region
        %s3322 = ssub.s32 %s21, 2
        // Predicated region
        $region89: #{tpu_custom_call.1} parent=87 // pred_check
          %p3323 = pneg %p244
        $region90: #{tpu_custom_call.1} parent=87 // pred_check_branch
          %3325 = sbr.rel (%p3323) target = $region92
        $region91: #{tpu_custom_call.1} parent=87 // pred_region
          %p3326 = scmp.lt.s32.totalorder %s27, 1
          %s3327 = scalar_select %p3326, %s27, 1
          %s3328 = smul.addr %s3327, 8
          %s3329 = scalar_lea.vmem %s9, %s3328
        $region92: #{tpu_custom_call.1} parent=87 // pred_fallthru
          _
      $region88: #{tpu_custom_call.1} parent=5 // pred_fallthru
        _
    $region6: #{tpu_custom_call.1} parent=1 // loop_footer
      %s25 = sadd.s32 1, %s21
    $region7: #{tpu_custom_call.1} parent=1 // loop_footer_branch
      %20 = sbr.rel target = $region3
    $region8: #{tpu_custom_call.1} parent=1 // loop_exit
      _
    %3330 = vsyncpa [#allocation3], 1
    %s3331 = scalar_lea.sflag [#allocation3], 1
    %3332 = vsyncpa %s3331, 1
    %3333 = vsyncpa [#allocation5], 1
    %3334 = vsyncpa [#allocation8], 1
    %3335 = vsyncpa [#allocation11], 1

</llo_original>
